<compile_context>
chip_gen: v7x
topology: tpu7x:2x2x1
jax: 0.10.0
libtpu: 0.0.40
codegen_flags: <defaults>
</compile_context>

<pallas_src>
import functools

import numpy as np
import jax
import jax.numpy as jnp
from jax.experimental import pallas as pl
from jax.experimental.pallas import tpu as pltpu

_LANE = 128     # lane width; output N is always padded to a multiple of this


def _round_up(x, m):
    return ((x + m - 1) // m) * m


def _num_tensorcores_per_chip():
    """Best-effort TC count (2 on v7x megacore). Any failure -> 1 (v5e/v6e)."""
    try:
        info = pltpu.get_tpu_info()
        for name in ("num_cores", "tensor_cores_per_chip", "num_tensor_cores",
                     "cores_per_chip"):
            v = getattr(info, name, None)
            if isinstance(v, int) and v > 0:
                return v
    except Exception:
        pass
    try:
        v = getattr(jax.devices()[0], "num_cores", None)
        if isinstance(v, int) and v > 0:
            return v
    except Exception:
        pass
    return 1


_NUM_TENSORCORES = _num_tensorcores_per_chip()


def _choose_m_tiling(M):
    """Pick (tile_m, M_pad). 16-row multiples (bf16 sublane packing)."""
    m16 = _round_up(M, 16)
    if _NUM_TENSORCORES >= 2 and m16 >= 256:
        # megacore (v7x): make the "parallel" grid axis have >= 2 steps
        tile = min(512, _round_up((m16 + 1) // 2, 16))
    elif m16 <= 1024:
        tile = m16          # single block: weights are grid-invariant, nothing
                            # to pipeline, avoid ~0.35us/step overhead
    else:
        tile = 512
    m_pad = _round_up(m16, tile)
    return tile, m_pad


# ----------------------------------------------------------------------------
# Pallas kernel 1: fused (M, K) @ (K, Np) + bias [+ ReLU]; bf16 in, f32 acc
# ----------------------------------------------------------------------------
def _matmul_bias_kernel(x_ref, w_ref, b_ref, o_ref, *, relu):
    acc = jnp.dot(x_ref[...], w_ref[...], preferred_element_type=jnp.float32)
    acc = acc + b_ref[...]
    if relu:
        acc = jnp.maximum(acc, 0.0)
    o_ref[...] = acc.astype(o_ref.dtype)


def matmul_bias(x, w, b, *, relu=False, out_cols=None, out_dtype=jnp.bfloat16):
    """x: (M, K); w: (K, Np) bf16, Np % 128 == 0; b: (1, Np) f32.

    Returns (M, out_cols) in `out_dtype` (bf16 for internal layers)."""
    M, K = x.shape
    K2, Np = w.shape
    assert K == K2, (K, K2)
    assert Np % _LANE == 0, Np

    tile_m, M_pad = _choose_m_tiling(M)

    xb = x.astype(jnp.bfloat16)
    if M_pad != M:
        xb = jnp.pad(xb, ((0, M_pad - M), (0, 0)))

    out_bytes = jnp.dtype(out_dtype).itemsize
    cost = pl.CostEstimate(
        flops=2 * M_pad * K * Np,
        transcendentals=0,
        bytes_accessed=M_pad * K * 2 + K * Np * 2 + Np * 4 + M_pad * Np * out_bytes,
    )
    out = pl.pallas_call(
        functools.partial(_matmul_bias_kernel, relu=relu),
        out_shape=jax.ShapeDtypeStruct((M_pad, Np), out_dtype),
        grid=(M_pad // tile_m,),
        in_specs=[
            pl.BlockSpec((tile_m, K), lambda i: (i, 0)),
            pl.BlockSpec((K, Np), lambda i: (0, 0)),
            pl.BlockSpec((1, Np), lambda i: (0, 0)),
        ],
        out_specs=pl.BlockSpec((tile_m, Np), lambda i: (i, 0)),
        compiler_params=pltpu.CompilerParams(
            dimension_semantics=("parallel",),
            # Tiny per-call footprint on every generation; revisit (48 MiB cap
            # on v7x vs ~96 MiB v5e/v6e) once whole stages are fused in-kernel.
            vmem_limit_bytes=32 * 1024 * 1024,
        ),
        cost_estimate=cost,
    )(xb, w, b)

    if out_cols is None:
        out_cols = Np
    if M_pad != M or out_cols != Np:
        # TODO(synk): drop this slice (keep channel-padded activations
        # end-to-end) once im2col moves in-kernel.
        out = out[:M, :out_cols]
    return out


# ----------------------------------------------------------------------------
# Pallas kernel 2: fused heads (mu|log_var|pose) + reparameterise + decoder
# Linear. One launch, intermediates stay in VMEM / vregs.
# ----------------------------------------------------------------------------
def _heads_reparam_declin_kernel(x_ref, eps_ref, hw_ref, hb_ref,
                                 dwz_ref, dwp_ref, db_ref,
                                 heads_ref, z_ref, dec_ref, *, L, P):
    # heads GEMM: [mu | log_var | pose | pad] in one 128-lane-wide MXU dot
    h = jnp.dot(x_ref[...], hw_ref[...], preferred_element_type=jnp.float32)
    h = h + hb_ref[...]
    heads_ref[...] = h                       # lane-dense (B_pad, 128) f32 store

    mu = h[:, :L]
    log_var = h[:, L:2 * L]
    pose = h[:, 2 * L:2 * L + P]

    # reparameterise in-register (EUP exp, VPU mul/add)
    std = jnp.exp(0.5 * log_var)
    z = eps_ref[...] * std + mu
    z_ref[...] = z

    # decoder Linear on z_pose = [pose, z]: z-part as an MXU dot, pose-part as
    # per-dim rank-1 VPU updates (avoids an in-kernel concat).
    dec = jnp.dot(z.astype(jnp.bfloat16), dwz_ref[...],
                  preferred_element_type=jnp.float32)
    for j in range(P):
        dec = dec + pose[:, j:j + 1] * dwp_ref[j:j + 1, :]
    dec = dec + db_ref[...]
    dec_ref[...] = dec.astype(dec_ref.dtype)


def heads_reparam_declin(encoded, eps, prep, cfg):
    L, P = cfg["latent_dims"], cfg["pose_dims"]
    flat = cfg["flat_shape"]
    flat_pad = prep["dl_b"].shape[1]
    B = encoded.shape[0]
    B_pad = _round_up(B, 16)

    xb = encoded.astype(jnp.bfloat16)
    eps_p = eps.astype(jnp.float32)
    if B_pad != B:
        xb = jnp.pad(xb, ((0, B_pad - B), (0, 0)))
        eps_p = jnp.pad(eps_p, ((0, B_pad - B), (0, 0)))

    heads, z, dec = pl.pallas_call(
        functools.partial(_heads_reparam_declin_kernel, L=L, P=P),
        out_shape=(
            jax.ShapeDtypeStruct((B_pad, _LANE), jnp.float32),     # mu|lv|pose
            jax.ShapeDtypeStruct((B_pad, L), jnp.float32),         # z
            jax.ShapeDtypeStruct((B_pad, flat_pad), jnp.bfloat16),  # decoder lin
        ),
    )(xb, eps_p, prep["heads_w"], prep["heads_b"],
      prep["dl_w_z"], prep["dl_w_pose"], prep["dl_b"])

    mu = heads[:B, :L]
    log_var = heads[:B, L:2 * L]
    pose = heads[:B, 2 * L:2 * L + P]
    z = z[:B]
    z_pose = jnp.concatenate([pose, z], axis=-1)
    return mu, log_var, z, z_pose, dec[:B, :flat]


# ----------------------------------------------------------------------------
# Conv / ConvTranspose via im2col (bf16 glue) + Pallas GEMM (hot path)
# ----------------------------------------------------------------------------
# TODO(synk): stride-2 im2col gather / zero-dilation stays as XLA slicing glue.
def _extract_patches(x, k, stride):
    """x: (B, H, W, C) already padded -> ((B*Ho*Wo, k*k*C), (B, Ho, Wo))."""
    B, H, W, C = x.shape
    Ho = (H - k) // stride + 1
    Wo = (W - k) // stride + 1
    cols = []
    for di in range(k):
        for dj in range(k):
            cols.append(
                x[:, di:di + (Ho - 1) * stride + 1:stride,
                     dj:dj + (Wo - 1) * stride + 1:stride, :]
            )
    patches = jnp.stack(cols, axis=3)  # (B, Ho, Wo, k*k, C)
    return patches.reshape(B * Ho * Wo, k * k * C), (B, Ho, Wo)


def conv2d(x, w_mat, b_row, cout, *, k, stride, padding, relu,
           out_dtype=jnp.bfloat16):
    """x: (B,H,W,Cin) NHWC; w_mat: (k*k*Cin, Np) bf16; b_row: (1, Np) f32."""
    x = x.astype(jnp.bfloat16)
    xp = jnp.pad(x, ((0, 0), (padding, padding), (padding, padding), (0, 0)))
    patches, (B, Ho, Wo) = _extract_patches(xp, k, stride)
    out = matmul_bias(patches, w_mat, b_row, relu=relu, out_cols=cout,
                      out_dtype=out_dtype)
    return out.reshape(B, Ho, Wo, cout)


def conv_transpose2d(x, w_mat, b_row, cout, *, k, stride, padding, relu,
                     out_dtype=jnp.bfloat16):
    """PyTorch ConvTranspose2d (output_padding=0) as dilate+pad+stride-1 conv.

    TODO(synk): replace the zero-dilation with a sub-pixel phase decomposition
    (or in-kernel tap index math) to avoid ~75% structural-zero MACs.
    """
    x = x.astype(jnp.bfloat16)
    B, H, W, Cin = x.shape
    xd = jnp.zeros((B, (H - 1) * stride + 1, (W - 1) * stride + 1, Cin), x.dtype)
    xd = xd.at[:, ::stride, ::stride, :].set(x)
    p = k - 1 - padding
    xp = jnp.pad(xd, ((0, 0), (p, p), (p, p), (0, 0)))
    patches, (B, Ho, Wo) = _extract_patches(xp, k, 1)
    out = matmul_bias(patches, w_mat, b_row, relu=relu, out_cols=cout,
                      out_dtype=out_dtype)
    return out.reshape(B, Ho, Wo, cout)


# ----------------------------------------------------------------------------
# Parameter construction (PyTorch layouts) + one-time kernel-ready prep
# ----------------------------------------------------------------------------
def init_params(key, *, input_shape=(1, 32, 32), latent_dims=8, pose_dims=1,
                filters=(8, 16, 32, 64)):
    channels = input_shape[0]
    spatial = input_shape[1:]
    unflat_shape = (filters[3],) + tuple(s // (2 ** 4) for s in spatial)
    flat_shape = int(np.prod(unflat_shape))

    keys = iter(jax.random.split(key, 32))

    def w_init(shape, fan_in):
        return jax.random.normal(next(keys), shape, jnp.float32) / np.sqrt(fan_in)

    def b_init(shape, fan_in):
        return jax.random.normal(next(keys), shape, jnp.float32) / np.sqrt(fan_in)

    p = {}
    enc_chans = [channels] + list(filters)
    for i in range(4):  # Conv2d(in, out, 3, stride=2, padding=1)
        cin, cout = enc_chans[i], enc_chans[i + 1]
        p[f"enc_w{i}"] = w_init((cout, cin, 3, 3), cin * 9)
        p[f"enc_b{i}"] = b_init((cout,), cin * 9)

    p["dec_lin_w"] = w_init((flat_shape, latent_dims + pose_dims),
                            latent_dims + pose_dims)          # (out, in)
    p["dec_lin_b"] = b_init((flat_shape,), latent_dims + pose_dims)
    dec_specs = [  # (cin, cout, k, stride, padding, relu)
        (filters[3], filters[2], 3, 2, 0, True),
        (filters[2], filters[1], 3, 2, 1, True),
        (filters[1], filters[0], 3, 2, 1, True),
        (filters[0], channels, 2, 2, 1, False),
    ]
    for i, (cin, cout, k, _, _, _) in enumerate(dec_specs):
        p[f"dec_w{i}"] = w_init((cin, cout, k, k), cin * k * k)  # ConvT layout
        p[f"dec_b{i}"] = b_init((cout,), cin * k * k)

    p["mu_w"] = w_init((latent_dims, flat_shape), flat_shape)
    p["mu_b"] = b_init((latent_dims,), flat_shape)
    p["lv_w"] = w_init((latent_dims, flat_shape), flat_shape)
    p["lv_b"] = b_init((latent_dims,), flat_shape)
    p["pose_w"] = w_init((pose_dims, flat_shape), flat_shape)
    p["pose_b"] = b_init((pose_dims,), flat_shape)

    cfg = dict(channels=channels, filters=tuple(filters),
               latent_dims=latent_dims, pose_dims=pose_dims,
               unflat_shape=unflat_shape, flat_shape=flat_shape,
               dec_specs=dec_specs)
    return p, cfg


def _prep_gemm_weight(w_mat, bias):
    """Pad N to a multiple of 128 (lane-dense stores), cast: w->bf16, b->f32."""
    K, N = w_mat.shape
    n_pad = _round_up(N, _LANE)
    if n_pad != N:
        w_mat = jnp.pad(w_mat, ((0, 0), (0, n_pad - N)))
        bias = jnp.pad(bias, (0, n_pad - N))
    return w_mat.astype(jnp.bfloat16), bias.reshape(1, n_pad).astype(jnp.float32)


def prepare_params(p, cfg):
    """One-time conversion of PyTorch-layout params to kernel-ready matrices."""
    uC, uH, uW = cfg["unflat_shape"]
    flat = cfg["flat_shape"]
    L, P = cfg["latent_dims"], cfg["pose_dims"]
    prep = {}

    # encoder convs: (Cout, Cin, k, k) -> rows (ki, kj, cin), cols cout (padded)
    for i in range(4):
        w = p[f"enc_w{i}"]
        cout, cin, k, _ = w.shape
        w_mat = jnp.transpose(w, (2, 3, 1, 0)).reshape(k * k * cin, cout)
        prep[f"enc_w{i}"], prep[f"enc_b{i}"] = _prep_gemm_weight(w_mat, p[f"enc_b{i}"])

    # decoder transposed convs: (Cin, Cout, k, k) -> flip + rows (ki, kj, cin)
    for i, (cin, cout, k, _, _, _) in enumerate(cfg["dec_specs"]):
        w_eq = jnp.flip(p[f"dec_w{i}"], axis=(2, 3))
        w_mat = jnp.transpose(w_eq, (2, 3, 0, 1)).reshape(k * k * cin, cout)
        prep[f"dec_w{i}"], prep[f"dec_b{i}"] = _prep_gemm_weight(w_mat, p[f"dec_b{i}"])

    # fused heads [mu | log_var | pose]; fold the CHW->HWC flatten permutation
    # into the weight columns so `encoded` can stay NHWC-flattened.
    w_heads = jnp.concatenate([p["mu_w"], p["lv_w"], p["pose_w"]], axis=0)
    w_heads = (w_heads.reshape(-1, uC, uH, uW)
                      .transpose(0, 2, 3, 1)
                      .reshape(-1, flat))
    b_heads = jnp.concatenate([p["mu_b"], p["lv_b"], p["pose_b"]], axis=0)
    prep["heads_w"], prep["heads_b"] = _prep_gemm_weight(w_heads.T, b_heads)

    # decoder linear; fold the Unflatten CHW->HWC permutation into the output
    # columns, split rows into the pose part (f32, rank-1 VPU update) and the
    # z part (bf16 MXU dot) so the fused kernel needs no concat.
    w_dl = (p["dec_lin_w"].reshape(uC, uH, uW, -1)
                          .transpose(1, 2, 0, 3)
                          .reshape(flat, L + P))
    b_dl = p["dec_lin_b"].reshape(uC, uH, uW).transpose(1, 2, 0).reshape(flat)
    flat_pad = _round_up(flat, _LANE)
    w_dl_t = w_dl.T  # (L+P, flat); rows 0..P-1 = pose, P..P+L-1 = z
    if flat_pad != flat:
        w_dl_t = jnp.pad(w_dl_t, ((0, 0), (0, flat_pad - flat)))
        b_dl = jnp.pad(b_dl, (0, flat_pad - flat))
    prep["dl_w_pose"] = w_dl_t[:P].astype(jnp.float32)
    prep["dl_w_z"] = w_dl_t[P:P + L].astype(jnp.bfloat16)
    prep["dl_b"] = b_dl.reshape(1, flat_pad).astype(jnp.float32)

    return prep


# ----------------------------------------------------------------------------
# Forward pass (mirrors AffinityVAE.forward)
# ----------------------------------------------------------------------------
def affinity_vae_forward(prep, cfg, x_nchw, eps):
    B = x_nchw.shape[0]
    uC, uH, uW = cfg["unflat_shape"]
    filters = cfg["filters"]

    # ---- encode (bf16 activations end-to-end; GEMM outputs bf16) ----
    h = jnp.transpose(x_nchw, (0, 2, 3, 1)).astype(jnp.bfloat16)  # NCHW -> NHWC
    for i in range(4):
        h = conv2d(h, prep[f"enc_w{i}"], prep[f"enc_b{i}"], filters[i],
                   k=3, stride=2, padding=1, relu=True, out_dtype=jnp.bfloat16)
    encoded = h.reshape(B, -1)  # NHWC flatten (head weights permuted to match)

    # ---- heads + reparameterise + decoder Linear: ONE fused pallas_call ----
    # TODO(synk): torch.randn_like inside the model is replaced by explicit
    # jax.random noise `eps` supplied by the caller.
    mu, log_var, z, z_pose, d = heads_reparam_declin(encoded, eps, prep, cfg)

    # ---- decode ----
    d = d.reshape(B, uH, uW, uC)  # already NHWC (permutation folded into weight)
    n_dec = len(cfg["dec_specs"])
    for i, (cin, cout, k, stride, padding, relu) in enumerate(cfg["dec_specs"]):
        out_dtype = jnp.bfloat16 if i < n_dec - 1 else jnp.float32
        d = conv_transpose2d(d, prep[f"dec_w{i}"], prep[f"dec_b{i}"], cout,
                             k=k, stride=stride, padding=padding, relu=relu,
                             out_dtype=out_dtype)
    x_recon = jnp.transpose(d, (0, 3, 1, 2))  # NHWC -> NCHW

    return x_recon, z, z_pose, mu, log_var


# ----------------------------------------------------------------------------
if __name__ == "__main__":
    key = jax.random.PRNGKey(0)
    k_param, k_x, k_eps = jax.random.split(key, 3)

    input_shape = (1, 32, 32)
    latent_dims, pose_dims = 8, 1
    batch = 2

    params, cfg = init_params(k_param, input_shape=input_shape,
                              latent_dims=latent_dims, pose_dims=pose_dims,
                              filters=(8, 16, 32, 64))
    prep = prepare_params(params, cfg)   # one-time weight prep (pad/permute/bf16)

    x = jax.random.normal(k_x, (batch,) + input_shape, jnp.float32)
    eps = jax.random.normal(k_eps, (batch, latent_dims), jnp.float32)

    fwd = jax.jit(functools.partial(affinity_vae_forward, prep, cfg))
    x_recon, z, z_pose, mu, log_var = fwd(x, eps)
    jax.block_until_ready((x_recon, z, z_pose, mu, log_var))

    assert x_recon.shape == (batch,) + input_shape, x_recon.shape
    assert z.shape == (batch, latent_dims)
    assert z_pose.shape == (batch, latent_dims + pose_dims)
    assert mu.shape == (batch, latent_dims) and log_var.shape == (batch, latent_dims)
    assert bool(jnp.all(jnp.isfinite(x_recon)))
    assert bool(jnp.all(jnp.isfinite(z_pose)))
    print("KERNEL_OK")
</pallas_src>

<mosaic_0001>
module attributes {stable_mosaic.version = 11 : i64} {
  func.func @_matmul_bias_kernel(%arg0: i32, %arg1: memref<512x9xbf16, #tpu.memory_space<vmem>>, %arg2: memref<9x128xbf16, #tpu.memory_space<vmem>>, %arg3: memref<1x128xf32, #tpu.memory_space<vmem>>, %arg4: memref<512x128xbf16, #tpu.memory_space<vmem>>) attributes {dimension_semantics = [#tpu.dimension_semantics<parallel>], iteration_bounds = array<i64: 1>, scalar_prefetch = 0 : i64, scratch_operands = 0 : i64, tpu.core_type = #tpu.core_type<tc>, window_params = [{transform_indices = @transform_0, window_bounds = array<i64: 512, 9>}, {pipeline_mode = #tpu.pipeline_mode<synchronous>, transform_indices = @transform_1, window_bounds = array<i64: 9, 128>}, {pipeline_mode = #tpu.pipeline_mode<synchronous>, transform_indices = @transform_2, window_bounds = array<i64: 1, 128>}, {transform_indices = @transform_3, window_bounds = array<i64: 512, 128>}]} {
    %c0 = arith.constant 0 : index
    %c0_0 = arith.constant 0 : index
    %0 = vector.load %arg1[%c0, %c0_0] : memref<512x9xbf16, #tpu.memory_space<vmem>>, vector<512x9xbf16>
    %c0_1 = arith.constant 0 : index
    %c0_2 = arith.constant 0 : index
    %1 = vector.load %arg2[%c0_1, %c0_2] : memref<9x128xbf16, #tpu.memory_space<vmem>>, vector<9x128xbf16>
    %cst = arith.constant dense<0.000000e+00> : vector<512x128xf32>
    %2 = tpu.matmul %0, %1, %cst {dimension_numbers = #tpu.dot_dimension_numbers<[1], [0], [0], [1], [0, 0, 1, 1], [], []>} : vector<512x9xbf16>, vector<9x128xbf16>, vector<512x128xf32> -> vector<512x128xf32>
    %c0_3 = arith.constant 0 : index
    %c0_4 = arith.constant 0 : index
    %3 = vector.load %arg3[%c0_3, %c0_4] : memref<1x128xf32, #tpu.memory_space<vmem>>, vector<1x128xf32>
    %4 = vector.broadcast %3 : vector<1x128xf32> to vector<512x128xf32>
    %5 = arith.addf %2, %4 : vector<512x128xf32>
    %cst_5 = arith.constant 0.000000e+00 : f32
    %6 = vector.broadcast %cst_5 : f32 to vector<512x128xf32>
    %7 = arith.maximumf %5, %6 : vector<512x128xf32>
    %8 = arith.truncf %7 : vector<512x128xf32> to vector<512x128xbf16>
    %c0_6 = arith.constant 0 : index
    %c0_7 = arith.constant 0 : index
    %9 = vector.load %arg4[%c0_6, %c0_7] : memref<512x128xbf16, #tpu.memory_space<vmem>>, vector<512x128xbf16>
    tpu.vector_store %arg4[%c0_6, %c0_7], %8 {strides = array<i32>} : memref<512x128xbf16, #tpu.memory_space<vmem>>, vector<512x128xbf16>,
    return
  }
  func.func @transform_0(%arg0: i32) -> (i32, i32) {
    %c0_i32 = arith.constant 0 : i32
    %c0_i32_0 = arith.constant 0 : i32
    return %arg0, %c0_i32 : i32, i32
  }
  func.func @transform_1(%arg0: i32) -> (i32, i32) {
    %c0_i32 = arith.constant 0 : i32
    %c0_i32_0 = arith.constant 0 : i32
    %c0_i32_1 = arith.constant 0 : i32
    return %c0_i32, %c0_i32_0 : i32, i32
  }
  func.func @transform_2(%arg0: i32) -> (i32, i32) {
    %c0_i32 = arith.constant 0 : i32
    %c0_i32_0 = arith.constant 0 : i32
    %c0_i32_1 = arith.constant 0 : i32
    return %c0_i32, %c0_i32_0 : i32, i32
  }
  func.func @transform_3(%arg0: i32) -> (i32, i32) {
    %c0_i32 = arith.constant 0 : i32
    %c0_i32_0 = arith.constant 0 : i32
    return %arg0, %c0_i32 : i32, i32
  }
}

module attributes {stable_mosaic.version = 11 : i64} {
  func.func @_matmul_bias_kernel(%arg0: i32, %arg1: memref<128x72xbf16, #tpu.memory_space<vmem>>, %arg2: memref<72x128xbf16, #tpu.memory_space<vmem>>, %arg3: memref<1x128xf32, #tpu.memory_space<vmem>>, %arg4: memref<128x128xbf16, #tpu.memory_space<vmem>>) attributes {dimension_semantics = [#tpu.dimension_semantics<parallel>], iteration_bounds = array<i64: 1>, scalar_prefetch = 0 : i64, scratch_operands = 0 : i64, tpu.core_type = #tpu.core_type<tc>, window_params = [{transform_indices = @transform_0, window_bounds = array<i64: 128, 72>}, {pipeline_mode = #tpu.pipeline_mode<synchronous>, transform_indices = @transform_1, window_bounds = array<i64: 72, 128>}, {pipeline_mode = #tpu.pipeline_mode<synchronous>, transform_indices = @transform_2, window_bounds = array<i64: 1, 128>}, {transform_indices = @transform_3, window_bounds = array<i64: 128, 128>}]} {
    %c0 = arith.constant 0 : index
    %c0_0 = arith.constant 0 : index
    %0 = vector.load %arg1[%c0, %c0_0] : memref<128x72xbf16, #tpu.memory_space<vmem>>, vector<128x72xbf16>
    %c0_1 = arith.constant 0 : index
    %c0_2 = arith.constant 0 : index
    %1 = vector.load %arg2[%c0_1, %c0_2] : memref<72x128xbf16, #tpu.memory_space<vmem>>, vector<72x128xbf16>
    %cst = arith.constant dense<0.000000e+00> : vector<128x128xf32>
    %2 = tpu.matmul %0, %1, %cst {dimension_numbers = #tpu.dot_dimension_numbers<[1], [0], [0], [1], [0, 0, 1, 1], [], []>} : vector<128x72xbf16>, vector<72x128xbf16>, vector<128x128xf32> -> vector<128x128xf32>
    %c0_3 = arith.constant 0 : index
    %c0_4 = arith.constant 0 : index
    %3 = vector.load %arg3[%c0_3, %c0_4] : memref<1x128xf32, #tpu.memory_space<vmem>>, vector<1x128xf32>
    %4 = vector.broadcast %3 : vector<1x128xf32> to vector<128x128xf32>
    %5 = arith.addf %2, %4 : vector<128x128xf32>
    %cst_5 = arith.constant 0.000000e+00 : f32
    %6 = vector.broadcast %cst_5 : f32 to vector<128x128xf32>
    %7 = arith.maximumf %5, %6 : vector<128x128xf32>
    %8 = arith.truncf %7 : vector<128x128xf32> to vector<128x128xbf16>
    %c0_6 = arith.constant 0 : index
    %c0_7 = arith.constant 0 : index
    %9 = vector.load %arg4[%c0_6, %c0_7] : memref<128x128xbf16, #tpu.memory_space<vmem>>, vector<128x128xbf16>
    tpu.vector_store %arg4[%c0_6, %c0_7], %8 {strides = array<i32>} : memref<128x128xbf16, #tpu.memory_space<vmem>>, vector<128x128xbf16>,
    return
  }
  func.func @transform_0(%arg0: i32) -> (i32, i32) {
    %c0_i32 = arith.constant 0 : i32
    %c0_i32_0 = arith.constant 0 : i32
    return %arg0, %c0_i32 : i32, i32
  }
  func.func @transform_1(%arg0: i32) -> (i32, i32) {
    %c0_i32 = arith.constant 0 : i32
    %c0_i32_0 = arith.constant 0 : i32
    %c0_i32_1 = arith.constant 0 : i32
    return %c0_i32, %c0_i32_0 : i32, i32
  }
  func.func @transform_2(%arg0: i32) -> (i32, i32) {
    %c0_i32 = arith.constant 0 : i32
    %c0_i32_0 = arith.constant 0 : i32
    %c0_i32_1 = arith.constant 0 : i32
    return %c0_i32, %c0_i32_0 : i32, i32
  }
  func.func @transform_3(%arg0: i32) -> (i32, i32) {
    %c0_i32 = arith.constant 0 : i32
    %c0_i32_0 = arith.constant 0 : i32
    return %arg0, %c0_i32 : i32, i32
  }
}

module attributes {stable_mosaic.version = 11 : i64} {
  func.func @_matmul_bias_kernel(%arg0: i32, %arg1: memref<32x144xbf16, #tpu.memory_space<vmem>>, %arg2: memref<144x128xbf16, #tpu.memory_space<vmem>>, %arg3: memref<1x128xf32, #tpu.memory_space<vmem>>, %arg4: memref<32x128xbf16, #tpu.memory_space<vmem>>) attributes {dimension_semantics = [#tpu.dimension_semantics<parallel>], iteration_bounds = array<i64: 1>, scalar_prefetch = 0 : i64, scratch_operands = 0 : i64, tpu.core_type = #tpu.core_type<tc>, window_params = [{transform_indices = @transform_0, window_bounds = array<i64: 32, 144>}, {pipeline_mode = #tpu.pipeline_mode<synchronous>, transform_indices = @transform_1, window_bounds = array<i64: 144, 128>}, {pipeline_mode = #tpu.pipeline_mode<synchronous>, transform_indices = @transform_2, window_bounds = array<i64: 1, 128>}, {transform_indices = @transform_3, window_bounds = array<i64: 32, 128>}]} {
    %c0 = arith.constant 0 : index
    %c0_0 = arith.constant 0 : index
    %0 = vector.load %arg1[%c0, %c0_0] : memref<32x144xbf16, #tpu.memory_space<vmem>>, vector<32x144xbf16>
    %c0_1 = arith.constant 0 : index
    %c0_2 = arith.constant 0 : index
    %1 = vector.load %arg2[%c0_1, %c0_2] : memref<144x128xbf16, #tpu.memory_space<vmem>>, vector<144x128xbf16>
    %cst = arith.constant dense<0.000000e+00> : vector<32x128xf32>
    %2 = tpu.matmul %0, %1, %cst {dimension_numbers = #tpu.dot_dimension_numbers<[1], [0], [0], [1], [0, 0, 1, 1], [], []>} : vector<32x144xbf16>, vector<144x128xbf16>, vector<32x128xf32> -> vector<32x128xf32>
    %c0_3 = arith.constant 0 : index
    %c0_4 = arith.constant 0 : index
    %3 = vector.load %arg3[%c0_3, %c0_4] : memref<1x128xf32, #tpu.memory_space<vmem>>, vector<1x128xf32>
    %4 = vector.broadcast %3 : vector<1x128xf32> to vector<32x128xf32>
    %5 = arith.addf %2, %4 : vector<32x128xf32>
    %cst_5 = arith.constant 0.000000e+00 : f32
    %6 = vector.broadcast %cst_5 : f32 to vector<32x128xf32>
    %7 = arith.maximumf %5, %6 : vector<32x128xf32>
    %8 = arith.truncf %7 : vector<32x128xf32> to vector<32x128xbf16>
    %c0_6 = arith.constant 0 : index
    %c0_7 = arith.constant 0 : index
    %9 = vector.load %arg4[%c0_6, %c0_7] : memref<32x128xbf16, #tpu.memory_space<vmem>>, vector<32x128xbf16>
    tpu.vector_store %arg4[%c0_6, %c0_7], %8 {strides = array<i32>} : memref<32x128xbf16, #tpu.memory_space<vmem>>, vector<32x128xbf16>,
    return
  }
  func.func @transform_0(%arg0: i32) -> (i32, i32) {
    %c0_i32 = arith.constant 0 : i32
    %c0_i32_0 = arith.constant 0 : i32
    return %arg0, %c0_i32 : i32, i32
  }
  func.func @transform_1(%arg0: i32) -> (i32, i32) {
    %c0_i32 = arith.constant 0 : i32
    %c0_i32_0 = arith.constant 0 : i32
    %c0_i32_1 = arith.constant 0 : i32
    return %c0_i32, %c0_i32_0 : i32, i32
  }
  func.func @transform_2(%arg0: i32) -> (i32, i32) {
    %c0_i32 = arith.constant 0 : i32
    %c0_i32_0 = arith.constant 0 : i32
    %c0_i32_1 = arith.constant 0 : i32
    return %c0_i32, %c0_i32_0 : i32, i32
  }
  func.func @transform_3(%arg0: i32) -> (i32, i32) {
    %c0_i32 = arith.constant 0 : i32
    %c0_i32_0 = arith.constant 0 : i32
    return %arg0, %c0_i32 : i32, i32
  }
}

module attributes {stable_mosaic.version = 11 : i64} {
  func.func @_matmul_bias_kernel(%arg0: i32, %arg1: memref<16x288xbf16, #tpu.memory_space<vmem>>, %arg2: memref<288x128xbf16, #tpu.memory_space<vmem>>, %arg3: memref<1x128xf32, #tpu.memory_space<vmem>>, %arg4: memref<16x128xbf16, #tpu.memory_space<vmem>>) attributes {dimension_semantics = [#tpu.dimension_semantics<parallel>], iteration_bounds = array<i64: 1>, scalar_prefetch = 0 : i64, scratch_operands = 0 : i64, tpu.core_type = #tpu.core_type<tc>, window_params = [{transform_indices = @transform_0, window_bounds = array<i64: 16, 288>}, {pipeline_mode = #tpu.pipeline_mode<synchronous>, transform_indices = @transform_1, window_bounds = array<i64: 288, 128>}, {pipeline_mode = #tpu.pipeline_mode<synchronous>, transform_indices = @transform_2, window_bounds = array<i64: 1, 128>}, {transform_indices = @transform_3, window_bounds = array<i64: 16, 128>}]} {
    %c0 = arith.constant 0 : index
    %c0_0 = arith.constant 0 : index
    %0 = vector.load %arg1[%c0, %c0_0] : memref<16x288xbf16, #tpu.memory_space<vmem>>, vector<16x288xbf16>
    %c0_1 = arith.constant 0 : index
    %c0_2 = arith.constant 0 : index
    %1 = vector.load %arg2[%c0_1, %c0_2] : memref<288x128xbf16, #tpu.memory_space<vmem>>, vector<288x128xbf16>
    %cst = arith.constant dense<0.000000e+00> : vector<16x128xf32>
    %2 = tpu.matmul %0, %1, %cst {dimension_numbers = #tpu.dot_dimension_numbers<[1], [0], [0], [1], [0, 0, 1, 1], [], []>} : vector<16x288xbf16>, vector<288x128xbf16>, vector<16x128xf32> -> vector<16x128xf32>
    %c0_3 = arith.constant 0 : index
    %c0_4 = arith.constant 0 : index
    %3 = vector.load %arg3[%c0_3, %c0_4] : memref<1x128xf32, #tpu.memory_space<vmem>>, vector<1x128xf32>
    %4 = vector.broadcast %3 : vector<1x128xf32> to vector<16x128xf32>
    %5 = arith.addf %2, %4 : vector<16x128xf32>
    %cst_5 = arith.constant 0.000000e+00 : f32
    %6 = vector.broadcast %cst_5 : f32 to vector<16x128xf32>
    %7 = arith.maximumf %5, %6 : vector<16x128xf32>
    %8 = arith.truncf %7 : vector<16x128xf32> to vector<16x128xbf16>
    %c0_6 = arith.constant 0 : index
    %c0_7 = arith.constant 0 : index
    %9 = vector.load %arg4[%c0_6, %c0_7] : memref<16x128xbf16, #tpu.memory_space<vmem>>, vector<16x128xbf16>
    tpu.vector_store %arg4[%c0_6, %c0_7], %8 {strides = array<i32>} : memref<16x128xbf16, #tpu.memory_space<vmem>>, vector<16x128xbf16>,
    return
  }
  func.func @transform_0(%arg0: i32) -> (i32, i32) {
    %c0_i32 = arith.constant 0 : i32
    %c0_i32_0 = arith.constant 0 : i32
    return %arg0, %c0_i32 : i32, i32
  }
  func.func @transform_1(%arg0: i32) -> (i32, i32) {
    %c0_i32 = arith.constant 0 : i32
    %c0_i32_0 = arith.constant 0 : i32
    %c0_i32_1 = arith.constant 0 : i32
    return %c0_i32, %c0_i32_0 : i32, i32
  }
  func.func @transform_2(%arg0: i32) -> (i32, i32) {
    %c0_i32 = arith.constant 0 : i32
    %c0_i32_0 = arith.constant 0 : i32
    %c0_i32_1 = arith.constant 0 : i32
    return %c0_i32, %c0_i32_0 : i32, i32
  }
  func.func @transform_3(%arg0: i32) -> (i32, i32) {
    %c0_i32 = arith.constant 0 : i32
    %c0_i32_0 = arith.constant 0 : i32
    return %arg0, %c0_i32 : i32, i32
  }
}

module attributes {stable_mosaic.version = 11 : i64} {
  func.func @_heads_reparam_declin_kernel(%arg0: memref<16x256xbf16, #tpu.memory_space<vmem>>, %arg1: memref<16x8xf32, #tpu.memory_space<vmem>>, %arg2: memref<256x128xbf16, #tpu.memory_space<vmem>>, %arg3: memref<1x128xf32, #tpu.memory_space<vmem>>, %arg4: memref<8x256xbf16, #tpu.memory_space<vmem>>, %arg5: memref<1x256xf32, #tpu.memory_space<vmem>>, %arg6: memref<1x256xf32, #tpu.memory_space<vmem>>, %arg7: memref<16x128xf32, #tpu.memory_space<vmem>>, %arg8: memref<16x8xf32, #tpu.memory_space<vmem>>, %arg9: memref<16x256xbf16, #tpu.memory_space<vmem>>) attributes {dimension_semantics = [], scalar_prefetch = 0 : i64, scratch_operands = 0 : i64, tpu.core_type = #tpu.core_type<tc>} {
    %c0 = arith.constant 0 : index
    %c0_0 = arith.constant 0 : index
    %0 = vector.load %arg0[%c0, %c0_0] : memref<16x256xbf16, #tpu.memory_space<vmem>>, vector<16x256xbf16>
    %c0_1 = arith.constant 0 : index
    %c0_2 = arith.constant 0 : index
    %1 = vector.load %arg2[%c0_1, %c0_2] : memref<256x128xbf16, #tpu.memory_space<vmem>>, vector<256x128xbf16>
    %cst = arith.constant dense<0.000000e+00> : vector<16x128xf32>
    %2 = tpu.matmul %0, %1, %cst {dimension_numbers = #tpu.dot_dimension_numbers<[1], [0], [0], [1], [0, 0, 1, 1], [], []>} : vector<16x256xbf16>, vector<256x128xbf16>, vector<16x128xf32> -> vector<16x128xf32>
    %c0_3 = arith.constant 0 : index
    %c0_4 = arith.constant 0 : index
    %3 = vector.load %arg3[%c0_3, %c0_4] : memref<1x128xf32, #tpu.memory_space<vmem>>, vector<1x128xf32>
    %4 = vector.broadcast %3 : vector<1x128xf32> to vector<16x128xf32>
    %5 = arith.addf %2, %4 : vector<16x128xf32>
    %c0_5 = arith.constant 0 : index
    %c0_6 = arith.constant 0 : index
    %6 = vector.load %arg7[%c0_5, %c0_6] : memref<16x128xf32, #tpu.memory_space<vmem>>, vector<16x128xf32>
    tpu.vector_store %arg7[%c0_5, %c0_6], %5 {strides = array<i32>} : memref<16x128xf32, #tpu.memory_space<vmem>>, vector<16x128xf32>,
    %7 = vector.extract_strided_slice %5 {offsets = [0, 0], sizes = [16, 8], strides = [1, 1]} : vector<16x128xf32> to vector<16x8xf32>
    %8 = vector.extract_strided_slice %5 {offsets = [0, 8], sizes = [16, 8], strides = [1, 1]} : vector<16x128xf32> to vector<16x8xf32>
    %9 = vector.extract_strided_slice %5 {offsets = [0, 16], sizes = [16, 1], strides = [1, 1]} : vector<16x128xf32> to vector<16x1xf32>
    %cst_7 = arith.constant 5.000000e-01 : f32
    %10 = vector.broadcast %cst_7 : f32 to vector<16x8xf32>
    %11 = arith.mulf %10, %8 : vector<16x8xf32>
    %12 = math.exp %11 : vector<16x8xf32>
    %c0_8 = arith.constant 0 : index
    %c0_9 = arith.constant 0 : index
    %13 = vector.load %arg1[%c0_8, %c0_9] : memref<16x8xf32, #tpu.memory_space<vmem>>, vector<16x8xf32>
    %14 = arith.mulf %13, %12 : vector<16x8xf32>
    %15 = arith.addf %14, %7 : vector<16x8xf32>
    %c0_10 = arith.constant 0 : index
    %c0_11 = arith.constant 0 : index
    %16 = vector.load %arg8[%c0_10, %c0_11] : memref<16x8xf32, #tpu.memory_space<vmem>>, vector<16x8xf32>
    tpu.vector_store %arg8[%c0_10, %c0_11], %15 {strides = array<i32>} : memref<16x8xf32, #tpu.memory_space<vmem>>, vector<16x8xf32>,
    %17 = arith.truncf %15 : vector<16x8xf32> to vector<16x8xbf16>
    %c0_12 = arith.constant 0 : index
    %c0_13 = arith.constant 0 : index
    %18 = vector.load %arg4[%c0_12, %c0_13] : memref<8x256xbf16, #tpu.memory_space<vmem>>, vector<8x256xbf16>
    %cst_14 = arith.constant dense<0.000000e+00> : vector<16x256xf32>
    %19 = tpu.matmul %17, %18, %cst_14 {dimension_numbers = #tpu.dot_dimension_numbers<[1], [0], [0], [1], [0, 0, 1, 1], [], []>} : vector<16x8xbf16>, vector<8x256xbf16>, vector<16x256xf32> -> vector<16x256xf32>
    %c0_15 = arith.constant 0 : index
    %c0_16 = arith.constant 0 : index
    %20 = vector.load %arg5[%c0_15, %c0_16] : memref<1x256xf32, #tpu.memory_space<vmem>>, vector<1x256xf32>
    %21 = vector.broadcast %9 : vector<16x1xf32> to vector<16x256xf32>
    %22 = vector.broadcast %20 : vector<1x256xf32> to vector<16x256xf32>
    %23 = arith.mulf %21, %22 : vector<16x256xf32>
    %24 = arith.addf %19, %23 : vector<16x256xf32>
    %c0_17 = arith.constant 0 : index
    %c0_18 = arith.constant 0 : index
    %25 = vector.load %arg6[%c0_17, %c0_18] : memref<1x256xf32, #tpu.memory_space<vmem>>, vector<1x256xf32>
    %26 = vector.broadcast %25 : vector<1x256xf32> to vector<16x256xf32>
    %27 = arith.addf %24, %26 : vector<16x256xf32>
    %28 = arith.truncf %27 : vector<16x256xf32> to vector<16x256xbf16>
    %c0_19 = arith.constant 0 : index
    %c0_20 = arith.constant 0 : index
    %29 = vector.load %arg9[%c0_19, %c0_20] : memref<16x256xbf16, #tpu.memory_space<vmem>>, vector<16x256xbf16>
    tpu.vector_store %arg9[%c0_19, %c0_20], %28 {strides = array<i32>} : memref<16x256xbf16, #tpu.memory_space<vmem>>, vector<16x256xbf16>,
    return
  }
}

module attributes {stable_mosaic.version = 11 : i64} {
  func.func @_matmul_bias_kernel(%arg0: i32, %arg1: memref<64x576xbf16, #tpu.memory_space<vmem>>, %arg2: memref<576x128xbf16, #tpu.memory_space<vmem>>, %arg3: memref<1x128xf32, #tpu.memory_space<vmem>>, %arg4: memref<64x128xbf16, #tpu.memory_space<vmem>>) attributes {dimension_semantics = [#tpu.dimension_semantics<parallel>], iteration_bounds = array<i64: 1>, scalar_prefetch = 0 : i64, scratch_operands = 0 : i64, tpu.core_type = #tpu.core_type<tc>, window_params = [{transform_indices = @transform_0, window_bounds = array<i64: 64, 576>}, {pipeline_mode = #tpu.pipeline_mode<synchronous>, transform_indices = @transform_1, window_bounds = array<i64: 576, 128>}, {pipeline_mode = #tpu.pipeline_mode<synchronous>, transform_indices = @transform_2, window_bounds = array<i64: 1, 128>}, {transform_indices = @transform_3, window_bounds = array<i64: 64, 128>}]} {
    %c0 = arith.constant 0 : index
    %c0_0 = arith.constant 0 : index
    %0 = vector.load %arg1[%c0, %c0_0] : memref<64x576xbf16, #tpu.memory_space<vmem>>, vector<64x576xbf16>
    %c0_1 = arith.constant 0 : index
    %c0_2 = arith.constant 0 : index
    %1 = vector.load %arg2[%c0_1, %c0_2] : memref<576x128xbf16, #tpu.memory_space<vmem>>, vector<576x128xbf16>
    %cst = arith.constant dense<0.000000e+00> : vector<64x128xf32>
    %2 = tpu.matmul %0, %1, %cst {dimension_numbers = #tpu.dot_dimension_numbers<[1], [0], [0], [1], [0, 0, 1, 1], [], []>} : vector<64x576xbf16>, vector<576x128xbf16>, vector<64x128xf32> -> vector<64x128xf32>
    %c0_3 = arith.constant 0 : index
    %c0_4 = arith.constant 0 : index
    %3 = vector.load %arg3[%c0_3, %c0_4] : memref<1x128xf32, #tpu.memory_space<vmem>>, vector<1x128xf32>
    %4 = vector.broadcast %3 : vector<1x128xf32> to vector<64x128xf32>
    %5 = arith.addf %2, %4 : vector<64x128xf32>
    %cst_5 = arith.constant 0.000000e+00 : f32
    %6 = vector.broadcast %cst_5 : f32 to vector<64x128xf32>
    %7 = arith.maximumf %5, %6 : vector<64x128xf32>
    %8 = arith.truncf %7 : vector<64x128xf32> to vector<64x128xbf16>
    %c0_6 = arith.constant 0 : index
    %c0_7 = arith.constant 0 : index
    %9 = vector.load %arg4[%c0_6, %c0_7] : memref<64x128xbf16, #tpu.memory_space<vmem>>, vector<64x128xbf16>
    tpu.vector_store %arg4[%c0_6, %c0_7], %8 {strides = array<i32>} : memref<64x128xbf16, #tpu.memory_space<vmem>>, vector<64x128xbf16>,
    return
  }
  func.func @transform_0(%arg0: i32) -> (i32, i32) {
    %c0_i32 = arith.constant 0 : i32
    %c0_i32_0 = arith.constant 0 : i32
    return %arg0, %c0_i32 : i32, i32
  }
  func.func @transform_1(%arg0: i32) -> (i32, i32) {
    %c0_i32 = arith.constant 0 : i32
    %c0_i32_0 = arith.constant 0 : i32
    %c0_i32_1 = arith.constant 0 : i32
    return %c0_i32, %c0_i32_0 : i32, i32
  }
  func.func @transform_2(%arg0: i32) -> (i32, i32) {
    %c0_i32 = arith.constant 0 : i32
    %c0_i32_0 = arith.constant 0 : i32
    %c0_i32_1 = arith.constant 0 : i32
    return %c0_i32, %c0_i32_0 : i32, i32
  }
  func.func @transform_3(%arg0: i32) -> (i32, i32) {
    %c0_i32 = arith.constant 0 : i32
    %c0_i32_0 = arith.constant 0 : i32
    return %arg0, %c0_i32 : i32, i32
  }
}

module attributes {stable_mosaic.version = 11 : i64} {
  func.func @_matmul_bias_kernel(%arg0: i32, %arg1: memref<176x288xbf16, #tpu.memory_space<vmem>>, %arg2: memref<288x128xbf16, #tpu.memory_space<vmem>>, %arg3: memref<1x128xf32, #tpu.memory_space<vmem>>, %arg4: memref<176x128xbf16, #tpu.memory_space<vmem>>) attributes {dimension_semantics = [#tpu.dimension_semantics<parallel>], iteration_bounds = array<i64: 1>, scalar_prefetch = 0 : i64, scratch_operands = 0 : i64, tpu.core_type = #tpu.core_type<tc>, window_params = [{transform_indices = @transform_0, window_bounds = array<i64: 176, 288>}, {pipeline_mode = #tpu.pipeline_mode<synchronous>, transform_indices = @transform_1, window_bounds = array<i64: 288, 128>}, {pipeline_mode = #tpu.pipeline_mode<synchronous>, transform_indices = @transform_2, window_bounds = array<i64: 1, 128>}, {transform_indices = @transform_3, window_bounds = array<i64: 176, 128>}]} {
    %c0 = arith.constant 0 : index
    %c0_0 = arith.constant 0 : index
    %0 = vector.load %arg1[%c0, %c0_0] : memref<176x288xbf16, #tpu.memory_space<vmem>>, vector<176x288xbf16>
    %c0_1 = arith.constant 0 : index
    %c0_2 = arith.constant 0 : index
    %1 = vector.load %arg2[%c0_1, %c0_2] : memref<288x128xbf16, #tpu.memory_space<vmem>>, vector<288x128xbf16>
    %cst = arith.constant dense<0.000000e+00> : vector<176x128xf32>
    %2 = tpu.matmul %0, %1, %cst {dimension_numbers = #tpu.dot_dimension_numbers<[1], [0], [0], [1], [0, 0, 1, 1], [], []>} : vector<176x288xbf16>, vector<288x128xbf16>, vector<176x128xf32> -> vector<176x128xf32>
    %c0_3 = arith.constant 0 : index
    %c0_4 = arith.constant 0 : index
    %3 = vector.load %arg3[%c0_3, %c0_4] : memref<1x128xf32, #tpu.memory_space<vmem>>, vector<1x128xf32>
    %4 = vector.broadcast %3 : vector<1x128xf32> to vector<176x128xf32>
    %5 = arith.addf %2, %4 : vector<176x128xf32>
    %cst_5 = arith.constant 0.000000e+00 : f32
    %6 = vector.broadcast %cst_5 : f32 to vector<176x128xf32>
    %7 = arith.maximumf %5, %6 : vector<176x128xf32>
    %8 = arith.truncf %7 : vector<176x128xf32> to vector<176x128xbf16>
    %c0_6 = arith.constant 0 : index
    %c0_7 = arith.constant 0 : index
    %9 = vector.load %arg4[%c0_6, %c0_7] : memref<176x128xbf16, #tpu.memory_space<vmem>>, vector<176x128xbf16>
    tpu.vector_store %arg4[%c0_6, %c0_7], %8 {strides = array<i32>} : memref<176x128xbf16, #tpu.memory_space<vmem>>, vector<176x128xbf16>,
    return
  }
  func.func @transform_0(%arg0: i32) -> (i32, i32) {
    %c0_i32 = arith.constant 0 : i32
    %c0_i32_0 = arith.constant 0 : i32
    return %arg0, %c0_i32 : i32, i32
  }
  func.func @transform_1(%arg0: i32) -> (i32, i32) {
    %c0_i32 = arith.constant 0 : i32
    %c0_i32_0 = arith.constant 0 : i32
    %c0_i32_1 = arith.constant 0 : i32
    return %c0_i32, %c0_i32_0 : i32, i32
  }
  func.func @transform_2(%arg0: i32) -> (i32, i32) {
    %c0_i32 = arith.constant 0 : i32
    %c0_i32_0 = arith.constant 0 : i32
    %c0_i32_1 = arith.constant 0 : i32
    return %c0_i32, %c0_i32_0 : i32, i32
  }
  func.func @transform_3(%arg0: i32) -> (i32, i32) {
    %c0_i32 = arith.constant 0 : i32
    %c0_i32_0 = arith.constant 0 : i32
    return %arg0, %c0_i32 : i32, i32
  }
}

module attributes {stable_mosaic.version = 11 : i64} {
  func.func @_matmul_bias_kernel(%arg0: i32, %arg1: memref<592x144xbf16, #tpu.memory_space<vmem>>, %arg2: memref<144x128xbf16, #tpu.memory_space<vmem>>, %arg3: memref<1x128xf32, #tpu.memory_space<vmem>>, %arg4: memref<592x128xbf16, #tpu.memory_space<vmem>>) attributes {dimension_semantics = [#tpu.dimension_semantics<parallel>], iteration_bounds = array<i64: 1>, scalar_prefetch = 0 : i64, scratch_operands = 0 : i64, tpu.core_type = #tpu.core_type<tc>, window_params = [{transform_indices = @transform_0, window_bounds = array<i64: 592, 144>}, {pipeline_mode = #tpu.pipeline_mode<synchronous>, transform_indices = @transform_1, window_bounds = array<i64: 144, 128>}, {pipeline_mode = #tpu.pipeline_mode<synchronous>, transform_indices = @transform_2, window_bounds = array<i64: 1, 128>}, {transform_indices = @transform_3, window_bounds = array<i64: 592, 128>}]} {
    %c0 = arith.constant 0 : index
    %c0_0 = arith.constant 0 : index
    %0 = vector.load %arg1[%c0, %c0_0] : memref<592x144xbf16, #tpu.memory_space<vmem>>, vector<592x144xbf16>
    %c0_1 = arith.constant 0 : index
    %c0_2 = arith.constant 0 : index
    %1 = vector.load %arg2[%c0_1, %c0_2] : memref<144x128xbf16, #tpu.memory_space<vmem>>, vector<144x128xbf16>
    %cst = arith.constant dense<0.000000e+00> : vector<592x128xf32>
    %2 = tpu.matmul %0, %1, %cst {dimension_numbers = #tpu.dot_dimension_numbers<[1], [0], [0], [1], [0, 0, 1, 1], [], []>} : vector<592x144xbf16>, vector<144x128xbf16>, vector<592x128xf32> -> vector<592x128xf32>
    %c0_3 = arith.constant 0 : index
    %c0_4 = arith.constant 0 : index
    %3 = vector.load %arg3[%c0_3, %c0_4] : memref<1x128xf32, #tpu.memory_space<vmem>>, vector<1x128xf32>
    %4 = vector.broadcast %3 : vector<1x128xf32> to vector<592x128xf32>
    %5 = arith.addf %2, %4 : vector<592x128xf32>
    %cst_5 = arith.constant 0.000000e+00 : f32
    %6 = vector.broadcast %cst_5 : f32 to vector<592x128xf32>
    %7 = arith.maximumf %5, %6 : vector<592x128xf32>
    %8 = arith.truncf %7 : vector<592x128xf32> to vector<592x128xbf16>
    %c0_6 = arith.constant 0 : index
    %c0_7 = arith.constant 0 : index
    %9 = vector.load %arg4[%c0_6, %c0_7] : memref<592x128xbf16, #tpu.memory_space<vmem>>, vector<592x128xbf16>
    tpu.vector_store %arg4[%c0_6, %c0_7], %8 {strides = array<i32>} : memref<592x128xbf16, #tpu.memory_space<vmem>>, vector<592x128xbf16>,
    return
  }
  func.func @transform_0(%arg0: i32) -> (i32, i32) {
    %c0_i32 = arith.constant 0 : i32
    %c0_i32_0 = arith.constant 0 : i32
    return %arg0, %c0_i32 : i32, i32
  }
  func.func @transform_1(%arg0: i32) -> (i32, i32) {
    %c0_i32 = arith.constant 0 : i32
    %c0_i32_0 = arith.constant 0 : i32
    %c0_i32_1 = arith.constant 0 : i32
    return %c0_i32, %c0_i32_0 : i32, i32
  }
  func.func @transform_2(%arg0: i32) -> (i32, i32) {
    %c0_i32 = arith.constant 0 : i32
    %c0_i32_0 = arith.constant 0 : i32
    %c0_i32_1 = arith.constant 0 : i32
    return %c0_i32, %c0_i32_0 : i32, i32
  }
  func.func @transform_3(%arg0: i32) -> (i32, i32) {
    %c0_i32 = arith.constant 0 : i32
    %c0_i32_0 = arith.constant 0 : i32
    return %arg0, %c0_i32 : i32, i32
  }
}

module attributes {stable_mosaic.version = 11 : i64} {
  func.func @_matmul_bias_kernel(%arg0: i32, %arg1: memref<512x32xbf16, #tpu.memory_space<vmem>>, %arg2: memref<32x128xbf16, #tpu.memory_space<vmem>>, %arg3: memref<1x128xf32, #tpu.memory_space<vmem>>, %arg4: memref<512x128xf32, #tpu.memory_space<vmem>>) attributes {dimension_semantics = [#tpu.dimension_semantics<parallel>], iteration_bounds = array<i64: 4>, scalar_prefetch = 0 : i64, scratch_operands = 0 : i64, tpu.core_type = #tpu.core_type<tc>, window_params = [{transform_indices = @transform_0, window_bounds = array<i64: 512, 32>}, {pipeline_mode = #tpu.pipeline_mode<synchronous>, transform_indices = @transform_1, window_bounds = array<i64: 32, 128>}, {pipeline_mode = #tpu.pipeline_mode<synchronous>, transform_indices = @transform_2, window_bounds = array<i64: 1, 128>}, {transform_indices = @transform_3, window_bounds = array<i64: 512, 128>}]} {
    %c0 = arith.constant 0 : index
    %c0_0 = arith.constant 0 : index
    %0 = vector.load %arg1[%c0, %c0_0] : memref<512x32xbf16, #tpu.memory_space<vmem>>, vector<512x32xbf16>
    %c0_1 = arith.constant 0 : index
    %c0_2 = arith.constant 0 : index
    %1 = vector.load %arg2[%c0_1, %c0_2] : memref<32x128xbf16, #tpu.memory_space<vmem>>, vector<32x128xbf16>
    %cst = arith.constant dense<0.000000e+00> : vector<512x128xf32>
    %2 = tpu.matmul %0, %1, %cst {dimension_numbers = #tpu.dot_dimension_numbers<[1], [0], [0], [1], [0, 0, 1, 1], [], []>} : vector<512x32xbf16>, vector<32x128xbf16>, vector<512x128xf32> -> vector<512x128xf32>
    %c0_3 = arith.constant 0 : index
    %c0_4 = arith.constant 0 : index
    %3 = vector.load %arg3[%c0_3, %c0_4] : memref<1x128xf32, #tpu.memory_space<vmem>>, vector<1x128xf32>
    %4 = vector.broadcast %3 : vector<1x128xf32> to vector<512x128xf32>
    %5 = arith.addf %2, %4 : vector<512x128xf32>
    %c0_5 = arith.constant 0 : index
    %c0_6 = arith.constant 0 : index
    %6 = vector.load %arg4[%c0_5, %c0_6] : memref<512x128xf32, #tpu.memory_space<vmem>>, vector<512x128xf32>
    tpu.vector_store %arg4[%c0_5, %c0_6], %5 {strides = array<i32>} : memref<512x128xf32, #tpu.memory_space<vmem>>, vector<512x128xf32>,
    return
  }
  func.func @transform_0(%arg0: i32) -> (i32, i32) {
    %c0_i32 = arith.constant 0 : i32
    %c0_i32_0 = arith.constant 0 : i32
    return %arg0, %c0_i32 : i32, i32
  }
  func.func @transform_1(%arg0: i32) -> (i32, i32) {
    %c0_i32 = arith.constant 0 : i32
    %c0_i32_0 = arith.constant 0 : i32
    %c0_i32_1 = arith.constant 0 : i32
    return %c0_i32, %c0_i32_0 : i32, i32
  }
  func.func @transform_2(%arg0: i32) -> (i32, i32) {
    %c0_i32 = arith.constant 0 : i32
    %c0_i32_0 = arith.constant 0 : i32
    %c0_i32_1 = arith.constant 0 : i32
    return %c0_i32, %c0_i32_0 : i32, i32
  }
  func.func @transform_3(%arg0: i32) -> (i32, i32) {
    %c0_i32 = arith.constant 0 : i32
    %c0_i32_0 = arith.constant 0 : i32
    return %arg0, %c0_i32 : i32, i32
  }
}

</mosaic_0001>

<llo_original>
// kernel: affinity_vae_forward.9
$region0: #{affinity_vae_forward.9}
  #allocation0 [shape = 'u32[]', space=smem, size = 0x4, offset = 0x4, fixed_abs, tag = 'smem constant byte address 0x4 - core index']
  #allocation1 [shape = 'u32[144,128]{1,0:T(1,128)}', space=vmem, size = 0x12000, scoped, tag = 'internal scratch']
  %s0 = inlined_call_operand.vmem [shape: bf16[512,9], index: 0, kind: input, shape index: {}]
  %s1 = inlined_call_operand.hbm [shape: bf16[9,128], index: 1, kind: input, shape index: {}]
  %s2 = inlined_call_operand.hbm [shape: f32[1,128], index: 2, kind: input, shape index: {}]
  %s3 = inlined_call_operand.vmem [shape: bf16[512,128], index: 3, kind: output, shape index: {}]
  %s4 = sld [smem:[#allocation0]]
  $region30: #{affinity_vae_forward.9} parent=0
    _
  %s6 = ssub.s32 1, %s4
  %s7 = scalar_select 0, %s6, %s4
  $region1: #{affinity_vae_forward.9} parent=0
    #allocation2 [shape = 'u8[4096]{0}', space=vmem, size = 0x1000, scoped, tag = 'input window, operand 1, single buffered']
    #allocation3 [shape = 's32[1]{0}', space=sflag, size = 0x4, scoped, tag = 'scoped memory for affinity_vae_forward.9']
    #allocation4 [shape = 'u8[512]{0}', space=vmem, size = 0x400, scoped, tag = 'input window, operand 2, single buffered']
    #allocation5 [shape = 's32[1]{0}', space=sflag, size = 0x4, scoped, tag = 'scoped memory for affinity_vae_forward.9']
    %8 = vsyncpa [#allocation3], 0
    %9 = vsyncpa [#allocation5], 0
    // Predicated region
    $region2: #{affinity_vae_forward.9} parent=1 // pred_check
      _
    $region3: #{affinity_vae_forward.9} parent=1 // pred_check_branch
      %11 = sbr.rel (0) target = $region5
    $region4: #{affinity_vae_forward.9} parent=1 // pred_region
      _
    $region5: #{affinity_vae_forward.9} parent=1 // pred_fallthru
      _
    // Predicated region
    $region6: #{affinity_vae_forward.9} parent=1 // pred_check
      _
    $region7: #{affinity_vae_forward.9} parent=1 // pred_check_branch
      %13 = sbr.rel (0) target = $region9
    $region8: #{affinity_vae_forward.9} parent=1 // pred_region
      %s15 = ssub.s32 128, 128
      %16 = vsyncadd [#allocation3], %s15
      %s17 = sshll.u32 [#allocation2], 4
      %s18 = int_to_ptr.vmem [resolvable:$true] %s17
      %23 = dma.hbm_to_vmem [thread:$0]  %s1, 128, %s18, [#allocation3], 64, 64, 4
    $region9: #{affinity_vae_forward.9} parent=1 // pred_fallthru
      _
    // Predicated region
    $region10: #{affinity_vae_forward.9} parent=1 // pred_check
      _
    $region11: #{affinity_vae_forward.9} parent=1 // pred_check_branch
      %25 = sbr.rel (0) target = $region13
    $region12: #{affinity_vae_forward.9} parent=1 // pred_region
      %s27 = ssub.s32 16, 16
      %28 = vsyncadd [#allocation5], %s27
      %s30 = sshll.u32 [#allocation4], 4
      %s31 = int_to_ptr.vmem [resolvable:$true] %s30
      %33 = dma.hbm_to_vmem [thread:$0]  %s2, 16, %s31, [#allocation5]
    $region13: #{affinity_vae_forward.9} parent=1 // pred_fallthru
      _
    // Predicated region
    $region14: #{affinity_vae_forward.9} parent=1 // pred_check
      _
    $region15: #{affinity_vae_forward.9} parent=1 // pred_check_branch
      %35 = sbr.rel (0) target = $region17
    $region16: #{affinity_vae_forward.9} parent=1 // pred_region
      %36 = dma.done [#allocation3], 128
    $region17: #{affinity_vae_forward.9} parent=1 // pred_fallthru
      _
    // Predicated region
    $region18: #{affinity_vae_forward.9} parent=1 // pred_check
      _
    $region19: #{affinity_vae_forward.9} parent=1 // pred_check_branch
      %38 = sbr.rel (0) target = $region21
    $region20: #{affinity_vae_forward.9} parent=1 // pred_region
      %39 = dma.done [#allocation5], 16
    $region21: #{affinity_vae_forward.9} parent=1 // pred_fallthru
      _
    %v41 = vld [vmem:[%s0] sm:$0xf]
    %v42 = vld [vmem:[%s0 + $0x4] sm:$0xf]
    %v43 = vld [vmem:[%s0 + $0x8] sm:$0xf]
    %v44 = vld [vmem:[%s0 + $0xc] sm:$0xf]
    %v45 = vld [vmem:[%s0 + $0x10] sm:$0xf]
    %v46 = vld [vmem:[%s0 + $0x14] sm:$0xf]
    %v47 = vld [vmem:[%s0 + $0x18] sm:$0xf]
    %v48 = vld [vmem:[%s0 + $0x1c] sm:$0xf]
    %v49 = vld [vmem:[%s0 + $0x20] sm:$0xf]
    %v50 = vld [vmem:[%s0 + $0x24] sm:$0xf]
    %v51 = vld [vmem:[%s0 + $0x28] sm:$0xf]
    %v52 = vld [vmem:[%s0 + $0x2c] sm:$0xf]
    %v53 = vld [vmem:[%s0 + $0x30] sm:$0xf]
    %v54 = vld [vmem:[%s0 + $0x34] sm:$0xf]
    %v55 = vld [vmem:[%s0 + $0x38] sm:$0xf]
    %v56 = vld [vmem:[%s0 + $0x3c] sm:$0xf]
    %v57 = vld [vmem:[%s0 + $0x40] sm:$0xf]
    %v58 = vld [vmem:[%s0 + $0x44] sm:$0xf]
    %v59 = vld [vmem:[%s0 + $0x48] sm:$0xf]
    %v60 = vld [vmem:[%s0 + $0x4c] sm:$0xf]
    %v61 = vld [vmem:[%s0 + $0x50] sm:$0xf]
    %v62 = vld [vmem:[%s0 + $0x54] sm:$0xf]
    %v63 = vld [vmem:[%s0 + $0x58] sm:$0xf]
    %v64 = vld [vmem:[%s0 + $0x5c] sm:$0xf]
    %v65 = vld [vmem:[%s0 + $0x60] sm:$0xf]
    %v66 = vld [vmem:[%s0 + $0x64] sm:$0xf]
    %v67 = vld [vmem:[%s0 + $0x68] sm:$0xf]
    %v68 = vld [vmem:[%s0 + $0x6c] sm:$0xf]
    %v69 = vld [vmem:[%s0 + $0x70] sm:$0xf]
    %v70 = vld [vmem:[%s0 + $0x74] sm:$0xf]
    %v71 = vld [vmem:[%s0 + $0x78] sm:$0xf]
    %v72 = vld [vmem:[%s0 + $0x7c] sm:$0xf]
    %v73 = vld [vmem:[%s0 + $0x80] sm:$0xf]
    %v74 = vld [vmem:[%s0 + $0x84] sm:$0xf]
    %v75 = vld [vmem:[%s0 + $0x88] sm:$0xf]
    %v76 = vld [vmem:[%s0 + $0x8c] sm:$0xf]
    %v77 = vld [vmem:[%s0 + $0x90] sm:$0xf]
    %v78 = vld [vmem:[%s0 + $0x94] sm:$0xf]
    %v79 = vld [vmem:[%s0 + $0x98] sm:$0xf]
    %v80 = vld [vmem:[%s0 + $0x9c] sm:$0xf]
    %v81 = vld [vmem:[%s0 + $0xa0] sm:$0xf]
    %v82 = vld [vmem:[%s0 + $0xa4] sm:$0xf]
    %v83 = vld [vmem:[%s0 + $0xa8] sm:$0xf]
    %v84 = vld [vmem:[%s0 + $0xac] sm:$0xf]
    %v85 = vld [vmem:[%s0 + $0xb0] sm:$0xf]
    %v86 = vld [vmem:[%s0 + $0xb4] sm:$0xf]
    %v87 = vld [vmem:[%s0 + $0xb8] sm:$0xf]
    %v88 = vld [vmem:[%s0 + $0xbc] sm:$0xf]
    %v89 = vld [vmem:[%s0 + $0xc0] sm:$0xf]
    %v90 = vld [vmem:[%s0 + $0xc4] sm:$0xf]
    %v91 = vld [vmem:[%s0 + $0xc8] sm:$0xf]
    %v92 = vld [vmem:[%s0 + $0xcc] sm:$0xf]
    %v93 = vld [vmem:[%s0 + $0xd0] sm:$0xf]
    %v94 = vld [vmem:[%s0 + $0xd4] sm:$0xf]
    %v95 = vld [vmem:[%s0 + $0xd8] sm:$0xf]
    %v96 = vld [vmem:[%s0 + $0xdc] sm:$0xf]
    %v97 = vld [vmem:[%s0 + $0xe0] sm:$0xf]
    %v98 = vld [vmem:[%s0 + $0xe4] sm:$0xf]
    %v99 = vld [vmem:[%s0 + $0xe8] sm:$0xf]
    %v100 = vld [vmem:[%s0 + $0xec] sm:$0xf]
    %v101 = vld [vmem:[%s0 + $0xf0] sm:$0xf]
    %v102 = vld [vmem:[%s0 + $0xf4] sm:$0xf]
    %v103 = vld [vmem:[%s0 + $0xf8] sm:$0xf]
    %v104 = vld [vmem:[%s0 + $0xfc] sm:$0xf]
    %v105 = vld [vmem:[#allocation2] sm:$0xf]
    %v106 = vld [vmem:[#allocation2 + $0x4] sm:$0x1]
    %v107 = vld [vmem:[#allocation4] sm:$0x1]
    %v109 = vlaneseq
    %v110 = vshrl.u32 %v109, 7
    %v111 = vsub.s32 0, %v110
    %v112 = vrot.slane %v107, %v111
    %v178 = vunpack.c.l.b16 %v41
    %v179 = vunpack.c.l.b16 %v42
    %v180 = vunpack.c.l.b16 %v43
    %v181 = vunpack.c.l.b16 %v44
    %v182 = vunpack.c.l.b16 %v45
    %v183 = vunpack.c.l.b16 %v46
    %v184 = vunpack.c.l.b16 %v47
    %v185 = vunpack.c.l.b16 %v48
    %v186 = vunpack.c.l.b16 %v49
    %v187 = vunpack.c.l.b16 %v50
    %v188 = vunpack.c.l.b16 %v51
    %v189 = vunpack.c.l.b16 %v52
    %v190 = vunpack.c.l.b16 %v53
    %v191 = vunpack.c.l.b16 %v54
    %v192 = vunpack.c.l.b16 %v55
    %v193 = vunpack.c.l.b16 %v56
    %v194 = vunpack.c.l.b16 %v57
    %v195 = vunpack.c.l.b16 %v58
    %v196 = vunpack.c.l.b16 %v59
    %v197 = vunpack.c.l.b16 %v60
    %v198 = vunpack.c.l.b16 %v61
    %v199 = vunpack.c.l.b16 %v62
    %v200 = vunpack.c.l.b16 %v63
    %v201 = vunpack.c.l.b16 %v64
    %v202 = vunpack.c.l.b16 %v65
    %v203 = vunpack.c.l.b16 %v66
    %v204 = vunpack.c.l.b16 %v67
    %v205 = vunpack.c.l.b16 %v68
    %v206 = vunpack.c.l.b16 %v69
    %v207 = vunpack.c.l.b16 %v70
    %v208 = vunpack.c.l.b16 %v71
    %v209 = vunpack.c.l.b16 %v72
    %v210 = vunpack.c.l.b16 %v73
    %v211 = vunpack.c.l.b16 %v74
    %v212 = vunpack.c.l.b16 %v75
    %v213 = vunpack.c.l.b16 %v76
    %v214 = vunpack.c.l.b16 %v77
    %v215 = vunpack.c.l.b16 %v78
    %v216 = vunpack.c.l.b16 %v79
    %v217 = vunpack.c.l.b16 %v80
    %v218 = vunpack.c.l.b16 %v81
    %v219 = vunpack.c.l.b16 %v82
    %v220 = vunpack.c.l.b16 %v83
    %v221 = vunpack.c.l.b16 %v84
    %v222 = vunpack.c.l.b16 %v85
    %v223 = vunpack.c.l.b16 %v86
    %v224 = vunpack.c.l.b16 %v87
    %v225 = vunpack.c.l.b16 %v88
    %v226 = vunpack.c.l.b16 %v89
    %v227 = vunpack.c.l.b16 %v90
    %v228 = vunpack.c.l.b16 %v91
    %v229 = vunpack.c.l.b16 %v92
    %v230 = vunpack.c.l.b16 %v93
    %v231 = vunpack.c.l.b16 %v94
    %v232 = vunpack.c.l.b16 %v95
    %v233 = vunpack.c.l.b16 %v96
    %v234 = vunpack.c.l.b16 %v97
    %v235 = vunpack.c.l.b16 %v98
    %v236 = vunpack.c.l.b16 %v99
    %v237 = vunpack.c.l.b16 %v100
    %v238 = vunpack.c.l.b16 %v101
    %v239 = vunpack.c.l.b16 %v102
    %v240 = vunpack.c.l.b16 %v103
    %v241 = vunpack.c.l.b16 %v104
    %v242 = vpack.c.b16 %v179, %v178
    %v243 = vpack.c.b16 %v181, %v180
    %v244 = vpack.c.b16 %v183, %v182
    %v245 = vpack.c.b16 %v185, %v184
    %v246 = vpack.c.b16 %v187, %v186
    %v247 = vpack.c.b16 %v189, %v188
    %v248 = vpack.c.b16 %v191, %v190
    %v249 = vpack.c.b16 %v193, %v192
    %v250 = vpack.c.b16 %v195, %v194
    %v251 = vpack.c.b16 %v197, %v196
    %v252 = vpack.c.b16 %v199, %v198
    %v253 = vpack.c.b16 %v201, %v200
    %v254 = vpack.c.b16 %v203, %v202
    %v255 = vpack.c.b16 %v205, %v204
    %v256 = vpack.c.b16 %v207, %v206
    %v257 = vpack.c.b16 %v209, %v208
    %v258 = vpack.c.b16 %v211, %v210
    %v259 = vpack.c.b16 %v213, %v212
    %v260 = vpack.c.b16 %v215, %v214
    %v261 = vpack.c.b16 %v217, %v216
    %v262 = vpack.c.b16 %v219, %v218
    %v263 = vpack.c.b16 %v221, %v220
    %v264 = vpack.c.b16 %v223, %v222
    %v265 = vpack.c.b16 %v225, %v224
    %v266 = vpack.c.b16 %v227, %v226
    %v267 = vpack.c.b16 %v229, %v228
    %v268 = vpack.c.b16 %v231, %v230
    %v269 = vpack.c.b16 %v233, %v232
    %v270 = vpack.c.b16 %v235, %v234
    %v271 = vpack.c.b16 %v237, %v236
    %v272 = vpack.c.b16 %v239, %v238
    %v273 = vpack.c.b16 %v241, %v240
    %v276 = vunpack.c.l.b16 %v105
    %v277 = vunpack.c.l.b16 %v106
    %v278 = vpack.c.b16 %v277, %v276
    %vm279 = vcmask 72704
    %v281 = vsel %vm279, %v242, 0
    %v284 = vsel %vm279, %v243, 0
    %v287 = vsel %vm279, %v244, 0
    %v290 = vsel %vm279, %v245, 0
    %v293 = vsel %vm279, %v246, 0
    %v296 = vsel %vm279, %v247, 0
    %v299 = vsel %vm279, %v248, 0
    %v302 = vsel %vm279, %v249, 0
    %v305 = vsel %vm279, %v250, 0
    %v308 = vsel %vm279, %v251, 0
    %v311 = vsel %vm279, %v252, 0
    %v314 = vsel %vm279, %v253, 0
    %v317 = vsel %vm279, %v254, 0
    %v320 = vsel %vm279, %v255, 0
    %v323 = vsel %vm279, %v256, 0
    %v326 = vsel %vm279, %v257, 0
    %v329 = vsel %vm279, %v258, 0
    %v332 = vsel %vm279, %v259, 0
    %v335 = vsel %vm279, %v260, 0
    %v338 = vsel %vm279, %v261, 0
    %v341 = vsel %vm279, %v262, 0
    %v344 = vsel %vm279, %v263, 0
    %v347 = vsel %vm279, %v264, 0
    %v350 = vsel %vm279, %v265, 0
    %v353 = vsel %vm279, %v266, 0
    %v356 = vsel %vm279, %v267, 0
    %v359 = vsel %vm279, %v268, 0
    %v362 = vsel %vm279, %v269, 0
    %v365 = vsel %vm279, %v270, 0
    %v368 = vsel %vm279, %v271, 0
    %v371 = vsel %vm279, %v272, 0
    %v374 = vsel %vm279, %v273, 0
    %vm376 = vcmask 1043456
    %vm377 = vcmask 1044480
    %v378 = vsel %vm376, 4294967295, 65535
    %v379 = vsel %vm377, %v378, 0
    %v381 = vand.u32 %v278, %v379
    %383 = vmatprep.subr.bf16.mxu0 0
    %384 = vmatpush1.bf16.msra.mxu0 %v381
    %385 = vmatprep.subr.bf16.mxu0 0
    %386 = vmatpush1.bf16.msra.mxu0 0
    %387 = vmatprep.subr.bf16.mxu0 0
    %388 = vmatpush1.bf16.msra.mxu0 0
    %389 = vmatprep.subr.bf16.mxu0 0
    %390 = vmatpush1.bf16.msra.mxu0 0
    %391 = vmatprep.subr.bf16.mxu0 0
    %392 = vmatpush1.bf16.msra.mxu0 0
    %393 = vmatprep.subr.bf16.mxu0 0
    %394 = vmatpush1.bf16.msra.mxu0 0
    %395 = vmatprep.subr.bf16.mxu0 0
    %396 = vmatpush1.bf16.msra.mxu0 0
    %397 = vmatprep.subr.bf16.mxu0 0
    %398 = vmatpush1.bf16.msra.mxu0 0
    %399 = vmatprep.subr.bf16.mxu0 0
    %400 = vmatpush1.bf16.msra.mxu0 0
    %401 = vmatprep.subr.bf16.mxu0 0
    %402 = vmatpush1.bf16.msra.mxu0 0
    %403 = vmatprep.subr.bf16.mxu0 0
    %404 = vmatpush1.bf16.msra.mxu0 0
    %405 = vmatprep.subr.bf16.mxu0 0
    %406 = vmatpush1.bf16.msra.mxu0 0
    %407 = vmatprep.subr.bf16.mxu0 0
    %408 = vmatpush1.bf16.msra.mxu0 0
    %409 = vmatprep.subr.bf16.mxu0 0
    %410 = vmatpush1.bf16.msra.mxu0 0
    %411 = vmatprep.subr.bf16.mxu0 0
    %412 = vmatpush1.bf16.msra.mxu0 0
    %413 = vmatprep.subr.bf16.mxu0 0
    %414 = vmatpush1.bf16.msra.mxu0 0
    %415 = vmatprep.mubr.bf16.mxu0 0
    %416 = vmatmul.mubr.bf16.gmra.mrb[0].mxu0 %v281
    %v417 = vpop.f32.mrb[0].mxu0
    %v418 = vadd.f32 %v112, %v417
    %v419 = vpop.f32.mrb[0].mxu0
    %v420 = vpop.f32.mrb[0].mxu0
    %v421 = vadd.f32 %v112, %v420
    %v422 = vpop.f32.mrb[0].mxu0
    %423 = vmatprep.mubr.bf16.mxu0 0
    %424 = vmatmul.mubr.bf16.gmra.mrb[0].mxu0 %v284
    %v425 = vpop.f32.mrb[0].mxu0
    %v426 = vadd.f32 %v112, %v425
    %v427 = vpop.f32.mrb[0].mxu0
    %v428 = vpop.f32.mrb[0].mxu0
    %v429 = vadd.f32 %v112, %v428
    %v430 = vpop.f32.mrb[0].mxu0
    %431 = vmatprep.mubr.bf16.mxu0 0
    %432 = vmatmul.mubr.bf16.gmra.mrb[0].mxu0 %v287
    %v433 = vpop.f32.mrb[0].mxu0
    %v434 = vadd.f32 %v112, %v433
    %v435 = vpop.f32.mrb[0].mxu0
    %v436 = vpop.f32.mrb[0].mxu0
    %v437 = vadd.f32 %v112, %v436
    %v438 = vpop.f32.mrb[0].mxu0
    %439 = vmatprep.mubr.bf16.mxu0 0
    %440 = vmatmul.mubr.bf16.gmra.mrb[0].mxu0 %v290
    %v441 = vpop.f32.mrb[0].mxu0
    %v442 = vadd.f32 %v112, %v441
    %v443 = vpop.f32.mrb[0].mxu0
    %v444 = vpop.f32.mrb[0].mxu0
    %v445 = vadd.f32 %v112, %v444
    %v446 = vpop.f32.mrb[0].mxu0
    %447 = vmatprep.mubr.bf16.mxu0 0
    %448 = vmatmul.mubr.bf16.gmra.mrb[0].mxu0 %v293
    %v449 = vpop.f32.mrb[0].mxu0
    %v450 = vadd.f32 %v112, %v449
    %v451 = vpop.f32.mrb[0].mxu0
    %v452 = vpop.f32.mrb[0].mxu0
    %v453 = vadd.f32 %v112, %v452
    %v454 = vpop.f32.mrb[0].mxu0
    %455 = vmatprep.mubr.bf16.mxu0 0
    %456 = vmatmul.mubr.bf16.gmra.mrb[0].mxu0 %v296
    %v457 = vpop.f32.mrb[0].mxu0
    %v458 = vadd.f32 %v112, %v457
    %v459 = vpop.f32.mrb[0].mxu0
    %v460 = vpop.f32.mrb[0].mxu0
    %v461 = vadd.f32 %v112, %v460
    %v462 = vpop.f32.mrb[0].mxu0
    %463 = vmatprep.mubr.bf16.mxu0 0
    %464 = vmatmul.mubr.bf16.gmra.mrb[0].mxu0 %v299
    %v465 = vpop.f32.mrb[0].mxu0
    %v466 = vadd.f32 %v112, %v465
    %v467 = vpop.f32.mrb[0].mxu0
    %v468 = vpop.f32.mrb[0].mxu0
    %v469 = vadd.f32 %v112, %v468
    %v470 = vpop.f32.mrb[0].mxu0
    %471 = vmatprep.mubr.bf16.mxu0 0
    %472 = vmatmul.mubr.bf16.gmra.mrb[0].mxu0 %v302
    %v473 = vpop.f32.mrb[0].mxu0
    %v474 = vadd.f32 %v112, %v473
    %v475 = vpop.f32.mrb[0].mxu0
    %v476 = vpop.f32.mrb[0].mxu0
    %v477 = vadd.f32 %v112, %v476
    %v478 = vpop.f32.mrb[0].mxu0
    %479 = vmatprep.mubr.bf16.mxu0 0
    %480 = vmatmul.mubr.bf16.gmra.mrb[0].mxu0 %v305
    %v481 = vpop.f32.mrb[0].mxu0
    %v482 = vadd.f32 %v112, %v481
    %v483 = vpop.f32.mrb[0].mxu0
    %v484 = vpop.f32.mrb[0].mxu0
    %v485 = vadd.f32 %v112, %v484
    %v486 = vpop.f32.mrb[0].mxu0
    %487 = vmatprep.mubr.bf16.mxu0 0
    %488 = vmatmul.mubr.bf16.gmra.mrb[0].mxu0 %v308
    %v489 = vpop.f32.mrb[0].mxu0
    %v490 = vadd.f32 %v112, %v489
    %v491 = vpop.f32.mrb[0].mxu0
    %v492 = vpop.f32.mrb[0].mxu0
    %v493 = vadd.f32 %v112, %v492
    %v494 = vpop.f32.mrb[0].mxu0
    %495 = vmatprep.mubr.bf16.mxu0 0
    %496 = vmatmul.mubr.bf16.gmra.mrb[0].mxu0 %v311
    %v497 = vpop.f32.mrb[0].mxu0
    %v498 = vadd.f32 %v112, %v497
    %v499 = vpop.f32.mrb[0].mxu0
    %v500 = vpop.f32.mrb[0].mxu0
    %v501 = vadd.f32 %v112, %v500
    %v502 = vpop.f32.mrb[0].mxu0
    %503 = vmatprep.mubr.bf16.mxu0 0
    %504 = vmatmul.mubr.bf16.gmra.mrb[0].mxu0 %v314
    %v505 = vpop.f32.mrb[0].mxu0
    %v506 = vadd.f32 %v112, %v505
    %v507 = vpop.f32.mrb[0].mxu0
    %v508 = vpop.f32.mrb[0].mxu0
    %v509 = vadd.f32 %v112, %v508
    %v510 = vpop.f32.mrb[0].mxu0
    %511 = vmatprep.mubr.bf16.mxu0 0
    %512 = vmatmul.mubr.bf16.gmra.mrb[0].mxu0 %v317
    %v513 = vpop.f32.mrb[0].mxu0
    %v514 = vadd.f32 %v112, %v513
    %v515 = vpop.f32.mrb[0].mxu0
    %v516 = vpop.f32.mrb[0].mxu0
    %v517 = vadd.f32 %v112, %v516
    %v518 = vpop.f32.mrb[0].mxu0
    %519 = vmatprep.mubr.bf16.mxu0 0
    %520 = vmatmul.mubr.bf16.gmra.mrb[0].mxu0 %v320
    %v521 = vpop.f32.mrb[0].mxu0
    %v522 = vadd.f32 %v112, %v521
    %v523 = vpop.f32.mrb[0].mxu0
    %v524 = vpop.f32.mrb[0].mxu0
    %v525 = vadd.f32 %v112, %v524
    %v526 = vpop.f32.mrb[0].mxu0
    %527 = vmatprep.mubr.bf16.mxu0 0
    %528 = vmatmul.mubr.bf16.gmra.mrb[0].mxu0 %v323
    %v529 = vpop.f32.mrb[0].mxu0
    %v530 = vadd.f32 %v112, %v529
    %v531 = vpop.f32.mrb[0].mxu0
    %v532 = vpop.f32.mrb[0].mxu0
    %v533 = vadd.f32 %v112, %v532
    %v534 = vpop.f32.mrb[0].mxu0
    %535 = vmatprep.mubr.bf16.mxu0 0
    %536 = vmatmul.mubr.bf16.gmra.mrb[0].mxu0 %v326
    %v537 = vpop.f32.mrb[0].mxu0
    %v538 = vadd.f32 %v112, %v537
    %v539 = vpop.f32.mrb[0].mxu0
    %v540 = vpop.f32.mrb[0].mxu0
    %v541 = vadd.f32 %v112, %v540
    %v542 = vpop.f32.mrb[0].mxu0
    %543 = vmatprep.mubr.bf16.mxu0 0
    %544 = vmatmul.mubr.bf16.gmra.mrb[0].mxu0 %v329
    %v545 = vpop.f32.mrb[0].mxu0
    %v546 = vadd.f32 %v112, %v545
    %v547 = vpop.f32.mrb[0].mxu0
    %v548 = vpop.f32.mrb[0].mxu0
    %v549 = vadd.f32 %v112, %v548
    %v550 = vpop.f32.mrb[0].mxu0
    %551 = vmatprep.mubr.bf16.mxu0 0
    %552 = vmatmul.mubr.bf16.gmra.mrb[0].mxu0 %v332
    %v553 = vpop.f32.mrb[0].mxu0
    %v554 = vadd.f32 %v112, %v553
    %v555 = vpop.f32.mrb[0].mxu0
    %v556 = vpop.f32.mrb[0].mxu0
    %v557 = vadd.f32 %v112, %v556
    %v558 = vpop.f32.mrb[0].mxu0
    %559 = vmatprep.mubr.bf16.mxu0 0
    %560 = vmatmul.mubr.bf16.gmra.mrb[0].mxu0 %v335
    %v561 = vpop.f32.mrb[0].mxu0
    %v562 = vadd.f32 %v112, %v561
    %v563 = vpop.f32.mrb[0].mxu0
    %v564 = vpop.f32.mrb[0].mxu0
    %v565 = vadd.f32 %v112, %v564
    %v566 = vpop.f32.mrb[0].mxu0
    %567 = vmatprep.mubr.bf16.mxu0 0
    %568 = vmatmul.mubr.bf16.gmra.mrb[0].mxu0 %v338
    %v569 = vpop.f32.mrb[0].mxu0
    %v570 = vadd.f32 %v112, %v569
    %v571 = vpop.f32.mrb[0].mxu0
    %v572 = vpop.f32.mrb[0].mxu0
    %v573 = vadd.f32 %v112, %v572
    %v574 = vpop.f32.mrb[0].mxu0
    %575 = vmatprep.mubr.bf16.mxu0 0
    %576 = vmatmul.mubr.bf16.gmra.mrb[0].mxu0 %v341
    %v577 = vpop.f32.mrb[0].mxu0
    %v578 = vadd.f32 %v112, %v577
    %v579 = vpop.f32.mrb[0].mxu0
    %v580 = vpop.f32.mrb[0].mxu0
    %v581 = vadd.f32 %v112, %v580
    %v582 = vpop.f32.mrb[0].mxu0
    %583 = vmatprep.mubr.bf16.mxu0 0
    %584 = vmatmul.mubr.bf16.gmra.mrb[0].mxu0 %v344
    %v585 = vpop.f32.mrb[0].mxu0
    %v586 = vadd.f32 %v112, %v585
    %v587 = vpop.f32.mrb[0].mxu0
    %v588 = vpop.f32.mrb[0].mxu0
    %v589 = vadd.f32 %v112, %v588
    %v590 = vpop.f32.mrb[0].mxu0
    %591 = vmatprep.mubr.bf16.mxu0 0
    %592 = vmatmul.mubr.bf16.gmra.mrb[0].mxu0 %v347
    %v593 = vpop.f32.mrb[0].mxu0
    %v594 = vadd.f32 %v112, %v593
    %v595 = vpop.f32.mrb[0].mxu0
    %v596 = vpop.f32.mrb[0].mxu0
    %v597 = vadd.f32 %v112, %v596
    %v598 = vpop.f32.mrb[0].mxu0
    %599 = vmatprep.mubr.bf16.mxu0 0
    %600 = vmatmul.mubr.bf16.gmra.mrb[0].mxu0 %v350
    %v601 = vpop.f32.mrb[0].mxu0
    %v602 = vadd.f32 %v112, %v601
    %v603 = vpop.f32.mrb[0].mxu0
    %v604 = vpop.f32.mrb[0].mxu0
    %v605 = vadd.f32 %v112, %v604
    %v606 = vpop.f32.mrb[0].mxu0
    %607 = vmatprep.mubr.bf16.mxu0 0
    %608 = vmatmul.mubr.bf16.gmra.mrb[0].mxu0 %v353
    %v609 = vpop.f32.mrb[0].mxu0
    %v610 = vadd.f32 %v112, %v609
    %v611 = vpop.f32.mrb[0].mxu0
    %v612 = vpop.f32.mrb[0].mxu0
    %v613 = vadd.f32 %v112, %v612
    %v614 = vpop.f32.mrb[0].mxu0
    %615 = vmatprep.mubr.bf16.mxu0 0
    %616 = vmatmul.mubr.bf16.gmra.mrb[0].mxu0 %v356
    %v617 = vpop.f32.mrb[0].mxu0
    %v618 = vadd.f32 %v112, %v617
    %v619 = vpop.f32.mrb[0].mxu0
    %v620 = vpop.f32.mrb[0].mxu0
    %v621 = vadd.f32 %v112, %v620
    %v622 = vpop.f32.mrb[0].mxu0
    %623 = vmatprep.mubr.bf16.mxu0 0
    %624 = vmatmul.mubr.bf16.gmra.mrb[0].mxu0 %v359
    %v625 = vpop.f32.mrb[0].mxu0
    %v626 = vadd.f32 %v112, %v625
    %v627 = vpop.f32.mrb[0].mxu0
    %v628 = vpop.f32.mrb[0].mxu0
    %v629 = vadd.f32 %v112, %v628
    %v630 = vpop.f32.mrb[0].mxu0
    %631 = vmatprep.mubr.bf16.mxu0 0
    %632 = vmatmul.mubr.bf16.gmra.mrb[0].mxu0 %v362
    %v633 = vpop.f32.mrb[0].mxu0
    %v634 = vadd.f32 %v112, %v633
    %v635 = vpop.f32.mrb[0].mxu0
    %v636 = vpop.f32.mrb[0].mxu0
    %v637 = vadd.f32 %v112, %v636
    %v638 = vpop.f32.mrb[0].mxu0
    %639 = vmatprep.mubr.bf16.mxu0 0
    %640 = vmatmul.mubr.bf16.gmra.mrb[0].mxu0 %v365
    %v641 = vpop.f32.mrb[0].mxu0
    %v642 = vadd.f32 %v112, %v641
    %v643 = vpop.f32.mrb[0].mxu0
    %v644 = vpop.f32.mrb[0].mxu0
    %v645 = vadd.f32 %v112, %v644
    %v646 = vpop.f32.mrb[0].mxu0
    %647 = vmatprep.mubr.bf16.mxu0 0
    %648 = vmatmul.mubr.bf16.gmra.mrb[0].mxu0 %v368
    %v649 = vpop.f32.mrb[0].mxu0
    %v650 = vadd.f32 %v112, %v649
    %v651 = vpop.f32.mrb[0].mxu0
    %v652 = vpop.f32.mrb[0].mxu0
    %v653 = vadd.f32 %v112, %v652
    %v654 = vpop.f32.mrb[0].mxu0
    %655 = vmatprep.mubr.bf16.mxu0 0
    %656 = vmatmul.mubr.bf16.gmra.mrb[0].mxu0 %v371
    %v657 = vpop.f32.mrb[0].mxu0
    %v658 = vadd.f32 %v112, %v657
    %v659 = vpop.f32.mrb[0].mxu0
    %v660 = vpop.f32.mrb[0].mxu0
    %v661 = vadd.f32 %v112, %v660
    %v662 = vpop.f32.mrb[0].mxu0
    %663 = vmatprep.mubr.bf16.mxu0 0
    %664 = vmatmul.mubr.bf16.gmra.mrb[0].mxu0 %v374
    %v665 = vpop.f32.mrb[0].mxu0
    %v666 = vadd.f32 %v112, %v665
    %v667 = vpop.f32.mrb[0].mxu0
    %v668 = vpop.f32.mrb[0].mxu0
    %v669 = vadd.f32 %v112, %v668
    %v670 = vpop.f32.mrb[0].mxu0
    %671 = vdwg.mxu0
    %v672 = vmax.f32 %v418, 0.0
    %v673 = vmax.f32 %v421, 0.0
    %v674 = vmax.f32 %v426, 0.0
    %v675 = vmax.f32 %v429, 0.0
    %v676 = vmax.f32 %v434, 0.0
    %v677 = vmax.f32 %v437, 0.0
    %v678 = vmax.f32 %v442, 0.0
    %v679 = vmax.f32 %v445, 0.0
    %v680 = vmax.f32 %v450, 0.0
    %v681 = vmax.f32 %v453, 0.0
    %v682 = vmax.f32 %v458, 0.0
    %v683 = vmax.f32 %v461, 0.0
    %v684 = vmax.f32 %v466, 0.0
    %v685 = vmax.f32 %v469, 0.0
    %v686 = vmax.f32 %v474, 0.0
    %v687 = vmax.f32 %v477, 0.0
    %v688 = vmax.f32 %v482, 0.0
    %v689 = vmax.f32 %v485, 0.0
    %v690 = vmax.f32 %v490, 0.0
    %v691 = vmax.f32 %v493, 0.0
    %v692 = vmax.f32 %v498, 0.0
    %v693 = vmax.f32 %v501, 0.0
    %v694 = vmax.f32 %v506, 0.0
    %v695 = vmax.f32 %v509, 0.0
    %v696 = vmax.f32 %v514, 0.0
    %v697 = vmax.f32 %v517, 0.0
    %v698 = vmax.f32 %v522, 0.0
    %v699 = vmax.f32 %v525, 0.0
    %v700 = vmax.f32 %v530, 0.0
    %v701 = vmax.f32 %v533, 0.0
    %v702 = vmax.f32 %v538, 0.0
    %v703 = vmax.f32 %v541, 0.0
    %v704 = vmax.f32 %v546, 0.0
    %v705 = vmax.f32 %v549, 0.0
    %v706 = vmax.f32 %v554, 0.0
    %v707 = vmax.f32 %v557, 0.0
    %v708 = vmax.f32 %v562, 0.0
    %v709 = vmax.f32 %v565, 0.0
    %v710 = vmax.f32 %v570, 0.0
    %v711 = vmax.f32 %v573, 0.0
    %v712 = vmax.f32 %v578, 0.0
    %v713 = vmax.f32 %v581, 0.0
    %v714 = vmax.f32 %v586, 0.0
    %v715 = vmax.f32 %v589, 0.0
    %v716 = vmax.f32 %v594, 0.0
    %v717 = vmax.f32 %v597, 0.0
    %v718 = vmax.f32 %v602, 0.0
    %v719 = vmax.f32 %v605, 0.0
    %v720 = vmax.f32 %v610, 0.0
    %v721 = vmax.f32 %v613, 0.0
    %v722 = vmax.f32 %v618, 0.0
    %v723 = vmax.f32 %v621, 0.0
    %v724 = vmax.f32 %v626, 0.0
    %v725 = vmax.f32 %v629, 0.0
    %v726 = vmax.f32 %v634, 0.0
    %v727 = vmax.f32 %v637, 0.0
    %v728 = vmax.f32 %v642, 0.0
    %v729 = vmax.f32 %v645, 0.0
    %v730 = vmax.f32 %v650, 0.0
    %v731 = vmax.f32 %v653, 0.0
    %v732 = vmax.f32 %v658, 0.0
    %v733 = vmax.f32 %v661, 0.0
    %v734 = vmax.f32 %v666, 0.0
    %v735 = vmax.f32 %v669, 0.0
    %v736 = vpack.c.bf16 %v673, %v672
    %v737 = vpack.c.bf16 %v675, %v674
    %v738 = vpack.c.bf16 %v677, %v676
    %v739 = vpack.c.bf16 %v679, %v678
    %v740 = vpack.c.bf16 %v681, %v680
    %v741 = vpack.c.bf16 %v683, %v682
    %v742 = vpack.c.bf16 %v685, %v684
    %v743 = vpack.c.bf16 %v687, %v686
    %v744 = vpack.c.bf16 %v689, %v688
    %v745 = vpack.c.bf16 %v691, %v690
    %v746 = vpack.c.bf16 %v693, %v692
    %v747 = vpack.c.bf16 %v695, %v694
    %v748 = vpack.c.bf16 %v697, %v696
    %v749 = vpack.c.bf16 %v699, %v698
    %v750 = vpack.c.bf16 %v701, %v700
    %v751 = vpack.c.bf16 %v703, %v702
    %v752 = vpack.c.bf16 %v705, %v704
    %v753 = vpack.c.bf16 %v707, %v706
    %v754 = vpack.c.bf16 %v709, %v708
    %v755 = vpack.c.bf16 %v711, %v710
    %v756 = vpack.c.bf16 %v713, %v712
    %v757 = vpack.c.bf16 %v715, %v714
    %v758 = vpack.c.bf16 %v717, %v716
    %v759 = vpack.c.bf16 %v719, %v718
    %v760 = vpack.c.bf16 %v721, %v720
    %v761 = vpack.c.bf16 %v723, %v722
    %v762 = vpack.c.bf16 %v725, %v724
    %v763 = vpack.c.bf16 %v727, %v726
    %v764 = vpack.c.bf16 %v729, %v728
    %v765 = vpack.c.bf16 %v731, %v730
    %v766 = vpack.c.bf16 %v733, %v732
    %v767 = vpack.c.bf16 %v735, %v734
    %v800 = vunpack.c.l.b16 %v736
    %v801 = vunpack.c.h.b16 %v736
    %v802 = vunpack.c.l.b16 %v737
    %v803 = vunpack.c.h.b16 %v737
    %v804 = vunpack.c.l.b16 %v738
    %v805 = vunpack.c.h.b16 %v738
    %v806 = vunpack.c.l.b16 %v739
    %v807 = vunpack.c.h.b16 %v739
    %v808 = vunpack.c.l.b16 %v740
    %v809 = vunpack.c.h.b16 %v740
    %v810 = vunpack.c.l.b16 %v741
    %v811 = vunpack.c.h.b16 %v741
    %v812 = vunpack.c.l.b16 %v742
    %v813 = vunpack.c.h.b16 %v742
    %v814 = vunpack.c.l.b16 %v743
    %v815 = vunpack.c.h.b16 %v743
    %v816 = vunpack.c.l.b16 %v744
    %v817 = vunpack.c.h.b16 %v744
    %v818 = vunpack.c.l.b16 %v745
    %v819 = vunpack.c.h.b16 %v745
    %v820 = vunpack.c.l.b16 %v746
    %v821 = vunpack.c.h.b16 %v746
    %v822 = vunpack.c.l.b16 %v747
    %v823 = vunpack.c.h.b16 %v747
    %v824 = vunpack.c.l.b16 %v748
    %v825 = vunpack.c.h.b16 %v748
    %v826 = vunpack.c.l.b16 %v749
    %v827 = vunpack.c.h.b16 %v749
    %v828 = vunpack.c.l.b16 %v750
    %v829 = vunpack.c.h.b16 %v750
    %v830 = vunpack.c.l.b16 %v751
    %v831 = vunpack.c.h.b16 %v751
    %v832 = vunpack.c.l.b16 %v752
    %v833 = vunpack.c.h.b16 %v752
    %v834 = vunpack.c.l.b16 %v753
    %v835 = vunpack.c.h.b16 %v753
    %v836 = vunpack.c.l.b16 %v754
    %v837 = vunpack.c.h.b16 %v754
    %v838 = vunpack.c.l.b16 %v755
    %v839 = vunpack.c.h.b16 %v755
    %v840 = vunpack.c.l.b16 %v756
    %v841 = vunpack.c.h.b16 %v756
    %v842 = vunpack.c.l.b16 %v757
    %v843 = vunpack.c.h.b16 %v757
    %v844 = vunpack.c.l.b16 %v758
    %v845 = vunpack.c.h.b16 %v758
    %v846 = vunpack.c.l.b16 %v759
    %v847 = vunpack.c.h.b16 %v759
    %v848 = vunpack.c.l.b16 %v760
    %v849 = vunpack.c.h.b16 %v760
    %v850 = vunpack.c.l.b16 %v761
    %v851 = vunpack.c.h.b16 %v761
    %v852 = vunpack.c.l.b16 %v762
    %v853 = vunpack.c.h.b16 %v762
    %v854 = vunpack.c.l.b16 %v763
    %v855 = vunpack.c.h.b16 %v763
    %v856 = vunpack.c.l.b16 %v764
    %v857 = vunpack.c.h.b16 %v764
    %v858 = vunpack.c.l.b16 %v765
    %v859 = vunpack.c.h.b16 %v765
    %v860 = vunpack.c.l.b16 %v766
    %v861 = vunpack.c.h.b16 %v766
    %v862 = vunpack.c.l.b16 %v767
    %v863 = vunpack.c.h.b16 %v767
    %v864 = vpack.c.b16 %v800, %v800
    %v865 = vpack.c.b16 %v801, %v801
    %v866 = vpack.c.b16 %v802, %v802
    %v867 = vpack.c.b16 %v803, %v803
    %v868 = vpack.c.b16 %v804, %v804
    %v869 = vpack.c.b16 %v805, %v805
    %v870 = vpack.c.b16 %v806, %v806
    %v871 = vpack.c.b16 %v807, %v807
    %v872 = vpack.c.b16 %v808, %v808
    %v873 = vpack.c.b16 %v809, %v809
    %v874 = vpack.c.b16 %v810, %v810
    %v875 = vpack.c.b16 %v811, %v811
    %v876 = vpack.c.b16 %v812, %v812
    %v877 = vpack.c.b16 %v813, %v813
    %v878 = vpack.c.b16 %v814, %v814
    %v879 = vpack.c.b16 %v815, %v815
    %v880 = vpack.c.b16 %v816, %v816
    %v881 = vpack.c.b16 %v817, %v817
    %v882 = vpack.c.b16 %v818, %v818
    %v883 = vpack.c.b16 %v819, %v819
    %v884 = vpack.c.b16 %v820, %v820
    %v885 = vpack.c.b16 %v821, %v821
    %v886 = vpack.c.b16 %v822, %v822
    %v887 = vpack.c.b16 %v823, %v823
    %v888 = vpack.c.b16 %v824, %v824
    %v889 = vpack.c.b16 %v825, %v825
    %v890 = vpack.c.b16 %v826, %v826
    %v891 = vpack.c.b16 %v827, %v827
    %v892 = vpack.c.b16 %v828, %v828
    %v893 = vpack.c.b16 %v829, %v829
    %v894 = vpack.c.b16 %v830, %v830
    %v895 = vpack.c.b16 %v831, %v831
    %v896 = vpack.c.b16 %v832, %v832
    %v897 = vpack.c.b16 %v833, %v833
    %v898 = vpack.c.b16 %v834, %v834
    %v899 = vpack.c.b16 %v835, %v835
    %v900 = vpack.c.b16 %v836, %v836
    %v901 = vpack.c.b16 %v837, %v837
    %v902 = vpack.c.b16 %v838, %v838
    %v903 = vpack.c.b16 %v839, %v839
    %v904 = vpack.c.b16 %v840, %v840
    %v905 = vpack.c.b16 %v841, %v841
    %v906 = vpack.c.b16 %v842, %v842
    %v907 = vpack.c.b16 %v843, %v843
    %v908 = vpack.c.b16 %v844, %v844
    %v909 = vpack.c.b16 %v845, %v845
    %v910 = vpack.c.b16 %v846, %v846
    %v911 = vpack.c.b16 %v847, %v847
    %v912 = vpack.c.b16 %v848, %v848
    %v913 = vpack.c.b16 %v849, %v849
    %v914 = vpack.c.b16 %v850, %v850
    %v915 = vpack.c.b16 %v851, %v851
    %v916 = vpack.c.b16 %v852, %v852
    %v917 = vpack.c.b16 %v853, %v853
    %v918 = vpack.c.b16 %v854, %v854
    %v919 = vpack.c.b16 %v855, %v855
    %v920 = vpack.c.b16 %v856, %v856
    %v921 = vpack.c.b16 %v857, %v857
    %v922 = vpack.c.b16 %v858, %v858
    %v923 = vpack.c.b16 %v859, %v859
    %v924 = vpack.c.b16 %v860, %v860
    %v925 = vpack.c.b16 %v861, %v861
    %v926 = vpack.c.b16 %v862, %v862
    %v927 = vpack.c.b16 %v863, %v863
    %992 = vst [vmem:[%s3] sm:$0xf] %v864
    %993 = vst [vmem:[%s3 + $0x4] sm:$0xf] %v865
    %994 = vst [vmem:[%s3 + $0x8] sm:$0xf] %v866
    %995 = vst [vmem:[%s3 + $0xc] sm:$0xf] %v867
    %996 = vst [vmem:[%s3 + $0x10] sm:$0xf] %v868
    %997 = vst [vmem:[%s3 + $0x14] sm:$0xf] %v869
    %998 = vst [vmem:[%s3 + $0x18] sm:$0xf] %v870
    %999 = vst [vmem:[%s3 + $0x1c] sm:$0xf] %v871
    %1000 = vst [vmem:[%s3 + $0x20] sm:$0xf] %v872
    %1001 = vst [vmem:[%s3 + $0x24] sm:$0xf] %v873
    %1002 = vst [vmem:[%s3 + $0x28] sm:$0xf] %v874
    %1003 = vst [vmem:[%s3 + $0x2c] sm:$0xf] %v875
    %1004 = vst [vmem:[%s3 + $0x30] sm:$0xf] %v876
    %1005 = vst [vmem:[%s3 + $0x34] sm:$0xf] %v877
    %1006 = vst [vmem:[%s3 + $0x38] sm:$0xf] %v878
    %1007 = vst [vmem:[%s3 + $0x3c] sm:$0xf] %v879
    %1008 = vst [vmem:[%s3 + $0x40] sm:$0xf] %v880
    %1009 = vst [vmem:[%s3 + $0x44] sm:$0xf] %v881
    %1010 = vst [vmem:[%s3 + $0x48] sm:$0xf] %v882
    %1011 = vst [vmem:[%s3 + $0x4c] sm:$0xf] %v883
    %1012 = vst [vmem:[%s3 + $0x50] sm:$0xf] %v884
    %1013 = vst [vmem:[%s3 + $0x54] sm:$0xf] %v885
    %1014 = vst [vmem:[%s3 + $0x58] sm:$0xf] %v886
    %1015 = vst [vmem:[%s3 + $0x5c] sm:$0xf] %v887
    %1016 = vst [vmem:[%s3 + $0x60] sm:$0xf] %v888
    %1017 = vst [vmem:[%s3 + $0x64] sm:$0xf] %v889
    %1018 = vst [vmem:[%s3 + $0x68] sm:$0xf] %v890
    %1019 = vst [vmem:[%s3 + $0x6c] sm:$0xf] %v891
    %1020 = vst [vmem:[%s3 + $0x70] sm:$0xf] %v892
    %1021 = vst [vmem:[%s3 + $0x74] sm:$0xf] %v893
    %1022 = vst [vmem:[%s3 + $0x78] sm:$0xf] %v894
    %1023 = vst [vmem:[%s3 + $0x7c] sm:$0xf] %v895
    %1024 = vst [vmem:[%s3 + $0x80] sm:$0xf] %v896
    %1025 = vst [vmem:[%s3 + $0x84] sm:$0xf] %v897
    %1026 = vst [vmem:[%s3 + $0x88] sm:$0xf] %v898
    %1027 = vst [vmem:[%s3 + $0x8c] sm:$0xf] %v899
    %1028 = vst [vmem:[%s3 + $0x90] sm:$0xf] %v900
    %1029 = vst [vmem:[%s3 + $0x94] sm:$0xf] %v901
    %1030 = vst [vmem:[%s3 + $0x98] sm:$0xf] %v902
    %1031 = vst [vmem:[%s3 + $0x9c] sm:$0xf] %v903
    %1032 = vst [vmem:[%s3 + $0xa0] sm:$0xf] %v904
    %1033 = vst [vmem:[%s3 + $0xa4] sm:$0xf] %v905
    %1034 = vst [vmem:[%s3 + $0xa8] sm:$0xf] %v906
    %1035 = vst [vmem:[%s3 + $0xac] sm:$0xf] %v907
    %1036 = vst [vmem:[%s3 + $0xb0] sm:$0xf] %v908
    %1037 = vst [vmem:[%s3 + $0xb4] sm:$0xf] %v909
    %1038 = vst [vmem:[%s3 + $0xb8] sm:$0xf] %v910
    %1039 = vst [vmem:[%s3 + $0xbc] sm:$0xf] %v911
    %1040 = vst [vmem:[%s3 + $0xc0] sm:$0xf] %v912
    %1041 = vst [vmem:[%s3 + $0xc4] sm:$0xf] %v913
    %1042 = vst [vmem:[%s3 + $0xc8] sm:$0xf] %v914
    %1043 = vst [vmem:[%s3 + $0xcc] sm:$0xf] %v915
    %1044 = vst [vmem:[%s3 + $0xd0] sm:$0xf] %v916
    %1045 = vst [vmem:[%s3 + $0xd4] sm:$0xf] %v917
    %1046 = vst [vmem:[%s3 + $0xd8] sm:$0xf] %v918
    %1047 = vst [vmem:[%s3 + $0xdc] sm:$0xf] %v919
    %1048 = vst [vmem:[%s3 + $0xe0] sm:$0xf] %v920
    %1049 = vst [vmem:[%s3 + $0xe4] sm:$0xf] %v921
    %1050 = vst [vmem:[%s3 + $0xe8] sm:$0xf] %v922
    %1051 = vst [vmem:[%s3 + $0xec] sm:$0xf] %v923
    %1052 = vst [vmem:[%s3 + $0xf0] sm:$0xf] %v924
    %1053 = vst [vmem:[%s3 + $0xf4] sm:$0xf] %v925
    %1054 = vst [vmem:[%s3 + $0xf8] sm:$0xf] %v926
    %1055 = vst [vmem:[%s3 + $0xfc] sm:$0xf] %v927
    // Predicated region
    $region22: #{affinity_vae_forward.9} parent=1 // pred_check
      _
    $region23: #{affinity_vae_forward.9} parent=1 // pred_check_branch
      %1057 = sbr.rel (0) target = $region25
    $region24: #{affinity_vae_forward.9} parent=1 // pred_region
      _
    $region25: #{affinity_vae_forward.9} parent=1 // pred_fallthru
      _
    // Predicated region
    $region26: #{affinity_vae_forward.9} parent=1 // pred_check
      _
    $region27: #{affinity_vae_forward.9} parent=1 // pred_check_branch
      %1059 = sbr.rel (0) target = $region29
    $region28: #{affinity_vae_forward.9} parent=1 // pred_region
      _
    $region29: #{affinity_vae_forward.9} parent=1 // pred_fallthru
      _
    %1060 = vsyncpa [#allocation3], 1
    %1061 = vsyncpa [#allocation5], 1

// kernel: affinity_vae_forward.10
$region0: #{affinity_vae_forward.10}
  #allocation0 [shape = 'u32[]', space=smem, size = 0x4, offset = 0x4, fixed_abs, tag = 'smem constant byte address 0x4 - core index']
  #allocation1 [shape = 'u32[144,128]{1,0:T(1,128)}', space=vmem, size = 0x12000, scoped, tag = 'internal scratch']
  %s0 = inlined_call_operand.vmem [shape: bf16[128,72], index: 0, kind: input, shape index: {}]
  %s1 = inlined_call_operand.vmem [shape: bf16[72,128], index: 1, kind: input, shape index: {}]
  %s2 = inlined_call_operand.vmem [shape: f32[1,128], index: 2, kind: input, shape index: {}]
  %s3 = inlined_call_operand.vmem [shape: bf16[128,128], index: 3, kind: output, shape index: {}]
  %s4 = sld [smem:[#allocation0]]
  $region22: #{affinity_vae_forward.10} parent=0
    _
  %s6 = ssub.s32 1, %s4
  %s7 = scalar_select 0, %s6, %s4
  // Predicated region
  $region2: #{affinity_vae_forward.10} parent=0 // pred_check
    _
  $region3: #{affinity_vae_forward.10} parent=0 // pred_check_branch
    %9 = sbr.rel (0) target = $region5
  $region4: #{affinity_vae_forward.10} parent=0 // pred_region
    _
  $region5: #{affinity_vae_forward.10} parent=0 // pred_fallthru
    _
  // Predicated region
  $region6: #{affinity_vae_forward.10} parent=0 // pred_check
    _
  $region7: #{affinity_vae_forward.10} parent=0 // pred_check_branch
    %11 = sbr.rel (0) target = $region9
  $region8: #{affinity_vae_forward.10} parent=0 // pred_region
    _
  $region9: #{affinity_vae_forward.10} parent=0 // pred_fallthru
    _
  // Predicated region
  $region10: #{affinity_vae_forward.10} parent=0 // pred_check
    _
  $region11: #{affinity_vae_forward.10} parent=0 // pred_check_branch
    %13 = sbr.rel (0) target = $region13
  $region12: #{affinity_vae_forward.10} parent=0 // pred_region
    _
  $region13: #{affinity_vae_forward.10} parent=0 // pred_fallthru
    _
  %v15 = vld [vmem:[%s0] sm:$0xf]
  %v16 = vld [vmem:[%s0 + $0x4] sm:$0xf]
  %v17 = vld [vmem:[%s0 + $0x8] sm:$0xf]
  %v18 = vld [vmem:[%s0 + $0xc] sm:$0xf]
  %v19 = vld [vmem:[%s0 + $0x10] sm:$0xf]
  %v20 = vld [vmem:[%s0 + $0x14] sm:$0xf]
  %v21 = vld [vmem:[%s0 + $0x18] sm:$0xf]
  %v22 = vld [vmem:[%s0 + $0x1c] sm:$0xf]
  %v23 = vld [vmem:[%s0 + $0x20] sm:$0xf]
  %v24 = vld [vmem:[%s0 + $0x24] sm:$0xf]
  %v25 = vld [vmem:[%s0 + $0x28] sm:$0xf]
  %v26 = vld [vmem:[%s0 + $0x2c] sm:$0xf]
  %v27 = vld [vmem:[%s0 + $0x30] sm:$0xf]
  %v28 = vld [vmem:[%s0 + $0x34] sm:$0xf]
  %v29 = vld [vmem:[%s0 + $0x38] sm:$0xf]
  %v30 = vld [vmem:[%s0 + $0x3c] sm:$0xf]
  %v31 = vld [vmem:[%s1] sm:$0xf]
  %v32 = vld [vmem:[%s1 + $0x4] sm:$0xf]
  %v33 = vld [vmem:[%s1 + $0x8] sm:$0xf]
  %v34 = vld [vmem:[%s1 + $0xc] sm:$0xf]
  %v35 = vld [vmem:[%s1 + $0x10] sm:$0xf]
  %v36 = vld [vmem:[%s1 + $0x14] sm:$0xf]
  %v37 = vld [vmem:[%s1 + $0x18] sm:$0xf]
  %v38 = vld [vmem:[%s1 + $0x1c] sm:$0xf]
  %v39 = vld [vmem:[%s1 + $0x20] sm:$0xf]
  %v40 = vld [vmem:[%s2] sm:$0x1]
  %v42 = vlaneseq
  %v43 = vshrl.u32 %v42, 7
  %v44 = vsub.s32 0, %v43
  %v45 = vrot.slane %v40, %v44
  %v63 = vunpack.c.l.b16 %v15
  %v64 = vunpack.c.l.b16 %v16
  %v65 = vunpack.c.l.b16 %v17
  %v66 = vunpack.c.l.b16 %v18
  %v67 = vunpack.c.l.b16 %v19
  %v68 = vunpack.c.l.b16 %v20
  %v69 = vunpack.c.l.b16 %v21
  %v70 = vunpack.c.l.b16 %v22
  %v71 = vunpack.c.l.b16 %v23
  %v72 = vunpack.c.l.b16 %v24
  %v73 = vunpack.c.l.b16 %v25
  %v74 = vunpack.c.l.b16 %v26
  %v75 = vunpack.c.l.b16 %v27
  %v76 = vunpack.c.l.b16 %v28
  %v77 = vunpack.c.l.b16 %v29
  %v78 = vunpack.c.l.b16 %v30
  %v79 = vpack.c.b16 %v64, %v63
  %v80 = vpack.c.b16 %v66, %v65
  %v81 = vpack.c.b16 %v68, %v67
  %v82 = vpack.c.b16 %v70, %v69
  %v83 = vpack.c.b16 %v72, %v71
  %v84 = vpack.c.b16 %v74, %v73
  %v85 = vpack.c.b16 %v76, %v75
  %v86 = vpack.c.b16 %v78, %v77
  %v96 = vunpack.c.l.b16 %v31
  %v97 = vunpack.c.l.b16 %v32
  %v98 = vunpack.c.l.b16 %v33
  %v99 = vunpack.c.l.b16 %v34
  %v100 = vunpack.c.l.b16 %v35
  %v101 = vunpack.c.l.b16 %v36
  %v102 = vunpack.c.l.b16 %v37
  %v103 = vunpack.c.l.b16 %v38
  %v104 = vunpack.c.l.b16 %v39
  %v105 = vpack.c.b16 %v97, %v96
  %v106 = vpack.c.b16 %v99, %v98
  %v107 = vpack.c.b16 %v101, %v100
  %v108 = vpack.c.b16 %v103, %v102
  %v109 = vpack.c.b16 %v104, %v104
  %vm114 = vcmask 588800
  %v116 = vsel %vm114, %v79, 0
  %v119 = vsel %vm114, %v80, 0
  %v122 = vsel %vm114, %v81, 0
  %v125 = vsel %vm114, %v82, 0
  %v128 = vsel %vm114, %v83, 0
  %v131 = vsel %vm114, %v84, 0
  %v134 = vsel %vm114, %v85, 0
  %v137 = vsel %vm114, %v86, 0
  %vm139 = vcmask 1043456
  %v141 = vsel %vm139, %v109, 0
  %143 = vmatprep.subr.bf16.mxu0 0
  %144 = vmatpush1.bf16.msra.mxu0 %v105
  %145 = vmatprep.subr.bf16.mxu0 0
  %146 = vmatpush1.bf16.msra.mxu0 %v106
  %147 = vmatprep.subr.bf16.mxu0 0
  %148 = vmatpush1.bf16.msra.mxu0 %v107
  %149 = vmatprep.subr.bf16.mxu0 0
  %150 = vmatpush1.bf16.msra.mxu0 %v108
  %151 = vmatprep.subr.bf16.mxu0 0
  %152 = vmatpush1.bf16.msra.mxu0 %v141
  %153 = vmatprep.subr.bf16.mxu0 0
  %154 = vmatpush1.bf16.msra.mxu0 0
  %155 = vmatprep.subr.bf16.mxu0 0
  %156 = vmatpush1.bf16.msra.mxu0 0
  %157 = vmatprep.subr.bf16.mxu0 0
  %158 = vmatpush1.bf16.msra.mxu0 0
  %159 = vmatprep.subr.bf16.mxu0 0
  %160 = vmatpush1.bf16.msra.mxu0 0
  %161 = vmatprep.subr.bf16.mxu0 0
  %162 = vmatpush1.bf16.msra.mxu0 0
  %163 = vmatprep.subr.bf16.mxu0 0
  %164 = vmatpush1.bf16.msra.mxu0 0
  %165 = vmatprep.subr.bf16.mxu0 0
  %166 = vmatpush1.bf16.msra.mxu0 0
  %167 = vmatprep.subr.bf16.mxu0 0
  %168 = vmatpush1.bf16.msra.mxu0 0
  %169 = vmatprep.subr.bf16.mxu0 0
  %170 = vmatpush1.bf16.msra.mxu0 0
  %171 = vmatprep.subr.bf16.mxu0 0
  %172 = vmatpush1.bf16.msra.mxu0 0
  %173 = vmatprep.subr.bf16.mxu0 0
  %174 = vmatpush1.bf16.msra.mxu0 0
  %175 = vmatprep.mubr.bf16.mxu0 0
  %176 = vmatmul.mubr.bf16.gmra.mrb[0].mxu0 %v116
  %v177 = vpop.f32.mrb[0].mxu0
  %v178 = vadd.f32 %v45, %v177
  %v179 = vpop.f32.mrb[0].mxu0
  %v180 = vpop.f32.mrb[0].mxu0
  %v181 = vadd.f32 %v45, %v180
  %v182 = vpop.f32.mrb[0].mxu0
  %183 = vmatprep.mubr.bf16.mxu0 0
  %184 = vmatmul.mubr.bf16.gmra.mrb[0].mxu0 %v119
  %v185 = vpop.f32.mrb[0].mxu0
  %v186 = vadd.f32 %v45, %v185
  %v187 = vpop.f32.mrb[0].mxu0
  %v188 = vpop.f32.mrb[0].mxu0
  %v189 = vadd.f32 %v45, %v188
  %v190 = vpop.f32.mrb[0].mxu0
  %191 = vmatprep.mubr.bf16.mxu0 0
  %192 = vmatmul.mubr.bf16.gmra.mrb[0].mxu0 %v122
  %v193 = vpop.f32.mrb[0].mxu0
  %v194 = vadd.f32 %v45, %v193
  %v195 = vpop.f32.mrb[0].mxu0
  %v196 = vpop.f32.mrb[0].mxu0
  %v197 = vadd.f32 %v45, %v196
  %v198 = vpop.f32.mrb[0].mxu0
  %199 = vmatprep.mubr.bf16.mxu0 0
  %200 = vmatmul.mubr.bf16.gmra.mrb[0].mxu0 %v125
  %v201 = vpop.f32.mrb[0].mxu0
  %v202 = vadd.f32 %v45, %v201
  %v203 = vpop.f32.mrb[0].mxu0
  %v204 = vpop.f32.mrb[0].mxu0
  %v205 = vadd.f32 %v45, %v204
  %v206 = vpop.f32.mrb[0].mxu0
  %207 = vmatprep.mubr.bf16.mxu0 0
  %208 = vmatmul.mubr.bf16.gmra.mrb[0].mxu0 %v128
  %v209 = vpop.f32.mrb[0].mxu0
  %v210 = vadd.f32 %v45, %v209
  %v211 = vpop.f32.mrb[0].mxu0
  %v212 = vpop.f32.mrb[0].mxu0
  %v213 = vadd.f32 %v45, %v212
  %v214 = vpop.f32.mrb[0].mxu0
  %215 = vmatprep.mubr.bf16.mxu0 0
  %216 = vmatmul.mubr.bf16.gmra.mrb[0].mxu0 %v131
  %v217 = vpop.f32.mrb[0].mxu0
  %v218 = vadd.f32 %v45, %v217
  %v219 = vpop.f32.mrb[0].mxu0
  %v220 = vpop.f32.mrb[0].mxu0
  %v221 = vadd.f32 %v45, %v220
  %v222 = vpop.f32.mrb[0].mxu0
  %223 = vmatprep.mubr.bf16.mxu0 0
  %224 = vmatmul.mubr.bf16.gmra.mrb[0].mxu0 %v134
  %v225 = vpop.f32.mrb[0].mxu0
  %v226 = vadd.f32 %v45, %v225
  %v227 = vpop.f32.mrb[0].mxu0
  %v228 = vpop.f32.mrb[0].mxu0
  %v229 = vadd.f32 %v45, %v228
  %v230 = vpop.f32.mrb[0].mxu0
  %231 = vmatprep.mubr.bf16.mxu0 0
  %232 = vmatmul.mubr.bf16.gmra.mrb[0].mxu0 %v137
  %v233 = vpop.f32.mrb[0].mxu0
  %v234 = vadd.f32 %v45, %v233
  %v235 = vpop.f32.mrb[0].mxu0
  %v236 = vpop.f32.mrb[0].mxu0
  %v237 = vadd.f32 %v45, %v236
  %v238 = vpop.f32.mrb[0].mxu0
  %239 = vdwg.mxu0
  %v240 = vmax.f32 %v178, 0.0
  %v241 = vmax.f32 %v181, 0.0
  %v242 = vmax.f32 %v186, 0.0
  %v243 = vmax.f32 %v189, 0.0
  %v244 = vmax.f32 %v194, 0.0
  %v245 = vmax.f32 %v197, 0.0
  %v246 = vmax.f32 %v202, 0.0
  %v247 = vmax.f32 %v205, 0.0
  %v248 = vmax.f32 %v210, 0.0
  %v249 = vmax.f32 %v213, 0.0
  %v250 = vmax.f32 %v218, 0.0
  %v251 = vmax.f32 %v221, 0.0
  %v252 = vmax.f32 %v226, 0.0
  %v253 = vmax.f32 %v229, 0.0
  %v254 = vmax.f32 %v234, 0.0
  %v255 = vmax.f32 %v237, 0.0
  %v256 = vpack.c.bf16 %v241, %v240
  %v257 = vpack.c.bf16 %v243, %v242
  %v258 = vpack.c.bf16 %v245, %v244
  %v259 = vpack.c.bf16 %v247, %v246
  %v260 = vpack.c.bf16 %v249, %v248
  %v261 = vpack.c.bf16 %v251, %v250
  %v262 = vpack.c.bf16 %v253, %v252
  %v263 = vpack.c.bf16 %v255, %v254
  %v272 = vunpack.c.l.b16 %v256
  %v273 = vunpack.c.h.b16 %v256
  %v274 = vunpack.c.l.b16 %v257
  %v275 = vunpack.c.h.b16 %v257
  %v276 = vunpack.c.l.b16 %v258
  %v277 = vunpack.c.h.b16 %v258
  %v278 = vunpack.c.l.b16 %v259
  %v279 = vunpack.c.h.b16 %v259
  %v280 = vunpack.c.l.b16 %v260
  %v281 = vunpack.c.h.b16 %v260
  %v282 = vunpack.c.l.b16 %v261
  %v283 = vunpack.c.h.b16 %v261
  %v284 = vunpack.c.l.b16 %v262
  %v285 = vunpack.c.h.b16 %v262
  %v286 = vunpack.c.l.b16 %v263
  %v287 = vunpack.c.h.b16 %v263
  %v288 = vpack.c.b16 %v272, %v272
  %v289 = vpack.c.b16 %v273, %v273
  %v290 = vpack.c.b16 %v274, %v274
  %v291 = vpack.c.b16 %v275, %v275
  %v292 = vpack.c.b16 %v276, %v276
  %v293 = vpack.c.b16 %v277, %v277
  %v294 = vpack.c.b16 %v278, %v278
  %v295 = vpack.c.b16 %v279, %v279
  %v296 = vpack.c.b16 %v280, %v280
  %v297 = vpack.c.b16 %v281, %v281
  %v298 = vpack.c.b16 %v282, %v282
  %v299 = vpack.c.b16 %v283, %v283
  %v300 = vpack.c.b16 %v284, %v284
  %v301 = vpack.c.b16 %v285, %v285
  %v302 = vpack.c.b16 %v286, %v286
  %v303 = vpack.c.b16 %v287, %v287
  %320 = vst [vmem:[%s3] sm:$0xf] %v288
  %321 = vst [vmem:[%s3 + $0x4] sm:$0xf] %v289
  %322 = vst [vmem:[%s3 + $0x8] sm:$0xf] %v290
  %323 = vst [vmem:[%s3 + $0xc] sm:$0xf] %v291
  %324 = vst [vmem:[%s3 + $0x10] sm:$0xf] %v292
  %325 = vst [vmem:[%s3 + $0x14] sm:$0xf] %v293
  %326 = vst [vmem:[%s3 + $0x18] sm:$0xf] %v294
  %327 = vst [vmem:[%s3 + $0x1c] sm:$0xf] %v295
  %328 = vst [vmem:[%s3 + $0x20] sm:$0xf] %v296
  %329 = vst [vmem:[%s3 + $0x24] sm:$0xf] %v297
  %330 = vst [vmem:[%s3 + $0x28] sm:$0xf] %v298
  %331 = vst [vmem:[%s3 + $0x2c] sm:$0xf] %v299
  %332 = vst [vmem:[%s3 + $0x30] sm:$0xf] %v300
  %333 = vst [vmem:[%s3 + $0x34] sm:$0xf] %v301
  %334 = vst [vmem:[%s3 + $0x38] sm:$0xf] %v302
  %335 = vst [vmem:[%s3 + $0x3c] sm:$0xf] %v303
  // Predicated region
  $region14: #{affinity_vae_forward.10} parent=0 // pred_check
    _
  $region15: #{affinity_vae_forward.10} parent=0 // pred_check_branch
    %337 = sbr.rel (0) target = $region17
  $region16: #{affinity_vae_forward.10} parent=0 // pred_region
    _
  $region17: #{affinity_vae_forward.10} parent=0 // pred_fallthru
    _
  // Predicated region
  $region18: #{affinity_vae_forward.10} parent=0 // pred_check
    _
  $region19: #{affinity_vae_forward.10} parent=0 // pred_check_branch
    %339 = sbr.rel (0) target = $region21
  $region20: #{affinity_vae_forward.10} parent=0 // pred_region
    _
  $region21: #{affinity_vae_forward.10} parent=0 // pred_fallthru
    _

// kernel: affinity_vae_forward.11
$region0: #{affinity_vae_forward.11}
  #allocation0 [shape = 'u32[]', space=smem, size = 0x4, offset = 0x4, fixed_abs, tag = 'smem constant byte address 0x4 - core index']
  #allocation1 [shape = 'u32[144,128]{1,0:T(1,128)}', space=vmem, size = 0x12000, scoped, tag = 'internal scratch']
  %s0 = inlined_call_operand.vmem [shape: bf16[32,144], index: 0, kind: input, shape index: {}]
  %s1 = inlined_call_operand.vmem [shape: bf16[144,128], index: 1, kind: input, shape index: {}]
  %s2 = inlined_call_operand.vmem [shape: f32[1,128], index: 2, kind: input, shape index: {}]
  %s3 = inlined_call_operand.vmem [shape: bf16[32,128], index: 3, kind: output, shape index: {}]
  %s4 = sld [smem:[#allocation0]]
  $region22: #{affinity_vae_forward.11} parent=0
    _
  %s6 = ssub.s32 1, %s4
  %s7 = scalar_select 0, %s6, %s4
  // Predicated region
  $region2: #{affinity_vae_forward.11} parent=0 // pred_check
    _
  $region3: #{affinity_vae_forward.11} parent=0 // pred_check_branch
    %9 = sbr.rel (0) target = $region5
  $region4: #{affinity_vae_forward.11} parent=0 // pred_region
    _
  $region5: #{affinity_vae_forward.11} parent=0 // pred_fallthru
    _
  // Predicated region
  $region6: #{affinity_vae_forward.11} parent=0 // pred_check
    _
  $region7: #{affinity_vae_forward.11} parent=0 // pred_check_branch
    %11 = sbr.rel (0) target = $region9
  $region8: #{affinity_vae_forward.11} parent=0 // pred_region
    _
  $region9: #{affinity_vae_forward.11} parent=0 // pred_fallthru
    _
  // Predicated region
  $region10: #{affinity_vae_forward.11} parent=0 // pred_check
    _
  $region11: #{affinity_vae_forward.11} parent=0 // pred_check_branch
    %13 = sbr.rel (0) target = $region13
  $region12: #{affinity_vae_forward.11} parent=0 // pred_region
    _
  $region13: #{affinity_vae_forward.11} parent=0 // pred_fallthru
    _
  %v15 = vld [vmem:[%s0] sm:$0xff]
  %v16 = vld [vmem:[%s0 + $0x8] sm:$0xff]
  %v17 = vld [vmem:[%s0 + $0x10] sm:$0xff]
  %v18 = vld [vmem:[%s0 + $0x18] sm:$0xff]
  %v19 = vld [vmem:[%s1] sm:$0xf]
  %v20 = vld [vmem:[%s1 + $0x4] sm:$0xf]
  %v21 = vld [vmem:[%s1 + $0x8] sm:$0xf]
  %v22 = vld [vmem:[%s1 + $0xc] sm:$0xf]
  %v23 = vld [vmem:[%s1 + $0x10] sm:$0xf]
  %v24 = vld [vmem:[%s1 + $0x14] sm:$0xf]
  %v25 = vld [vmem:[%s1 + $0x18] sm:$0xf]
  %v26 = vld [vmem:[%s1 + $0x1c] sm:$0xf]
  %v27 = vld [vmem:[%s1 + $0x20] sm:$0xf]
  %v28 = vld [vmem:[%s1 + $0x24] sm:$0xf]
  %v29 = vld [vmem:[%s1 + $0x28] sm:$0xf]
  %v30 = vld [vmem:[%s1 + $0x2c] sm:$0xf]
  %v31 = vld [vmem:[%s1 + $0x30] sm:$0xf]
  %v32 = vld [vmem:[%s1 + $0x34] sm:$0xf]
  %v33 = vld [vmem:[%s1 + $0x38] sm:$0xf]
  %v34 = vld [vmem:[%s1 + $0x3c] sm:$0xf]
  %v35 = vld [vmem:[%s1 + $0x40] sm:$0xf]
  %v36 = vld [vmem:[%s1 + $0x44] sm:$0xf]
  %v37 = vld [vmem:[%s2] sm:$0x1]
  %v39 = vlaneseq
  %v40 = vshrl.u32 %v39, 7
  %v41 = vsub.s32 0, %v40
  %v42 = vrot.slane %v37, %v41
  %v48 = vunpack.c.l.b16 %v15
  %v49 = vunpack.c.h.b16 %v15
  %v50 = vunpack.c.l.b16 %v16
  %v51 = vunpack.c.h.b16 %v16
  %v52 = vunpack.c.l.b16 %v17
  %v53 = vunpack.c.h.b16 %v17
  %v54 = vunpack.c.l.b16 %v18
  %v55 = vunpack.c.h.b16 %v18
  %v56 = vpack.c.b16 %v50, %v48
  %v57 = vpack.c.b16 %v51, %v49
  %v58 = vpack.c.b16 %v54, %v52
  %v59 = vpack.c.b16 %v55, %v53
  %v80 = vunpack.c.l.b16 %v19
  %v81 = vunpack.c.l.b16 %v20
  %v82 = vunpack.c.l.b16 %v21
  %v83 = vunpack.c.l.b16 %v22
  %v84 = vunpack.c.l.b16 %v23
  %v85 = vunpack.c.l.b16 %v24
  %v86 = vunpack.c.l.b16 %v25
  %v87 = vunpack.c.l.b16 %v26
  %v88 = vunpack.c.l.b16 %v27
  %v89 = vunpack.c.l.b16 %v28
  %v90 = vunpack.c.l.b16 %v29
  %v91 = vunpack.c.l.b16 %v30
  %v92 = vunpack.c.l.b16 %v31
  %v93 = vunpack.c.l.b16 %v32
  %v94 = vunpack.c.l.b16 %v33
  %v95 = vunpack.c.l.b16 %v34
  %v96 = vunpack.c.l.b16 %v35
  %v97 = vunpack.c.l.b16 %v36
  %v98 = vpack.c.b16 %v81, %v80
  %v99 = vpack.c.b16 %v83, %v82
  %v100 = vpack.c.b16 %v85, %v84
  %v101 = vpack.c.b16 %v87, %v86
  %v102 = vpack.c.b16 %v89, %v88
  %v103 = vpack.c.b16 %v91, %v90
  %v104 = vpack.c.b16 %v93, %v92
  %v105 = vpack.c.b16 %v95, %v94
  %v106 = vpack.c.b16 %v97, %v96
  %vm116 = vcmask 130048
  %v118 = vsel %vm116, %v57, 0
  %v121 = vsel %vm116, %v59, 0
  %123 = vmatprep.subr.bf16.mxu0 0
  %124 = vmatpush1.bf16.msra.mxu0 %v98
  %125 = vmatprep.subr.bf16.mxu0 0
  %126 = vmatpush1.bf16.msra.mxu0 %v99
  %127 = vmatprep.subr.bf16.mxu0 0
  %128 = vmatpush1.bf16.msra.mxu0 %v100
  %129 = vmatprep.subr.bf16.mxu0 0
  %130 = vmatpush1.bf16.msra.mxu0 %v101
  %131 = vmatprep.subr.bf16.mxu0 0
  %132 = vmatpush1.bf16.msra.mxu0 %v102
  %133 = vmatprep.subr.bf16.mxu0 0
  %134 = vmatpush1.bf16.msra.mxu0 %v103
  %135 = vmatprep.subr.bf16.mxu0 0
  %136 = vmatpush1.bf16.msra.mxu0 %v104
  %137 = vmatprep.subr.bf16.mxu0 0
  %138 = vmatpush1.bf16.msra.mxu0 %v105
  %139 = vmatprep.subr.bf16.mxu0 0
  %140 = vmatpush1.bf16.msra.mxu0 %v106
  %141 = vmatprep.subr.bf16.mxu0 0
  %142 = vmatpush1.bf16.msra.mxu0 0
  %143 = vmatprep.subr.bf16.mxu0 0
  %144 = vmatpush1.bf16.msra.mxu0 0
  %145 = vmatprep.subr.bf16.mxu0 0
  %146 = vmatpush1.bf16.msra.mxu0 0
  %147 = vmatprep.subr.bf16.mxu0 0
  %148 = vmatpush1.bf16.msra.mxu0 0
  %149 = vmatprep.subr.bf16.mxu0 0
  %150 = vmatpush1.bf16.msra.mxu0 0
  %151 = vmatprep.subr.bf16.mxu0 0
  %152 = vmatpush1.bf16.msra.mxu0 0
  %153 = vmatprep.subr.bf16.mxu0 0
  %154 = vmatpush1.bf16.msra.mxu0 0
  %155 = vmatprep.mubr.bf16.mxu0 %v118
  %156 = vmatmul.mubr.bf16.gmra.mrb[0].mxu0 %v56
  %v157 = vpop.f32.mrb[0].mxu0
  %v158 = vadd.f32 %v42, %v157
  %v159 = vpop.f32.mrb[0].mxu0
  %v160 = vpop.f32.mrb[0].mxu0
  %v161 = vadd.f32 %v42, %v160
  %v162 = vpop.f32.mrb[0].mxu0
  %163 = vmatprep.mubr.bf16.mxu0 %v121
  %164 = vmatmul.mubr.bf16.gmra.mrb[0].mxu0 %v58
  %v165 = vpop.f32.mrb[0].mxu0
  %v166 = vadd.f32 %v42, %v165
  %v167 = vpop.f32.mrb[0].mxu0
  %v168 = vpop.f32.mrb[0].mxu0
  %v169 = vadd.f32 %v42, %v168
  %v170 = vpop.f32.mrb[0].mxu0
  %171 = vdwg.mxu0
  %v172 = vmax.f32 %v158, 0.0
  %v173 = vmax.f32 %v161, 0.0
  %v174 = vmax.f32 %v166, 0.0
  %v175 = vmax.f32 %v169, 0.0
  %v176 = vpack.c.bf16 %v173, %v172
  %v177 = vpack.c.bf16 %v175, %v174
  %v180 = vunpack.c.l.b16 %v176
  %v181 = vunpack.c.h.b16 %v176
  %v182 = vunpack.c.l.b16 %v177
  %v183 = vunpack.c.h.b16 %v177
  %v184 = vpack.c.b16 %v180, %v180
  %v185 = vpack.c.b16 %v181, %v181
  %v186 = vpack.c.b16 %v182, %v182
  %v187 = vpack.c.b16 %v183, %v183
  %192 = vst [vmem:[%s3] sm:$0xf] %v184
  %193 = vst [vmem:[%s3 + $0x4] sm:$0xf] %v185
  %194 = vst [vmem:[%s3 + $0x8] sm:$0xf] %v186
  %195 = vst [vmem:[%s3 + $0xc] sm:$0xf] %v187
  // Predicated region
  $region14: #{affinity_vae_forward.11} parent=0 // pred_check
    _
  $region15: #{affinity_vae_forward.11} parent=0 // pred_check_branch
    %197 = sbr.rel (0) target = $region17
  $region16: #{affinity_vae_forward.11} parent=0 // pred_region
    _
  $region17: #{affinity_vae_forward.11} parent=0 // pred_fallthru
    _
  // Predicated region
  $region18: #{affinity_vae_forward.11} parent=0 // pred_check
    _
  $region19: #{affinity_vae_forward.11} parent=0 // pred_check_branch
    %199 = sbr.rel (0) target = $region21
  $region20: #{affinity_vae_forward.11} parent=0 // pred_region
    _
  $region21: #{affinity_vae_forward.11} parent=0 // pred_fallthru
    _

// kernel: affinity_vae_forward.12
$region0: #{affinity_vae_forward.12}
  #allocation0 [shape = 'u32[]', space=smem, size = 0x4, offset = 0x4, fixed_abs, tag = 'smem constant byte address 0x4 - core index']
  #allocation1 [shape = 'u32[144,128]{1,0:T(1,128)}', space=vmem, size = 0x12000, scoped, tag = 'internal scratch']
  %s0 = inlined_call_operand.vmem [shape: bf16[16,288], index: 0, kind: input, shape index: {}]
  %s1 = inlined_call_operand.vmem [shape: bf16[288,128], index: 1, kind: input, shape index: {}]
  %s2 = inlined_call_operand.vmem [shape: f32[1,128], index: 2, kind: input, shape index: {}]
  %s3 = inlined_call_operand.vmem [shape: bf16[16,128], index: 3, kind: output, shape index: {}]
  %s4 = sld [smem:[#allocation0]]
  $region22: #{affinity_vae_forward.12} parent=0
    _
  %s6 = ssub.s32 1, %s4
  %s7 = scalar_select 0, %s6, %s4
  // Predicated region
  $region2: #{affinity_vae_forward.12} parent=0 // pred_check
    _
  $region3: #{affinity_vae_forward.12} parent=0 // pred_check_branch
    %9 = sbr.rel (0) target = $region5
  $region4: #{affinity_vae_forward.12} parent=0 // pred_region
    _
  $region5: #{affinity_vae_forward.12} parent=0 // pred_fallthru
    _
  // Predicated region
  $region6: #{affinity_vae_forward.12} parent=0 // pred_check
    _
  $region7: #{affinity_vae_forward.12} parent=0 // pred_check_branch
    %11 = sbr.rel (0) target = $region9
  $region8: #{affinity_vae_forward.12} parent=0 // pred_region
    _
  $region9: #{affinity_vae_forward.12} parent=0 // pred_fallthru
    _
  // Predicated region
  $region10: #{affinity_vae_forward.12} parent=0 // pred_check
    _
  $region11: #{affinity_vae_forward.12} parent=0 // pred_check_branch
    %13 = sbr.rel (0) target = $region13
  $region12: #{affinity_vae_forward.12} parent=0 // pred_region
    _
  $region13: #{affinity_vae_forward.12} parent=0 // pred_fallthru
    _
  %v15 = vld [vmem:[%s0] sm:$0xff]
  %v16 = vld [vmem:[%s0 + $0x8] sm:$0xf]
  %v17 = vld [vmem:[%s0 + $0xc] sm:$0xff]
  %v18 = vld [vmem:[%s0 + $0x14] sm:$0xf]
  %v19 = vld [vmem:[%s1] sm:$0xf]
  %v20 = vld [vmem:[%s1 + $0x4] sm:$0xf]
  %v21 = vld [vmem:[%s1 + $0x8] sm:$0xf]
  %v22 = vld [vmem:[%s1 + $0xc] sm:$0xf]
  %v23 = vld [vmem:[%s1 + $0x10] sm:$0xf]
  %v24 = vld [vmem:[%s1 + $0x14] sm:$0xf]
  %v25 = vld [vmem:[%s1 + $0x18] sm:$0xf]
  %v26 = vld [vmem:[%s1 + $0x1c] sm:$0xf]
  %v27 = vld [vmem:[%s1 + $0x20] sm:$0xf]
  %v28 = vld [vmem:[%s1 + $0x24] sm:$0xf]
  %v29 = vld [vmem:[%s1 + $0x28] sm:$0xf]
  %v30 = vld [vmem:[%s1 + $0x2c] sm:$0xf]
  %v31 = vld [vmem:[%s1 + $0x30] sm:$0xf]
  %v32 = vld [vmem:[%s1 + $0x34] sm:$0xf]
  %v33 = vld [vmem:[%s1 + $0x38] sm:$0xf]
  %v34 = vld [vmem:[%s1 + $0x3c] sm:$0xf]
  %v35 = vld [vmem:[%s1 + $0x40] sm:$0xf]
  %v36 = vld [vmem:[%s1 + $0x44] sm:$0xf]
  %v37 = vld [vmem:[%s1 + $0x48] sm:$0xf]
  %v38 = vld [vmem:[%s1 + $0x4c] sm:$0xf]
  %v39 = vld [vmem:[%s1 + $0x50] sm:$0xf]
  %v40 = vld [vmem:[%s1 + $0x54] sm:$0xf]
  %v41 = vld [vmem:[%s1 + $0x58] sm:$0xf]
  %v42 = vld [vmem:[%s1 + $0x5c] sm:$0xf]
  %v43 = vld [vmem:[%s1 + $0x60] sm:$0xf]
  %v44 = vld [vmem:[%s1 + $0x64] sm:$0xf]
  %v45 = vld [vmem:[%s1 + $0x68] sm:$0xf]
  %v46 = vld [vmem:[%s1 + $0x6c] sm:$0xf]
  %v47 = vld [vmem:[%s1 + $0x70] sm:$0xf]
  %v48 = vld [vmem:[%s1 + $0x74] sm:$0xf]
  %v49 = vld [vmem:[%s1 + $0x78] sm:$0xf]
  %v50 = vld [vmem:[%s1 + $0x7c] sm:$0xf]
  %v51 = vld [vmem:[%s1 + $0x80] sm:$0xf]
  %v52 = vld [vmem:[%s1 + $0x84] sm:$0xf]
  %v53 = vld [vmem:[%s1 + $0x88] sm:$0xf]
  %v54 = vld [vmem:[%s1 + $0x8c] sm:$0xf]
  %v55 = vld [vmem:[%s2] sm:$0x1]
  %v57 = vlaneseq
  %v58 = vshrl.u32 %v57, 7
  %v59 = vsub.s32 0, %v58
  %v60 = vrot.slane %v55, %v59
  %v66 = vunpack.c.l.b16 %v15
  %v67 = vunpack.c.h.b16 %v15
  %v68 = vunpack.c.l.b16 %v16
  %v69 = vunpack.c.l.b16 %v17
  %v70 = vunpack.c.h.b16 %v17
  %v71 = vunpack.c.l.b16 %v18
  %v72 = vpack.c.b16 %v69, %v66
  %v73 = vpack.c.b16 %v70, %v67
  %v74 = vpack.c.b16 %v71, %v68
  %v113 = vunpack.c.l.b16 %v19
  %v114 = vunpack.c.l.b16 %v20
  %v115 = vunpack.c.l.b16 %v21
  %v116 = vunpack.c.l.b16 %v22
  %v117 = vunpack.c.l.b16 %v23
  %v118 = vunpack.c.l.b16 %v24
  %v119 = vunpack.c.l.b16 %v25
  %v120 = vunpack.c.l.b16 %v26
  %v121 = vunpack.c.l.b16 %v27
  %v122 = vunpack.c.l.b16 %v28
  %v123 = vunpack.c.l.b16 %v29
  %v124 = vunpack.c.l.b16 %v30
  %v125 = vunpack.c.l.b16 %v31
  %v126 = vunpack.c.l.b16 %v32
  %v127 = vunpack.c.l.b16 %v33
  %v128 = vunpack.c.l.b16 %v34
  %v129 = vunpack.c.l.b16 %v35
  %v130 = vunpack.c.l.b16 %v36
  %v131 = vunpack.c.l.b16 %v37
  %v132 = vunpack.c.l.b16 %v38
  %v133 = vunpack.c.l.b16 %v39
  %v134 = vunpack.c.l.b16 %v40
  %v135 = vunpack.c.l.b16 %v41
  %v136 = vunpack.c.l.b16 %v42
  %v137 = vunpack.c.l.b16 %v43
  %v138 = vunpack.c.l.b16 %v44
  %v139 = vunpack.c.l.b16 %v45
  %v140 = vunpack.c.l.b16 %v46
  %v141 = vunpack.c.l.b16 %v47
  %v142 = vunpack.c.l.b16 %v48
  %v143 = vunpack.c.l.b16 %v49
  %v144 = vunpack.c.l.b16 %v50
  %v145 = vunpack.c.l.b16 %v51
  %v146 = vunpack.c.l.b16 %v52
  %v147 = vunpack.c.l.b16 %v53
  %v148 = vunpack.c.l.b16 %v54
  %v149 = vpack.c.b16 %v114, %v113
  %v150 = vpack.c.b16 %v116, %v115
  %v151 = vpack.c.b16 %v118, %v117
  %v152 = vpack.c.b16 %v120, %v119
  %v153 = vpack.c.b16 %v122, %v121
  %v154 = vpack.c.b16 %v124, %v123
  %v155 = vpack.c.b16 %v126, %v125
  %v156 = vpack.c.b16 %v128, %v127
  %v157 = vpack.c.b16 %v130, %v129
  %v158 = vpack.c.b16 %v132, %v131
  %v159 = vpack.c.b16 %v134, %v133
  %v160 = vpack.c.b16 %v136, %v135
  %v161 = vpack.c.b16 %v138, %v137
  %v162 = vpack.c.b16 %v140, %v139
  %v163 = vpack.c.b16 %v142, %v141
  %v164 = vpack.c.b16 %v144, %v143
  %v165 = vpack.c.b16 %v146, %v145
  %v166 = vpack.c.b16 %v148, %v147
  %vm185 = vcmask 261120
  %v187 = vsel %vm185, %v74, 0
  %189 = vmatprep.subr.bf16.mxu0 0
  %190 = vmatpush1.bf16.msra.mxu0 %v149
  %191 = vmatprep.subr.bf16.mxu0 0
  %192 = vmatpush1.bf16.msra.mxu0 %v150
  %193 = vmatprep.subr.bf16.mxu0 0
  %194 = vmatpush1.bf16.msra.mxu0 %v151
  %195 = vmatprep.subr.bf16.mxu0 0
  %196 = vmatpush1.bf16.msra.mxu0 %v152
  %197 = vmatprep.subr.bf16.mxu0 0
  %198 = vmatpush1.bf16.msra.mxu0 %v153
  %199 = vmatprep.subr.bf16.mxu0 0
  %200 = vmatpush1.bf16.msra.mxu0 %v154
  %201 = vmatprep.subr.bf16.mxu0 0
  %202 = vmatpush1.bf16.msra.mxu0 %v155
  %203 = vmatprep.subr.bf16.mxu0 0
  %204 = vmatpush1.bf16.msra.mxu0 %v156
  %205 = vmatprep.subr.bf16.mxu0 0
  %206 = vmatpush1.bf16.msra.mxu0 %v157
  %207 = vmatprep.subr.bf16.mxu0 0
  %208 = vmatpush1.bf16.msra.mxu0 %v158
  %209 = vmatprep.subr.bf16.mxu0 0
  %210 = vmatpush1.bf16.msra.mxu0 %v159
  %211 = vmatprep.subr.bf16.mxu0 0
  %212 = vmatpush1.bf16.msra.mxu0 %v160
  %213 = vmatprep.subr.bf16.mxu0 0
  %214 = vmatpush1.bf16.msra.mxu0 %v161
  %215 = vmatprep.subr.bf16.mxu0 0
  %216 = vmatpush1.bf16.msra.mxu0 %v162
  %217 = vmatprep.subr.bf16.mxu0 0
  %218 = vmatpush1.bf16.msra.mxu0 %v163
  %219 = vmatprep.subr.bf16.mxu0 0
  %220 = vmatpush1.bf16.msra.mxu0 %v164
  %221 = vmatprep.mubr.bf16.mxu0 %v73
  %222 = vmatmul.mubr.bf16.gmra.mrb[0].mxu0 %v72
  %v223 = vpop.f32.mrb[0].mxu0
  %v224 = vadd.f32 %v60, %v223
  %v225 = vpop.f32.mrb[0].mxu0
  %v226 = vpop.f32.mrb[0].mxu0
  %v227 = vadd.f32 %v60, %v226
  %v228 = vpop.f32.mrb[0].mxu0
  %229 = vdwg.mxu0
  %230 = vmatprep.subr.bf16.mxu0 0
  %231 = vmatpush1.bf16.msra.mxu0 %v165
  %232 = vmatprep.subr.bf16.mxu0 0
  %233 = vmatpush1.bf16.msra.mxu0 %v166
  %234 = vmatprep.subr.bf16.mxu0 0
  %235 = vmatpush1.bf16.msra.mxu0 0
  %236 = vmatprep.subr.bf16.mxu0 0
  %237 = vmatpush1.bf16.msra.mxu0 0
  %238 = vmatprep.subr.bf16.mxu0 0
  %239 = vmatpush1.bf16.msra.mxu0 0
  %240 = vmatprep.subr.bf16.mxu0 0
  %241 = vmatpush1.bf16.msra.mxu0 0
  %242 = vmatprep.subr.bf16.mxu0 0
  %243 = vmatpush1.bf16.msra.mxu0 0
  %244 = vmatprep.subr.bf16.mxu0 0
  %245 = vmatpush1.bf16.msra.mxu0 0
  %246 = vmatprep.subr.bf16.mxu0 0
  %247 = vmatpush1.bf16.msra.mxu0 0
  %248 = vmatprep.subr.bf16.mxu0 0
  %249 = vmatpush1.bf16.msra.mxu0 0
  %250 = vmatprep.subr.bf16.mxu0 0
  %251 = vmatpush1.bf16.msra.mxu0 0
  %252 = vmatprep.subr.bf16.mxu0 0
  %253 = vmatpush1.bf16.msra.mxu0 0
  %254 = vmatprep.subr.bf16.mxu0 0
  %255 = vmatpush1.bf16.msra.mxu0 0
  %256 = vmatprep.subr.bf16.mxu0 0
  %257 = vmatpush1.bf16.msra.mxu0 0
  %258 = vmatprep.subr.bf16.mxu0 0
  %259 = vmatpush1.bf16.msra.mxu0 0
  %260 = vmatprep.subr.bf16.mxu0 0
  %261 = vmatpush1.bf16.msra.mxu0 0
  %262 = vmatprep.mubr.bf16.mxu0 0
  %263 = vmatmul.mubr.bf16.gmra.mrb[0].mxu0 %v187
  %v264 = vpop.f32.mrb[0].mxu0
  %v265 = vadd.f32 %v224, %v264
  %v266 = vpop.f32.mrb[0].mxu0
  %v267 = vpop.f32.mrb[0].mxu0
  %v268 = vadd.f32 %v227, %v267
  %v269 = vpop.f32.mrb[0].mxu0
  %270 = vdwg.mxu0
  %v271 = vmax.f32 %v265, 0.0
  %v272 = vmax.f32 %v268, 0.0
  %v273 = vpack.c.bf16 %v272, %v271
  %v275 = vunpack.c.l.b16 %v273
  %v276 = vunpack.c.h.b16 %v273
  %v277 = vpack.c.b16 %v275, %v275
  %v278 = vpack.c.b16 %v276, %v276
  %281 = vst [vmem:[%s3] sm:$0xf] %v277
  %282 = vst [vmem:[%s3 + $0x4] sm:$0xf] %v278
  // Predicated region
  $region14: #{affinity_vae_forward.12} parent=0 // pred_check
    _
  $region15: #{affinity_vae_forward.12} parent=0 // pred_check_branch
    %284 = sbr.rel (0) target = $region17
  $region16: #{affinity_vae_forward.12} parent=0 // pred_region
    _
  $region17: #{affinity_vae_forward.12} parent=0 // pred_fallthru
    _
  // Predicated region
  $region18: #{affinity_vae_forward.12} parent=0 // pred_check
    _
  $region19: #{affinity_vae_forward.12} parent=0 // pred_check_branch
    %286 = sbr.rel (0) target = $region21
  $region20: #{affinity_vae_forward.12} parent=0 // pred_region
    _
  $region21: #{affinity_vae_forward.12} parent=0 // pred_fallthru
    _

// kernel: affinity_vae_forward.13
$region0: #{affinity_vae_forward.13}
  #allocation0 [shape = 'u32[]', space=smem, size = 0x4, offset = 0x4, fixed_abs, tag = 'smem constant byte address 0x4 - core index']
  #allocation1 [shape = 'u32[144,128]{1,0:T(1,128)}', space=vmem, size = 0x12000, scoped, tag = 'internal scratch']
  %s0 = inlined_call_operand.vmem [shape: bf16[16,256], index: 0, kind: input, shape index: {}]
  %s1 = inlined_call_operand.vmem [shape: f32[16,8], index: 1, kind: input, shape index: {}]
  %s2 = inlined_call_operand.vmem [shape: bf16[256,128], index: 2, kind: input, shape index: {}]
  %s3 = inlined_call_operand.vmem [shape: f32[1,128], index: 3, kind: input, shape index: {}]
  %s4 = inlined_call_operand.vmem [shape: bf16[8,256], index: 4, kind: input, shape index: {}]
  %s5 = inlined_call_operand.vmem [shape: f32[1,256], index: 5, kind: input, shape index: {}]
  %s6 = inlined_call_operand.vmem [shape: f32[1,256], index: 6, kind: input, shape index: {}]
  %s7 = inlined_call_operand.vmem [shape: f32[16,128], index: 7, kind: output, shape index: {0}]
  %s8 = inlined_call_operand.vmem [shape: f32[16,8], index: 8, kind: output, shape index: {1}]
  %s9 = inlined_call_operand.vmem [shape: bf16[16,256], index: 9, kind: output, shape index: {2}]
  %10 = xla_tuple %s7, %s8, %s9
  %s11 = sld [smem:[#allocation0]]
  $region54: #{affinity_vae_forward.13} parent=0
    _
  %s13 = ssub.s32 1, %s11
  %s14 = scalar_select 0, %s13, %s11
  // Predicated region
  $region2: #{affinity_vae_forward.13} parent=0 // pred_check
    _
  $region3: #{affinity_vae_forward.13} parent=0 // pred_check_branch
    %16 = sbr.rel (0) target = $region5
  $region4: #{affinity_vae_forward.13} parent=0 // pred_region
    _
  $region5: #{affinity_vae_forward.13} parent=0 // pred_fallthru
    _
  // Predicated region
  $region6: #{affinity_vae_forward.13} parent=0 // pred_check
    _
  $region7: #{affinity_vae_forward.13} parent=0 // pred_check_branch
    %18 = sbr.rel (0) target = $region9
  $region8: #{affinity_vae_forward.13} parent=0 // pred_region
    _
  $region9: #{affinity_vae_forward.13} parent=0 // pred_fallthru
    _
  // Predicated region
  $region10: #{affinity_vae_forward.13} parent=0 // pred_check
    _
  $region11: #{affinity_vae_forward.13} parent=0 // pred_check_branch
    %20 = sbr.rel (0) target = $region13
  $region12: #{affinity_vae_forward.13} parent=0 // pred_region
    _
  $region13: #{affinity_vae_forward.13} parent=0 // pred_fallthru
    _
  // Predicated region
  $region14: #{affinity_vae_forward.13} parent=0 // pred_check
    _
  $region15: #{affinity_vae_forward.13} parent=0 // pred_check_branch
    %22 = sbr.rel (0) target = $region17
  $region16: #{affinity_vae_forward.13} parent=0 // pred_region
    _
  $region17: #{affinity_vae_forward.13} parent=0 // pred_fallthru
    _
  // Predicated region
  $region18: #{affinity_vae_forward.13} parent=0 // pred_check
    _
  $region19: #{affinity_vae_forward.13} parent=0 // pred_check_branch
    %24 = sbr.rel (0) target = $region21
  $region20: #{affinity_vae_forward.13} parent=0 // pred_region
    _
  $region21: #{affinity_vae_forward.13} parent=0 // pred_fallthru
    _
  // Predicated region
  $region22: #{affinity_vae_forward.13} parent=0 // pred_check
    _
  $region23: #{affinity_vae_forward.13} parent=0 // pred_check_branch
    %26 = sbr.rel (0) target = $region25
  $region24: #{affinity_vae_forward.13} parent=0 // pred_region
    _
  $region25: #{affinity_vae_forward.13} parent=0 // pred_fallthru
    _
  // Predicated region
  $region26: #{affinity_vae_forward.13} parent=0 // pred_check
    _
  $region27: #{affinity_vae_forward.13} parent=0 // pred_check_branch
    %28 = sbr.rel (0) target = $region29
  $region28: #{affinity_vae_forward.13} parent=0 // pred_region
    _
  $region29: #{affinity_vae_forward.13} parent=0 // pred_fallthru
    _
  %v30 = vld [vmem:[%s0] sm:$0xff]
  %v31 = vld [vmem:[%s0 + $0x8] sm:$0xff]
  %v32 = vld [vmem:[%s2] sm:$0xf]
  %v33 = vld [vmem:[%s2 + $0x4] sm:$0xf]
  %v34 = vld [vmem:[%s2 + $0x8] sm:$0xf]
  %v35 = vld [vmem:[%s2 + $0xc] sm:$0xf]
  %v36 = vld [vmem:[%s2 + $0x10] sm:$0xf]
  %v37 = vld [vmem:[%s2 + $0x14] sm:$0xf]
  %v38 = vld [vmem:[%s2 + $0x18] sm:$0xf]
  %v39 = vld [vmem:[%s2 + $0x1c] sm:$0xf]
  %v40 = vld [vmem:[%s2 + $0x20] sm:$0xf]
  %v41 = vld [vmem:[%s2 + $0x24] sm:$0xf]
  %v42 = vld [vmem:[%s2 + $0x28] sm:$0xf]
  %v43 = vld [vmem:[%s2 + $0x2c] sm:$0xf]
  %v44 = vld [vmem:[%s2 + $0x30] sm:$0xf]
  %v45 = vld [vmem:[%s2 + $0x34] sm:$0xf]
  %v46 = vld [vmem:[%s2 + $0x38] sm:$0xf]
  %v47 = vld [vmem:[%s2 + $0x3c] sm:$0xf]
  %v48 = vld [vmem:[%s2 + $0x40] sm:$0xf]
  %v49 = vld [vmem:[%s2 + $0x44] sm:$0xf]
  %v50 = vld [vmem:[%s2 + $0x48] sm:$0xf]
  %v51 = vld [vmem:[%s2 + $0x4c] sm:$0xf]
  %v52 = vld [vmem:[%s2 + $0x50] sm:$0xf]
  %v53 = vld [vmem:[%s2 + $0x54] sm:$0xf]
  %v54 = vld [vmem:[%s2 + $0x58] sm:$0xf]
  %v55 = vld [vmem:[%s2 + $0x5c] sm:$0xf]
  %v56 = vld [vmem:[%s2 + $0x60] sm:$0xf]
  %v57 = vld [vmem:[%s2 + $0x64] sm:$0xf]
  %v58 = vld [vmem:[%s2 + $0x68] sm:$0xf]
  %v59 = vld [vmem:[%s2 + $0x6c] sm:$0xf]
  %v60 = vld [vmem:[%s2 + $0x70] sm:$0xf]
  %v61 = vld [vmem:[%s2 + $0x74] sm:$0xf]
  %v62 = vld [vmem:[%s2 + $0x78] sm:$0xf]
  %v63 = vld [vmem:[%s2 + $0x7c] sm:$0xf]
  %v64 = vld [vmem:[%s3] sm:$0x1]
  %v66 = vlaneseq
  %v67 = vshrl.u32 %v66, 7
  %v68 = vsub.s32 0, %v67
  %v69 = vrot.slane %v64, %v68
  %v73 = vunpack.c.l.b16 %v30
  %v74 = vunpack.c.h.b16 %v30
  %v75 = vunpack.c.l.b16 %v31
  %v76 = vunpack.c.h.b16 %v31
  %v77 = vpack.c.b16 %v75, %v73
  %v78 = vpack.c.b16 %v76, %v74
  %v113 = vunpack.c.l.b16 %v32
  %v114 = vunpack.c.l.b16 %v33
  %v115 = vunpack.c.l.b16 %v34
  %v116 = vunpack.c.l.b16 %v35
  %v117 = vunpack.c.l.b16 %v36
  %v118 = vunpack.c.l.b16 %v37
  %v119 = vunpack.c.l.b16 %v38
  %v120 = vunpack.c.l.b16 %v39
  %v121 = vunpack.c.l.b16 %v40
  %v122 = vunpack.c.l.b16 %v41
  %v123 = vunpack.c.l.b16 %v42
  %v124 = vunpack.c.l.b16 %v43
  %v125 = vunpack.c.l.b16 %v44
  %v126 = vunpack.c.l.b16 %v45
  %v127 = vunpack.c.l.b16 %v46
  %v128 = vunpack.c.l.b16 %v47
  %v129 = vunpack.c.l.b16 %v48
  %v130 = vunpack.c.l.b16 %v49
  %v131 = vunpack.c.l.b16 %v50
  %v132 = vunpack.c.l.b16 %v51
  %v133 = vunpack.c.l.b16 %v52
  %v134 = vunpack.c.l.b16 %v53
  %v135 = vunpack.c.l.b16 %v54
  %v136 = vunpack.c.l.b16 %v55
  %v137 = vunpack.c.l.b16 %v56
  %v138 = vunpack.c.l.b16 %v57
  %v139 = vunpack.c.l.b16 %v58
  %v140 = vunpack.c.l.b16 %v59
  %v141 = vunpack.c.l.b16 %v60
  %v142 = vunpack.c.l.b16 %v61
  %v143 = vunpack.c.l.b16 %v62
  %v144 = vunpack.c.l.b16 %v63
  %v145 = vpack.c.b16 %v114, %v113
  %v146 = vpack.c.b16 %v116, %v115
  %v147 = vpack.c.b16 %v118, %v117
  %v148 = vpack.c.b16 %v120, %v119
  %v149 = vpack.c.b16 %v122, %v121
  %v150 = vpack.c.b16 %v124, %v123
  %v151 = vpack.c.b16 %v126, %v125
  %v152 = vpack.c.b16 %v128, %v127
  %v153 = vpack.c.b16 %v130, %v129
  %v154 = vpack.c.b16 %v132, %v131
  %v155 = vpack.c.b16 %v134, %v133
  %v156 = vpack.c.b16 %v136, %v135
  %v157 = vpack.c.b16 %v138, %v137
  %v158 = vpack.c.b16 %v140, %v139
  %v159 = vpack.c.b16 %v142, %v141
  %v160 = vpack.c.b16 %v144, %v143
  %177 = vmatprep.subr.bf16.mxu0 0
  %178 = vmatpush1.bf16.msra.mxu0 %v145
  %179 = vmatprep.subr.bf16.mxu0 0
  %180 = vmatpush1.bf16.msra.mxu0 %v146
  %181 = vmatprep.subr.bf16.mxu0 0
  %182 = vmatpush1.bf16.msra.mxu0 %v147
  %183 = vmatprep.subr.bf16.mxu0 0
  %184 = vmatpush1.bf16.msra.mxu0 %v148
  %185 = vmatprep.subr.bf16.mxu0 0
  %186 = vmatpush1.bf16.msra.mxu0 %v149
  %187 = vmatprep.subr.bf16.mxu0 0
  %188 = vmatpush1.bf16.msra.mxu0 %v150
  %189 = vmatprep.subr.bf16.mxu0 0
  %190 = vmatpush1.bf16.msra.mxu0 %v151
  %191 = vmatprep.subr.bf16.mxu0 0
  %192 = vmatpush1.bf16.msra.mxu0 %v152
  %193 = vmatprep.subr.bf16.mxu0 0
  %194 = vmatpush1.bf16.msra.mxu0 %v153
  %195 = vmatprep.subr.bf16.mxu0 0
  %196 = vmatpush1.bf16.msra.mxu0 %v154
  %197 = vmatprep.subr.bf16.mxu0 0
  %198 = vmatpush1.bf16.msra.mxu0 %v155
  %199 = vmatprep.subr.bf16.mxu0 0
  %200 = vmatpush1.bf16.msra.mxu0 %v156
  %201 = vmatprep.subr.bf16.mxu0 0
  %202 = vmatpush1.bf16.msra.mxu0 %v157
  %203 = vmatprep.subr.bf16.mxu0 0
  %204 = vmatpush1.bf16.msra.mxu0 %v158
  %205 = vmatprep.subr.bf16.mxu0 0
  %206 = vmatpush1.bf16.msra.mxu0 %v159
  %207 = vmatprep.subr.bf16.mxu0 0
  %208 = vmatpush1.bf16.msra.mxu0 %v160
  %209 = vmatprep.mubr.bf16.mxu0 %v78
  %210 = vmatmul.mubr.bf16.gmra.mrb[0].mxu0 %v77
  %v211 = vpop.f32.mrb[0].mxu0
  %v212 = vadd.f32 %v69, %v211
  %v213 = vpop.f32.mrb[0].mxu0
  %v214 = vpop.f32.mrb[0].mxu0
  %v215 = vadd.f32 %v69, %v214
  %v216 = vpop.f32.mrb[0].mxu0
  %217 = vdwg.mxu0
  %218 = vst [vmem:[%s7] sm:$0xff] %v212
  %219 = vst [vmem:[%s7 + $0x8] sm:$0xff] %v215
  %v220 = vmul.f32 %v212, 0.5
  %v221 = vmul.f32 %v215, 0.5
  %v222 = vmul.f32 %v220, 1.442695
  %v223 = vpow.pop %v222
  %v224 = vmul.f32 %v221, 1.442695
  %v225 = vpow.pop %v224
  %v226 = vld [vmem:[%s1] sm:$0xff]
  %v227 = vld [vmem:[%s1 + $0x8] sm:$0xff]
  %230 = vrot.lane.b32.xlu0 %v223, 120
  %v231 = vpop.permute.xlu0 %230
  %232 = vrot.lane.b32.xlu0 %v225, 120
  %v233 = vpop.permute.xlu0 %232
  %v236 = vmul.f32 %v226, %v231
  %v237 = vmul.f32 %v227, %v233
  %v238 = vadd.f32 %v236, %v212
  %v239 = vadd.f32 %v237, %v215
  %vm240 = vcmask 64512
  %241 = vst.msk [vmem:[%s8] sm:$0xff] %vm240, %v238
  %242 = vst.msk [vmem:[%s8 + $0x8] sm:$0xff] %vm240, %v239
  %v243 = vpack.c.bf16 %v239, %v238
  %v244 = vld [vmem:[%s4] sm:$0xff]
  %v245 = vld [vmem:[%s5] sm:$0x3]
  %247 = vset.pattern.permute.xlu0 16
  %248 = vperm.xlu0 %247, %v212
  %v249 = vpop.permute.xlu0 %248
  %252 = vset.pattern.permute.xlu0 16
  %253 = vperm.xlu0 %252, %v215
  %v254 = vpop.permute.xlu0 %253
  %v257 = vlaneseq
  %v258 = vshrl.u32 %v257, 7
  %v259 = vsub.s32 0, %v258
  %v260 = vrot.slane %v245, %v259
  %v261 = vlaneseq
  %v262 = vshrl.u32 %v261, 7
  %v263 = vsub.s32 1, %v262
  %v264 = vrot.slane %v245, %v263
  %v267 = vmul.f32 %v249, %v260
  %v268 = vmul.f32 %v249, %v264
  %v269 = vmul.f32 %v254, %v260
  %v270 = vmul.f32 %v254, %v264
  %v272 = vunpack.c.l.b16 %v244
  %v273 = vunpack.c.h.b16 %v244
  %v274 = vpack.c.b16 %v272, %v272
  %v275 = vpack.c.b16 %v273, %v273
  %v277 = vsel %vm240, %v243, 0
  %vm279 = vcmask 1043456
  %v281 = vsel %vm279, %v274, 0
  %v284 = vsel %vm279, %v275, 0
  %286 = vmatprep.subr.bf16.mxu0 %v284
  %287 = vmatpush1.bf16.msra.mxu0 %v281
  %288 = vmatprep.subr.bf16.mxu0 0
  %289 = vmatpush1.bf16.msra.mxu0 0
  %290 = vmatprep.subr.bf16.mxu0 0
  %291 = vmatpush1.bf16.msra.mxu0 0
  %292 = vmatprep.subr.bf16.mxu0 0
  %293 = vmatpush1.bf16.msra.mxu0 0
  %294 = vmatprep.subr.bf16.mxu0 0
  %295 = vmatpush1.bf16.msra.mxu0 0
  %296 = vmatprep.subr.bf16.mxu0 0
  %297 = vmatpush1.bf16.msra.mxu0 0
  %298 = vmatprep.subr.bf16.mxu0 0
  %299 = vmatpush1.bf16.msra.mxu0 0
  %300 = vmatprep.subr.bf16.mxu0 0
  %301 = vmatpush1.bf16.msra.mxu0 0
  %302 = vmatprep.subr.bf16.mxu0 0
  %303 = vmatpush1.bf16.msra.mxu0 0
  %304 = vmatprep.subr.bf16.mxu0 0
  %305 = vmatpush1.bf16.msra.mxu0 0
  %306 = vmatprep.subr.bf16.mxu0 0
  %307 = vmatpush1.bf16.msra.mxu0 0
  %308 = vmatprep.subr.bf16.mxu0 0
  %309 = vmatpush1.bf16.msra.mxu0 0
  %310 = vmatprep.subr.bf16.mxu0 0
  %311 = vmatpush1.bf16.msra.mxu0 0
  %312 = vmatprep.subr.bf16.mxu0 0
  %313 = vmatpush1.bf16.msra.mxu0 0
  %314 = vmatprep.subr.bf16.mxu0 0
  %315 = vmatpush1.bf16.msra.mxu0 0
  %316 = vmatprep.subr.bf16.mxu0 0
  %317 = vmatpush1.bf16.msra.mxu0 0
  %318 = vmatprep.mubr.bf16.mxu0 0
  %319 = vmatmul.mubr.bf16.gmra.mrb[0].mxu0 %v277
  %v320 = vpop.f32.mrb[0].mxu0
  %v321 = vadd.f32 %v267, %v320
  %v322 = vpop.f32.mrb[0].mxu0
  %v323 = vadd.f32 %v268, %v322
  %v324 = vpop.f32.mrb[0].mxu0
  %v325 = vadd.f32 %v269, %v324
  %v326 = vpop.f32.mrb[0].mxu0
  %v327 = vadd.f32 %v270, %v326
  %328 = vdwg.mxu0
  %v329 = vld [vmem:[%s6] sm:$0x3]
  %v331 = vlaneseq
  %v332 = vshrl.u32 %v331, 7
  %v333 = vsub.s32 0, %v332
  %v334 = vrot.slane %v329, %v333
  %v335 = vlaneseq
  %v336 = vshrl.u32 %v335, 7
  %v337 = vsub.s32 1, %v336
  %v338 = vrot.slane %v329, %v337
  %v341 = vadd.f32 %v321, %v334
  %v342 = vadd.f32 %v323, %v338
  %v343 = vadd.f32 %v325, %v334
  %v344 = vadd.f32 %v327, %v338
  %v345 = vpack.c.bf16 %v343, %v341
  %v346 = vpack.c.bf16 %v344, %v342
  %v349 = vunpack.c.l.b16 %v345
  %v350 = vunpack.c.l.b16 %v346
  %v351 = vunpack.c.h.b16 %v345
  %v352 = vunpack.c.h.b16 %v346
  %v353 = vpack.c.b16 %v350, %v349
  %v354 = vpack.c.b16 %v352, %v351
  %357 = vst [vmem:[%s9] sm:$0xff] %v353
  %358 = vst [vmem:[%s9 + $0x8] sm:$0xff] %v354
  // Predicated region
  $region30: #{affinity_vae_forward.13} parent=0 // pred_check
    _
  $region31: #{affinity_vae_forward.13} parent=0 // pred_check_branch
    %360 = sbr.rel (0) target = $region33
  $region32: #{affinity_vae_forward.13} parent=0 // pred_region
    _
  $region33: #{affinity_vae_forward.13} parent=0 // pred_fallthru
    _
  // Predicated region
  $region34: #{affinity_vae_forward.13} parent=0 // pred_check
    _
  $region35: #{affinity_vae_forward.13} parent=0 // pred_check_branch
    %362 = sbr.rel (0) target = $region37
  $region36: #{affinity_vae_forward.13} parent=0 // pred_region
    _
  $region37: #{affinity_vae_forward.13} parent=0 // pred_fallthru
    _
  // Predicated region
  $region38: #{affinity_vae_forward.13} parent=0 // pred_check
    _
  $region39: #{affinity_vae_forward.13} parent=0 // pred_check_branch
    %364 = sbr.rel (0) target = $region41
  $region40: #{affinity_vae_forward.13} parent=0 // pred_region
    _
  $region41: #{affinity_vae_forward.13} parent=0 // pred_fallthru
    _
  // Predicated region
  $region42: #{affinity_vae_forward.13} parent=0 // pred_check
    _
  $region43: #{affinity_vae_forward.13} parent=0 // pred_check_branch
    %366 = sbr.rel (0) target = $region45
  $region44: #{affinity_vae_forward.13} parent=0 // pred_region
    _
  $region45: #{affinity_vae_forward.13} parent=0 // pred_fallthru
    _
  // Predicated region
  $region46: #{affinity_vae_forward.13} parent=0 // pred_check
    _
  $region47: #{affinity_vae_forward.13} parent=0 // pred_check_branch
    %368 = sbr.rel (0) target = $region49
  $region48: #{affinity_vae_forward.13} parent=0 // pred_region
    _
  $region49: #{affinity_vae_forward.13} parent=0 // pred_fallthru
    _
  // Predicated region
  $region50: #{affinity_vae_forward.13} parent=0 // pred_check
    _
  $region51: #{affinity_vae_forward.13} parent=0 // pred_check_branch
    %370 = sbr.rel (0) target = $region53
  $region52: #{affinity_vae_forward.13} parent=0 // pred_region
    _
  $region53: #{affinity_vae_forward.13} parent=0 // pred_fallthru
    _

// kernel: affinity_vae_forward.14
$region0: #{affinity_vae_forward.14}
  #allocation0 [shape = 'u32[]', space=smem, size = 0x4, offset = 0x4, fixed_abs, tag = 'smem constant byte address 0x4 - core index']
  #allocation1 [shape = 'u32[144,128]{1,0:T(1,128)}', space=vmem, size = 0x12000, scoped, tag = 'internal scratch']
  %s0 = inlined_call_operand.vmem [shape: bf16[64,576], index: 0, kind: input, shape index: {}]
  %s1 = inlined_call_operand.vmem [shape: bf16[576,128], index: 1, kind: input, shape index: {}]
  %s2 = inlined_call_operand.vmem [shape: f32[1,128], index: 2, kind: input, shape index: {}]
  %s3 = inlined_call_operand.vmem [shape: bf16[64,128], index: 3, kind: output, shape index: {}]
  %s4 = sld [smem:[#allocation0]]
  $region22: #{affinity_vae_forward.14} parent=0
    _
  %s6 = ssub.s32 1, %s4
  %s7 = scalar_select 0, %s6, %s4
  // Predicated region
  $region2: #{affinity_vae_forward.14} parent=0 // pred_check
    _
  $region3: #{affinity_vae_forward.14} parent=0 // pred_check_branch
    %9 = sbr.rel (0) target = $region5
  $region4: #{affinity_vae_forward.14} parent=0 // pred_region
    _
  $region5: #{affinity_vae_forward.14} parent=0 // pred_fallthru
    _
  // Predicated region
  $region6: #{affinity_vae_forward.14} parent=0 // pred_check
    _
  $region7: #{affinity_vae_forward.14} parent=0 // pred_check_branch
    %11 = sbr.rel (0) target = $region9
  $region8: #{affinity_vae_forward.14} parent=0 // pred_region
    _
  $region9: #{affinity_vae_forward.14} parent=0 // pred_fallthru
    _
  // Predicated region
  $region10: #{affinity_vae_forward.14} parent=0 // pred_check
    _
  $region11: #{affinity_vae_forward.14} parent=0 // pred_check_branch
    %13 = sbr.rel (0) target = $region13
  $region12: #{affinity_vae_forward.14} parent=0 // pred_region
    _
  $region13: #{affinity_vae_forward.14} parent=0 // pred_fallthru
    _
  %v15 = vld [vmem:[%s0] sm:$0xff]
  %v16 = vld [vmem:[%s0 + $0x8] sm:$0xff]
  %v17 = vld [vmem:[%s0 + $0x10] sm:$0xf]
  %v18 = vld [vmem:[%s0 + $0x14] sm:$0xff]
  %v19 = vld [vmem:[%s0 + $0x1c] sm:$0xff]
  %v20 = vld [vmem:[%s0 + $0x24] sm:$0xf]
  %v21 = vld [vmem:[%s0 + $0x28] sm:$0xff]
  %v22 = vld [vmem:[%s0 + $0x30] sm:$0xff]
  %v23 = vld [vmem:[%s0 + $0x38] sm:$0xf]
  %v24 = vld [vmem:[%s0 + $0x3c] sm:$0xff]
  %v25 = vld [vmem:[%s0 + $0x44] sm:$0xff]
  %v26 = vld [vmem:[%s0 + $0x4c] sm:$0xf]
  %v27 = vld [vmem:[%s0 + $0x50] sm:$0xff]
  %v28 = vld [vmem:[%s0 + $0x58] sm:$0xff]
  %v29 = vld [vmem:[%s0 + $0x60] sm:$0xf]
  %v30 = vld [vmem:[%s0 + $0x64] sm:$0xff]
  %v31 = vld [vmem:[%s0 + $0x6c] sm:$0xff]
  %v32 = vld [vmem:[%s0 + $0x74] sm:$0xf]
  %v33 = vld [vmem:[%s0 + $0x78] sm:$0xff]
  %v34 = vld [vmem:[%s0 + $0x80] sm:$0xff]
  %v35 = vld [vmem:[%s0 + $0x88] sm:$0xf]
  %v36 = vld [vmem:[%s0 + $0x8c] sm:$0xff]
  %v37 = vld [vmem:[%s0 + $0x94] sm:$0xff]
  %v38 = vld [vmem:[%s0 + $0x9c] sm:$0xf]
  %v39 = vld [vmem:[%s1] sm:$0xf]
  %v40 = vld [vmem:[%s1 + $0x4] sm:$0xf]
  %v41 = vld [vmem:[%s1 + $0x8] sm:$0xf]
  %v42 = vld [vmem:[%s1 + $0xc] sm:$0xf]
  %v43 = vld [vmem:[%s1 + $0x10] sm:$0xf]
  %v44 = vld [vmem:[%s1 + $0x14] sm:$0xf]
  %v45 = vld [vmem:[%s1 + $0x18] sm:$0xf]
  %v46 = vld [vmem:[%s1 + $0x1c] sm:$0xf]
  %v47 = vld [vmem:[%s1 + $0x20] sm:$0xf]
  %v48 = vld [vmem:[%s1 + $0x24] sm:$0xf]
  %v49 = vld [vmem:[%s1 + $0x28] sm:$0xf]
  %v50 = vld [vmem:[%s1 + $0x2c] sm:$0xf]
  %v51 = vld [vmem:[%s1 + $0x30] sm:$0xf]
  %v52 = vld [vmem:[%s1 + $0x34] sm:$0xf]
  %v53 = vld [vmem:[%s1 + $0x38] sm:$0xf]
  %v54 = vld [vmem:[%s1 + $0x3c] sm:$0xf]
  %v55 = vld [vmem:[%s1 + $0x40] sm:$0xf]
  %v56 = vld [vmem:[%s1 + $0x44] sm:$0xf]
  %v57 = vld [vmem:[%s1 + $0x48] sm:$0xf]
  %v58 = vld [vmem:[%s1 + $0x4c] sm:$0xf]
  %v59 = vld [vmem:[%s1 + $0x50] sm:$0xf]
  %v60 = vld [vmem:[%s1 + $0x54] sm:$0xf]
  %v61 = vld [vmem:[%s1 + $0x58] sm:$0xf]
  %v62 = vld [vmem:[%s1 + $0x5c] sm:$0xf]
  %v63 = vld [vmem:[%s1 + $0x60] sm:$0xf]
  %v64 = vld [vmem:[%s1 + $0x64] sm:$0xf]
  %v65 = vld [vmem:[%s1 + $0x68] sm:$0xf]
  %v66 = vld [vmem:[%s1 + $0x6c] sm:$0xf]
  %v67 = vld [vmem:[%s1 + $0x70] sm:$0xf]
  %v68 = vld [vmem:[%s1 + $0x74] sm:$0xf]
  %v69 = vld [vmem:[%s1 + $0x78] sm:$0xf]
  %v70 = vld [vmem:[%s1 + $0x7c] sm:$0xf]
  %v71 = vld [vmem:[%s1 + $0x80] sm:$0xf]
  %v72 = vld [vmem:[%s1 + $0x84] sm:$0xf]
  %v73 = vld [vmem:[%s1 + $0x88] sm:$0xf]
  %v74 = vld [vmem:[%s1 + $0x8c] sm:$0xf]
  %v75 = vld [vmem:[%s1 + $0x90] sm:$0xf]
  %v76 = vld [vmem:[%s1 + $0x94] sm:$0xf]
  %v77 = vld [vmem:[%s1 + $0x98] sm:$0xf]
  %v78 = vld [vmem:[%s1 + $0x9c] sm:$0xf]
  %v79 = vld [vmem:[%s1 + $0xa0] sm:$0xf]
  %v80 = vld [vmem:[%s1 + $0xa4] sm:$0xf]
  %v81 = vld [vmem:[%s1 + $0xa8] sm:$0xf]
  %v82 = vld [vmem:[%s1 + $0xac] sm:$0xf]
  %v83 = vld [vmem:[%s1 + $0xb0] sm:$0xf]
  %v84 = vld [vmem:[%s1 + $0xb4] sm:$0xf]
  %v85 = vld [vmem:[%s1 + $0xb8] sm:$0xf]
  %v86 = vld [vmem:[%s1 + $0xbc] sm:$0xf]
  %v87 = vld [vmem:[%s1 + $0xc0] sm:$0xf]
  %v88 = vld [vmem:[%s1 + $0xc4] sm:$0xf]
  %v89 = vld [vmem:[%s1 + $0xc8] sm:$0xf]
  %v90 = vld [vmem:[%s1 + $0xcc] sm:$0xf]
  %v91 = vld [vmem:[%s1 + $0xd0] sm:$0xf]
  %v92 = vld [vmem:[%s1 + $0xd4] sm:$0xf]
  %v93 = vld [vmem:[%s1 + $0xd8] sm:$0xf]
  %v94 = vld [vmem:[%s1 + $0xdc] sm:$0xf]
  %v95 = vld [vmem:[%s1 + $0xe0] sm:$0xf]
  %v96 = vld [vmem:[%s1 + $0xe4] sm:$0xf]
  %v97 = vld [vmem:[%s1 + $0xe8] sm:$0xf]
  %v98 = vld [vmem:[%s1 + $0xec] sm:$0xf]
  %v99 = vld [vmem:[%s1 + $0xf0] sm:$0xf]
  %v100 = vld [vmem:[%s1 + $0xf4] sm:$0xf]
  %v101 = vld [vmem:[%s1 + $0xf8] sm:$0xf]
  %v102 = vld [vmem:[%s1 + $0xfc] sm:$0xf]
  %v103 = vld [vmem:[%s1 + $0x100] sm:$0xf]
  %v104 = vld [vmem:[%s1 + $0x104] sm:$0xf]
  %v105 = vld [vmem:[%s1 + $0x108] sm:$0xf]
  %v106 = vld [vmem:[%s1 + $0x10c] sm:$0xf]
  %v107 = vld [vmem:[%s1 + $0x110] sm:$0xf]
  %v108 = vld [vmem:[%s1 + $0x114] sm:$0xf]
  %v109 = vld [vmem:[%s1 + $0x118] sm:$0xf]
  %v110 = vld [vmem:[%s1 + $0x11c] sm:$0xf]
  %v111 = vld [vmem:[%s2] sm:$0x1]
  %v113 = vlaneseq
  %v114 = vshrl.u32 %v113, 7
  %v115 = vsub.s32 0, %v114
  %v116 = vrot.slane %v111, %v115
  %v142 = vunpack.c.l.b16 %v15
  %v143 = vunpack.c.h.b16 %v15
  %v144 = vunpack.c.l.b16 %v16
  %v145 = vunpack.c.h.b16 %v16
  %v146 = vunpack.c.l.b16 %v17
  %v147 = vunpack.c.l.b16 %v18
  %v148 = vunpack.c.h.b16 %v18
  %v149 = vunpack.c.l.b16 %v19
  %v150 = vunpack.c.h.b16 %v19
  %v151 = vunpack.c.l.b16 %v20
  %v152 = vunpack.c.l.b16 %v21
  %v153 = vunpack.c.h.b16 %v21
  %v154 = vunpack.c.l.b16 %v22
  %v155 = vunpack.c.h.b16 %v22
  %v156 = vunpack.c.l.b16 %v23
  %v157 = vunpack.c.l.b16 %v24
  %v158 = vunpack.c.h.b16 %v24
  %v159 = vunpack.c.l.b16 %v25
  %v160 = vunpack.c.h.b16 %v25
  %v161 = vunpack.c.l.b16 %v26
  %v162 = vunpack.c.l.b16 %v27
  %v163 = vunpack.c.h.b16 %v27
  %v164 = vunpack.c.l.b16 %v28
  %v165 = vunpack.c.h.b16 %v28
  %v166 = vunpack.c.l.b16 %v29
  %v167 = vunpack.c.l.b16 %v30
  %v168 = vunpack.c.h.b16 %v30
  %v169 = vunpack.c.l.b16 %v31
  %v170 = vunpack.c.h.b16 %v31
  %v171 = vunpack.c.l.b16 %v32
  %v172 = vunpack.c.l.b16 %v33
  %v173 = vunpack.c.h.b16 %v33
  %v174 = vunpack.c.l.b16 %v34
  %v175 = vunpack.c.h.b16 %v34
  %v176 = vunpack.c.l.b16 %v35
  %v177 = vunpack.c.l.b16 %v36
  %v178 = vunpack.c.h.b16 %v36
  %v179 = vunpack.c.l.b16 %v37
  %v180 = vunpack.c.h.b16 %v37
  %v181 = vunpack.c.l.b16 %v38
  %v182 = vpack.c.b16 %v147, %v142
  %v183 = vpack.c.b16 %v148, %v143
  %v184 = vpack.c.b16 %v149, %v144
  %v185 = vpack.c.b16 %v150, %v145
  %v186 = vpack.c.b16 %v151, %v146
  %v187 = vpack.c.b16 %v157, %v152
  %v188 = vpack.c.b16 %v158, %v153
  %v189 = vpack.c.b16 %v159, %v154
  %v190 = vpack.c.b16 %v160, %v155
  %v191 = vpack.c.b16 %v161, %v156
  %v192 = vpack.c.b16 %v167, %v162
  %v193 = vpack.c.b16 %v168, %v163
  %v194 = vpack.c.b16 %v169, %v164
  %v195 = vpack.c.b16 %v170, %v165
  %v196 = vpack.c.b16 %v171, %v166
  %v197 = vpack.c.b16 %v177, %v172
  %v198 = vpack.c.b16 %v178, %v173
  %v199 = vpack.c.b16 %v179, %v174
  %v200 = vpack.c.b16 %v180, %v175
  %v201 = vpack.c.b16 %v181, %v176
  %v290 = vunpack.c.l.b16 %v39
  %v291 = vunpack.c.l.b16 %v40
  %v292 = vunpack.c.l.b16 %v41
  %v293 = vunpack.c.l.b16 %v42
  %v294 = vunpack.c.l.b16 %v43
  %v295 = vunpack.c.l.b16 %v44
  %v296 = vunpack.c.l.b16 %v45
  %v297 = vunpack.c.l.b16 %v46
  %v298 = vunpack.c.l.b16 %v47
  %v299 = vunpack.c.l.b16 %v48
  %v300 = vunpack.c.l.b16 %v49
  %v301 = vunpack.c.l.b16 %v50
  %v302 = vunpack.c.l.b16 %v51
  %v303 = vunpack.c.l.b16 %v52
  %v304 = vunpack.c.l.b16 %v53
  %v305 = vunpack.c.l.b16 %v54
  %v306 = vunpack.c.l.b16 %v55
  %v307 = vunpack.c.l.b16 %v56
  %v308 = vunpack.c.l.b16 %v57
  %v309 = vunpack.c.l.b16 %v58
  %v310 = vunpack.c.l.b16 %v59
  %v311 = vunpack.c.l.b16 %v60
  %v312 = vunpack.c.l.b16 %v61
  %v313 = vunpack.c.l.b16 %v62
  %v314 = vunpack.c.l.b16 %v63
  %v315 = vunpack.c.l.b16 %v64
  %v316 = vunpack.c.l.b16 %v65
  %v317 = vunpack.c.l.b16 %v66
  %v318 = vunpack.c.l.b16 %v67
  %v319 = vunpack.c.l.b16 %v68
  %v320 = vunpack.c.l.b16 %v69
  %v321 = vunpack.c.l.b16 %v70
  %v322 = vunpack.c.l.b16 %v71
  %v323 = vunpack.c.l.b16 %v72
  %v324 = vunpack.c.l.b16 %v73
  %v325 = vunpack.c.l.b16 %v74
  %v326 = vunpack.c.l.b16 %v75
  %v327 = vunpack.c.l.b16 %v76
  %v328 = vunpack.c.l.b16 %v77
  %v329 = vunpack.c.l.b16 %v78
  %v330 = vunpack.c.l.b16 %v79
  %v331 = vunpack.c.l.b16 %v80
  %v332 = vunpack.c.l.b16 %v81
  %v333 = vunpack.c.l.b16 %v82
  %v334 = vunpack.c.l.b16 %v83
  %v335 = vunpack.c.l.b16 %v84
  %v336 = vunpack.c.l.b16 %v85
  %v337 = vunpack.c.l.b16 %v86
  %v338 = vunpack.c.l.b16 %v87
  %v339 = vunpack.c.l.b16 %v88
  %v340 = vunpack.c.l.b16 %v89
  %v341 = vunpack.c.l.b16 %v90
  %v342 = vunpack.c.l.b16 %v91
  %v343 = vunpack.c.l.b16 %v92
  %v344 = vunpack.c.l.b16 %v93
  %v345 = vunpack.c.l.b16 %v94
  %v346 = vunpack.c.l.b16 %v95
  %v347 = vunpack.c.l.b16 %v96
  %v348 = vunpack.c.l.b16 %v97
  %v349 = vunpack.c.l.b16 %v98
  %v350 = vunpack.c.l.b16 %v99
  %v351 = vunpack.c.l.b16 %v100
  %v352 = vunpack.c.l.b16 %v101
  %v353 = vunpack.c.l.b16 %v102
  %v354 = vunpack.c.l.b16 %v103
  %v355 = vunpack.c.l.b16 %v104
  %v356 = vunpack.c.l.b16 %v105
  %v357 = vunpack.c.l.b16 %v106
  %v358 = vunpack.c.l.b16 %v107
  %v359 = vunpack.c.l.b16 %v108
  %v360 = vunpack.c.l.b16 %v109
  %v361 = vunpack.c.l.b16 %v110
  %v362 = vpack.c.b16 %v291, %v290
  %v363 = vpack.c.b16 %v293, %v292
  %v364 = vpack.c.b16 %v295, %v294
  %v365 = vpack.c.b16 %v297, %v296
  %v366 = vpack.c.b16 %v299, %v298
  %v367 = vpack.c.b16 %v301, %v300
  %v368 = vpack.c.b16 %v303, %v302
  %v369 = vpack.c.b16 %v305, %v304
  %v370 = vpack.c.b16 %v307, %v306
  %v371 = vpack.c.b16 %v309, %v308
  %v372 = vpack.c.b16 %v311, %v310
  %v373 = vpack.c.b16 %v313, %v312
  %v374 = vpack.c.b16 %v315, %v314
  %v375 = vpack.c.b16 %v317, %v316
  %v376 = vpack.c.b16 %v319, %v318
  %v377 = vpack.c.b16 %v321, %v320
  %v378 = vpack.c.b16 %v323, %v322
  %v379 = vpack.c.b16 %v325, %v324
  %v380 = vpack.c.b16 %v327, %v326
  %v381 = vpack.c.b16 %v329, %v328
  %v382 = vpack.c.b16 %v331, %v330
  %v383 = vpack.c.b16 %v333, %v332
  %v384 = vpack.c.b16 %v335, %v334
  %v385 = vpack.c.b16 %v337, %v336
  %v386 = vpack.c.b16 %v339, %v338
  %v387 = vpack.c.b16 %v341, %v340
  %v388 = vpack.c.b16 %v343, %v342
  %v389 = vpack.c.b16 %v345, %v344
  %v390 = vpack.c.b16 %v347, %v346
  %v391 = vpack.c.b16 %v349, %v348
  %v392 = vpack.c.b16 %v351, %v350
  %v393 = vpack.c.b16 %v353, %v352
  %v394 = vpack.c.b16 %v355, %v354
  %v395 = vpack.c.b16 %v357, %v356
  %v396 = vpack.c.b16 %v359, %v358
  %v397 = vpack.c.b16 %v361, %v360
  %vm434 = vcmask 523264
  %v436 = vsel %vm434, %v186, 0
  %v439 = vsel %vm434, %v191, 0
  %v442 = vsel %vm434, %v196, 0
  %v445 = vsel %vm434, %v201, 0
  %447 = vmatprep.subr.bf16.mxu0 0
  %448 = vmatpush1.bf16.msra.mxu0 %v362
  %449 = vmatprep.subr.bf16.mxu0 0
  %450 = vmatpush1.bf16.msra.mxu0 %v363
  %451 = vmatprep.subr.bf16.mxu0 0
  %452 = vmatpush1.bf16.msra.mxu0 %v364
  %453 = vmatprep.subr.bf16.mxu0 0
  %454 = vmatpush1.bf16.msra.mxu0 %v365
  %455 = vmatprep.subr.bf16.mxu0 0
  %456 = vmatpush1.bf16.msra.mxu0 %v366
  %457 = vmatprep.subr.bf16.mxu0 0
  %458 = vmatpush1.bf16.msra.mxu0 %v367
  %459 = vmatprep.subr.bf16.mxu0 0
  %460 = vmatpush1.bf16.msra.mxu0 %v368
  %461 = vmatprep.subr.bf16.mxu0 0
  %462 = vmatpush1.bf16.msra.mxu0 %v369
  %463 = vmatprep.subr.bf16.mxu0 0
  %464 = vmatpush1.bf16.msra.mxu0 %v370
  %465 = vmatprep.subr.bf16.mxu0 0
  %466 = vmatpush1.bf16.msra.mxu0 %v371
  %467 = vmatprep.subr.bf16.mxu0 0
  %468 = vmatpush1.bf16.msra.mxu0 %v372
  %469 = vmatprep.subr.bf16.mxu0 0
  %470 = vmatpush1.bf16.msra.mxu0 %v373
  %471 = vmatprep.subr.bf16.mxu0 0
  %472 = vmatpush1.bf16.msra.mxu0 %v374
  %473 = vmatprep.subr.bf16.mxu0 0
  %474 = vmatpush1.bf16.msra.mxu0 %v375
  %475 = vmatprep.subr.bf16.mxu0 0
  %476 = vmatpush1.bf16.msra.mxu0 %v376
  %477 = vmatprep.subr.bf16.mxu0 0
  %478 = vmatpush1.bf16.msra.mxu0 %v377
  %479 = vmatprep.mubr.bf16.mxu0 %v183
  %480 = vmatmul.mubr.bf16.gmra.mrb[0].mxu0 %v182
  %v481 = vpop.f32.mrb[0].mxu0
  %v482 = vadd.f32 %v116, %v481
  %v483 = vpop.f32.mrb[0].mxu0
  %v484 = vpop.f32.mrb[0].mxu0
  %v485 = vadd.f32 %v116, %v484
  %v486 = vpop.f32.mrb[0].mxu0
  %487 = vmatprep.mubr.bf16.mxu0 %v188
  %488 = vmatmul.mubr.bf16.gmra.mrb[0].mxu0 %v187
  %v489 = vpop.f32.mrb[0].mxu0
  %v490 = vadd.f32 %v116, %v489
  %v491 = vpop.f32.mrb[0].mxu0
  %v492 = vpop.f32.mrb[0].mxu0
  %v493 = vadd.f32 %v116, %v492
  %v494 = vpop.f32.mrb[0].mxu0
  %495 = vmatprep.mubr.bf16.mxu0 %v193
  %496 = vmatmul.mubr.bf16.gmra.mrb[0].mxu0 %v192
  %v497 = vpop.f32.mrb[0].mxu0
  %v498 = vadd.f32 %v116, %v497
  %v499 = vpop.f32.mrb[0].mxu0
  %v500 = vpop.f32.mrb[0].mxu0
  %v501 = vadd.f32 %v116, %v500
  %v502 = vpop.f32.mrb[0].mxu0
  %503 = vmatprep.mubr.bf16.mxu0 %v198
  %504 = vmatmul.mubr.bf16.gmra.mrb[0].mxu0 %v197
  %v505 = vpop.f32.mrb[0].mxu0
  %v506 = vadd.f32 %v116, %v505
  %v507 = vpop.f32.mrb[0].mxu0
  %v508 = vpop.f32.mrb[0].mxu0
  %v509 = vadd.f32 %v116, %v508
  %v510 = vpop.f32.mrb[0].mxu0
  %511 = vdwg.mxu0
  %512 = vmatprep.subr.bf16.mxu0 0
  %513 = vmatpush1.bf16.msra.mxu0 %v378
  %514 = vmatprep.subr.bf16.mxu0 0
  %515 = vmatpush1.bf16.msra.mxu0 %v379
  %516 = vmatprep.subr.bf16.mxu0 0
  %517 = vmatpush1.bf16.msra.mxu0 %v380
  %518 = vmatprep.subr.bf16.mxu0 0
  %519 = vmatpush1.bf16.msra.mxu0 %v381
  %520 = vmatprep.subr.bf16.mxu0 0
  %521 = vmatpush1.bf16.msra.mxu0 %v382
  %522 = vmatprep.subr.bf16.mxu0 0
  %523 = vmatpush1.bf16.msra.mxu0 %v383
  %524 = vmatprep.subr.bf16.mxu0 0
  %525 = vmatpush1.bf16.msra.mxu0 %v384
  %526 = vmatprep.subr.bf16.mxu0 0
  %527 = vmatpush1.bf16.msra.mxu0 %v385
  %528 = vmatprep.subr.bf16.mxu0 0
  %529 = vmatpush1.bf16.msra.mxu0 %v386
  %530 = vmatprep.subr.bf16.mxu0 0
  %531 = vmatpush1.bf16.msra.mxu0 %v387
  %532 = vmatprep.subr.bf16.mxu0 0
  %533 = vmatpush1.bf16.msra.mxu0 %v388
  %534 = vmatprep.subr.bf16.mxu0 0
  %535 = vmatpush1.bf16.msra.mxu0 %v389
  %536 = vmatprep.subr.bf16.mxu0 0
  %537 = vmatpush1.bf16.msra.mxu0 %v390
  %538 = vmatprep.subr.bf16.mxu0 0
  %539 = vmatpush1.bf16.msra.mxu0 %v391
  %540 = vmatprep.subr.bf16.mxu0 0
  %541 = vmatpush1.bf16.msra.mxu0 %v392
  %542 = vmatprep.subr.bf16.mxu0 0
  %543 = vmatpush1.bf16.msra.mxu0 %v393
  %544 = vmatprep.mubr.bf16.mxu0 %v185
  %545 = vmatmul.mubr.bf16.gmra.mrb[0].mxu0 %v184
  %v546 = vpop.f32.mrb[0].mxu0
  %v547 = vadd.f32 %v482, %v546
  %v548 = vpop.f32.mrb[0].mxu0
  %v549 = vpop.f32.mrb[0].mxu0
  %v550 = vadd.f32 %v485, %v549
  %v551 = vpop.f32.mrb[0].mxu0
  %552 = vmatprep.mubr.bf16.mxu0 %v190
  %553 = vmatmul.mubr.bf16.gmra.mrb[0].mxu0 %v189
  %v554 = vpop.f32.mrb[0].mxu0
  %v555 = vadd.f32 %v490, %v554
  %v556 = vpop.f32.mrb[0].mxu0
  %v557 = vpop.f32.mrb[0].mxu0
  %v558 = vadd.f32 %v493, %v557
  %v559 = vpop.f32.mrb[0].mxu0
  %560 = vmatprep.mubr.bf16.mxu0 %v195
  %561 = vmatmul.mubr.bf16.gmra.mrb[0].mxu0 %v194
  %v562 = vpop.f32.mrb[0].mxu0
  %v563 = vadd.f32 %v498, %v562
  %v564 = vpop.f32.mrb[0].mxu0
  %v565 = vpop.f32.mrb[0].mxu0
  %v566 = vadd.f32 %v501, %v565
  %v567 = vpop.f32.mrb[0].mxu0
  %568 = vmatprep.mubr.bf16.mxu0 %v200
  %569 = vmatmul.mubr.bf16.gmra.mrb[0].mxu0 %v199
  %v570 = vpop.f32.mrb[0].mxu0
  %v571 = vadd.f32 %v506, %v570
  %v572 = vpop.f32.mrb[0].mxu0
  %v573 = vpop.f32.mrb[0].mxu0
  %v574 = vadd.f32 %v509, %v573
  %v575 = vpop.f32.mrb[0].mxu0
  %576 = vdwg.mxu0
  %577 = vmatprep.subr.bf16.mxu0 0
  %578 = vmatpush1.bf16.msra.mxu0 %v394
  %579 = vmatprep.subr.bf16.mxu0 0
  %580 = vmatpush1.bf16.msra.mxu0 %v395
  %581 = vmatprep.subr.bf16.mxu0 0
  %582 = vmatpush1.bf16.msra.mxu0 %v396
  %583 = vmatprep.subr.bf16.mxu0 0
  %584 = vmatpush1.bf16.msra.mxu0 %v397
  %585 = vmatprep.subr.bf16.mxu0 0
  %586 = vmatpush1.bf16.msra.mxu0 0
  %587 = vmatprep.subr.bf16.mxu0 0
  %588 = vmatpush1.bf16.msra.mxu0 0
  %589 = vmatprep.subr.bf16.mxu0 0
  %590 = vmatpush1.bf16.msra.mxu0 0
  %591 = vmatprep.subr.bf16.mxu0 0
  %592 = vmatpush1.bf16.msra.mxu0 0
  %593 = vmatprep.subr.bf16.mxu0 0
  %594 = vmatpush1.bf16.msra.mxu0 0
  %595 = vmatprep.subr.bf16.mxu0 0
  %596 = vmatpush1.bf16.msra.mxu0 0
  %597 = vmatprep.subr.bf16.mxu0 0
  %598 = vmatpush1.bf16.msra.mxu0 0
  %599 = vmatprep.subr.bf16.mxu0 0
  %600 = vmatpush1.bf16.msra.mxu0 0
  %601 = vmatprep.subr.bf16.mxu0 0
  %602 = vmatpush1.bf16.msra.mxu0 0
  %603 = vmatprep.subr.bf16.mxu0 0
  %604 = vmatpush1.bf16.msra.mxu0 0
  %605 = vmatprep.subr.bf16.mxu0 0
  %606 = vmatpush1.bf16.msra.mxu0 0
  %607 = vmatprep.subr.bf16.mxu0 0
  %608 = vmatpush1.bf16.msra.mxu0 0
  %609 = vmatprep.mubr.bf16.mxu0 0
  %610 = vmatmul.mubr.bf16.gmra.mrb[0].mxu0 %v436
  %v611 = vpop.f32.mrb[0].mxu0
  %v612 = vadd.f32 %v547, %v611
  %v613 = vpop.f32.mrb[0].mxu0
  %v614 = vpop.f32.mrb[0].mxu0
  %v615 = vadd.f32 %v550, %v614
  %v616 = vpop.f32.mrb[0].mxu0
  %617 = vmatprep.mubr.bf16.mxu0 0
  %618 = vmatmul.mubr.bf16.gmra.mrb[0].mxu0 %v439
  %v619 = vpop.f32.mrb[0].mxu0
  %v620 = vadd.f32 %v555, %v619
  %v621 = vpop.f32.mrb[0].mxu0
  %v622 = vpop.f32.mrb[0].mxu0
  %v623 = vadd.f32 %v558, %v622
  %v624 = vpop.f32.mrb[0].mxu0
  %625 = vmatprep.mubr.bf16.mxu0 0
  %626 = vmatmul.mubr.bf16.gmra.mrb[0].mxu0 %v442
  %v627 = vpop.f32.mrb[0].mxu0
  %v628 = vadd.f32 %v563, %v627
  %v629 = vpop.f32.mrb[0].mxu0
  %v630 = vpop.f32.mrb[0].mxu0
  %v631 = vadd.f32 %v566, %v630
  %v632 = vpop.f32.mrb[0].mxu0
  %633 = vmatprep.mubr.bf16.mxu0 0
  %634 = vmatmul.mubr.bf16.gmra.mrb[0].mxu0 %v445
  %v635 = vpop.f32.mrb[0].mxu0
  %v636 = vadd.f32 %v571, %v635
  %v637 = vpop.f32.mrb[0].mxu0
  %v638 = vpop.f32.mrb[0].mxu0
  %v639 = vadd.f32 %v574, %v638
  %v640 = vpop.f32.mrb[0].mxu0
  %641 = vdwg.mxu0
  %v642 = vmax.f32 %v612, 0.0
  %v643 = vmax.f32 %v615, 0.0
  %v644 = vmax.f32 %v620, 0.0
  %v645 = vmax.f32 %v623, 0.0
  %v646 = vmax.f32 %v628, 0.0
  %v647 = vmax.f32 %v631, 0.0
  %v648 = vmax.f32 %v636, 0.0
  %v649 = vmax.f32 %v639, 0.0
  %v650 = vpack.c.bf16 %v643, %v642
  %v651 = vpack.c.bf16 %v645, %v644
  %v652 = vpack.c.bf16 %v647, %v646
  %v653 = vpack.c.bf16 %v649, %v648
  %v658 = vunpack.c.l.b16 %v650
  %v659 = vunpack.c.h.b16 %v650
  %v660 = vunpack.c.l.b16 %v651
  %v661 = vunpack.c.h.b16 %v651
  %v662 = vunpack.c.l.b16 %v652
  %v663 = vunpack.c.h.b16 %v652
  %v664 = vunpack.c.l.b16 %v653
  %v665 = vunpack.c.h.b16 %v653
  %v666 = vpack.c.b16 %v658, %v658
  %v667 = vpack.c.b16 %v659, %v659
  %v668 = vpack.c.b16 %v660, %v660
  %v669 = vpack.c.b16 %v661, %v661
  %v670 = vpack.c.b16 %v662, %v662
  %v671 = vpack.c.b16 %v663, %v663
  %v672 = vpack.c.b16 %v664, %v664
  %v673 = vpack.c.b16 %v665, %v665
  %682 = vst [vmem:[%s3] sm:$0xf] %v666
  %683 = vst [vmem:[%s3 + $0x4] sm:$0xf] %v667
  %684 = vst [vmem:[%s3 + $0x8] sm:$0xf] %v668
  %685 = vst [vmem:[%s3 + $0xc] sm:$0xf] %v669
  %686 = vst [vmem:[%s3 + $0x10] sm:$0xf] %v670
  %687 = vst [vmem:[%s3 + $0x14] sm:$0xf] %v671
  %688 = vst [vmem:[%s3 + $0x18] sm:$0xf] %v672
  %689 = vst [vmem:[%s3 + $0x1c] sm:$0xf] %v673
  // Predicated region
  $region14: #{affinity_vae_forward.14} parent=0 // pred_check
    _
  $region15: #{affinity_vae_forward.14} parent=0 // pred_check_branch
    %691 = sbr.rel (0) target = $region17
  $region16: #{affinity_vae_forward.14} parent=0 // pred_region
    _
  $region17: #{affinity_vae_forward.14} parent=0 // pred_fallthru
    _
  // Predicated region
  $region18: #{affinity_vae_forward.14} parent=0 // pred_check
    _
  $region19: #{affinity_vae_forward.14} parent=0 // pred_check_branch
    %693 = sbr.rel (0) target = $region21
  $region20: #{affinity_vae_forward.14} parent=0 // pred_region
    _
  $region21: #{affinity_vae_forward.14} parent=0 // pred_fallthru
    _

// kernel: affinity_vae_forward.15
$region0: #{affinity_vae_forward.15}
  #allocation0 [shape = 'u32[]', space=smem, size = 0x4, offset = 0x4, fixed_abs, tag = 'smem constant byte address 0x4 - core index']
  #allocation1 [shape = 'u32[144,128]{1,0:T(1,128)}', space=vmem, size = 0x12000, scoped, tag = 'internal scratch']
  %s0 = inlined_call_operand.vmem [shape: bf16[176,288], index: 0, kind: input, shape index: {}]
  %s1 = inlined_call_operand.vmem [shape: bf16[288,128], index: 1, kind: input, shape index: {}]
  %s2 = inlined_call_operand.vmem [shape: f32[1,128], index: 2, kind: input, shape index: {}]
  %s3 = inlined_call_operand.vmem [shape: bf16[176,128], index: 3, kind: output, shape index: {}]
  %s4 = sld [smem:[#allocation0]]
  $region22: #{affinity_vae_forward.15} parent=0
    _
  %s6 = ssub.s32 1, %s4
  %s7 = scalar_select 0, %s6, %s4
  // Predicated region
  $region2: #{affinity_vae_forward.15} parent=0 // pred_check
    _
  $region3: #{affinity_vae_forward.15} parent=0 // pred_check_branch
    %9 = sbr.rel (0) target = $region5
  $region4: #{affinity_vae_forward.15} parent=0 // pred_region
    _
  $region5: #{affinity_vae_forward.15} parent=0 // pred_fallthru
    _
  // Predicated region
  $region6: #{affinity_vae_forward.15} parent=0 // pred_check
    _
  $region7: #{affinity_vae_forward.15} parent=0 // pred_check_branch
    %11 = sbr.rel (0) target = $region9
  $region8: #{affinity_vae_forward.15} parent=0 // pred_region
    _
  $region9: #{affinity_vae_forward.15} parent=0 // pred_fallthru
    _
  // Predicated region
  $region10: #{affinity_vae_forward.15} parent=0 // pred_check
    _
  $region11: #{affinity_vae_forward.15} parent=0 // pred_check_branch
    %13 = sbr.rel (0) target = $region13
  $region12: #{affinity_vae_forward.15} parent=0 // pred_region
    _
  $region13: #{affinity_vae_forward.15} parent=0 // pred_fallthru
    _
  %v15 = vld [vmem:[%s0] sm:$0xff]
  %v16 = vld [vmem:[%s0 + $0x8] sm:$0xf]
  %v17 = vld [vmem:[%s0 + $0xc] sm:$0xff]
  %v18 = vld [vmem:[%s0 + $0x14] sm:$0xf]
  %v19 = vld [vmem:[%s0 + $0x18] sm:$0xff]
  %v20 = vld [vmem:[%s0 + $0x20] sm:$0xf]
  %v21 = vld [vmem:[%s0 + $0x24] sm:$0xff]
  %v22 = vld [vmem:[%s0 + $0x2c] sm:$0xf]
  %v23 = vld [vmem:[%s0 + $0x30] sm:$0xff]
  %v24 = vld [vmem:[%s0 + $0x38] sm:$0xf]
  %v25 = vld [vmem:[%s0 + $0x3c] sm:$0xff]
  %v26 = vld [vmem:[%s0 + $0x44] sm:$0xf]
  %v27 = vld [vmem:[%s0 + $0x48] sm:$0xff]
  %v28 = vld [vmem:[%s0 + $0x50] sm:$0xf]
  %v29 = vld [vmem:[%s0 + $0x54] sm:$0xff]
  %v30 = vld [vmem:[%s0 + $0x5c] sm:$0xf]
  %v31 = vld [vmem:[%s0 + $0x60] sm:$0xff]
  %v32 = vld [vmem:[%s0 + $0x68] sm:$0xf]
  %v33 = vld [vmem:[%s0 + $0x6c] sm:$0xff]
  %v34 = vld [vmem:[%s0 + $0x74] sm:$0xf]
  %v35 = vld [vmem:[%s0 + $0x78] sm:$0xff]
  %v36 = vld [vmem:[%s0 + $0x80] sm:$0xf]
  %v37 = vld [vmem:[%s0 + $0x84] sm:$0xff]
  %v38 = vld [vmem:[%s0 + $0x8c] sm:$0xf]
  %v39 = vld [vmem:[%s0 + $0x90] sm:$0xff]
  %v40 = vld [vmem:[%s0 + $0x98] sm:$0xf]
  %v41 = vld [vmem:[%s0 + $0x9c] sm:$0xff]
  %v42 = vld [vmem:[%s0 + $0xa4] sm:$0xf]
  %v43 = vld [vmem:[%s0 + $0xa8] sm:$0xff]
  %v44 = vld [vmem:[%s0 + $0xb0] sm:$0xf]
  %v45 = vld [vmem:[%s0 + $0xb4] sm:$0xff]
  %v46 = vld [vmem:[%s0 + $0xbc] sm:$0xf]
  %v47 = vld [vmem:[%s0 + $0xc0] sm:$0xff]
  %v48 = vld [vmem:[%s0 + $0xc8] sm:$0xf]
  %v49 = vld [vmem:[%s0 + $0xcc] sm:$0xff]
  %v50 = vld [vmem:[%s0 + $0xd4] sm:$0xf]
  %v51 = vld [vmem:[%s0 + $0xd8] sm:$0xff]
  %v52 = vld [vmem:[%s0 + $0xe0] sm:$0xf]
  %v53 = vld [vmem:[%s0 + $0xe4] sm:$0xff]
  %v54 = vld [vmem:[%s0 + $0xec] sm:$0xf]
  %v55 = vld [vmem:[%s0 + $0xf0] sm:$0xff]
  %v56 = vld [vmem:[%s0 + $0xf8] sm:$0xf]
  %v57 = vld [vmem:[%s0 + $0xfc] sm:$0xff]
  %v58 = vld [vmem:[%s0 + $0x104] sm:$0xf]
  %v59 = vld [vmem:[%s1] sm:$0xf]
  %v60 = vld [vmem:[%s1 + $0x4] sm:$0xf]
  %v61 = vld [vmem:[%s1 + $0x8] sm:$0xf]
  %v62 = vld [vmem:[%s1 + $0xc] sm:$0xf]
  %v63 = vld [vmem:[%s1 + $0x10] sm:$0xf]
  %v64 = vld [vmem:[%s1 + $0x14] sm:$0xf]
  %v65 = vld [vmem:[%s1 + $0x18] sm:$0xf]
  %v66 = vld [vmem:[%s1 + $0x1c] sm:$0xf]
  %v67 = vld [vmem:[%s1 + $0x20] sm:$0xf]
  %v68 = vld [vmem:[%s1 + $0x24] sm:$0xf]
  %v69 = vld [vmem:[%s1 + $0x28] sm:$0xf]
  %v70 = vld [vmem:[%s1 + $0x2c] sm:$0xf]
  %v71 = vld [vmem:[%s1 + $0x30] sm:$0xf]
  %v72 = vld [vmem:[%s1 + $0x34] sm:$0xf]
  %v73 = vld [vmem:[%s1 + $0x38] sm:$0xf]
  %v74 = vld [vmem:[%s1 + $0x3c] sm:$0xf]
  %v75 = vld [vmem:[%s1 + $0x40] sm:$0xf]
  %v76 = vld [vmem:[%s1 + $0x44] sm:$0xf]
  %v77 = vld [vmem:[%s1 + $0x48] sm:$0xf]
  %v78 = vld [vmem:[%s1 + $0x4c] sm:$0xf]
  %v79 = vld [vmem:[%s1 + $0x50] sm:$0xf]
  %v80 = vld [vmem:[%s1 + $0x54] sm:$0xf]
  %v81 = vld [vmem:[%s1 + $0x58] sm:$0xf]
  %v82 = vld [vmem:[%s1 + $0x5c] sm:$0xf]
  %v83 = vld [vmem:[%s1 + $0x60] sm:$0xf]
  %v84 = vld [vmem:[%s1 + $0x64] sm:$0xf]
  %v85 = vld [vmem:[%s1 + $0x68] sm:$0xf]
  %v86 = vld [vmem:[%s1 + $0x6c] sm:$0xf]
  %v87 = vld [vmem:[%s1 + $0x70] sm:$0xf]
  %v88 = vld [vmem:[%s1 + $0x74] sm:$0xf]
  %v89 = vld [vmem:[%s1 + $0x78] sm:$0xf]
  %v90 = vld [vmem:[%s1 + $0x7c] sm:$0xf]
  %v91 = vld [vmem:[%s1 + $0x80] sm:$0xf]
  %v92 = vld [vmem:[%s1 + $0x84] sm:$0xf]
  %v93 = vld [vmem:[%s1 + $0x88] sm:$0xf]
  %v94 = vld [vmem:[%s1 + $0x8c] sm:$0xf]
  %v95 = vld [vmem:[%s2] sm:$0x1]
  %v97 = vlaneseq
  %v98 = vshrl.u32 %v97, 7
  %v99 = vsub.s32 0, %v98
  %v100 = vrot.slane %v95, %v99
  %v146 = vunpack.c.l.b16 %v15
  %v147 = vunpack.c.h.b16 %v15
  %v148 = vunpack.c.l.b16 %v16
  %v149 = vunpack.c.l.b16 %v17
  %v150 = vunpack.c.h.b16 %v17
  %v151 = vunpack.c.l.b16 %v18
  %v152 = vunpack.c.l.b16 %v19
  %v153 = vunpack.c.h.b16 %v19
  %v154 = vunpack.c.l.b16 %v20
  %v155 = vunpack.c.l.b16 %v21
  %v156 = vunpack.c.h.b16 %v21
  %v157 = vunpack.c.l.b16 %v22
  %v158 = vunpack.c.l.b16 %v23
  %v159 = vunpack.c.h.b16 %v23
  %v160 = vunpack.c.l.b16 %v24
  %v161 = vunpack.c.l.b16 %v25
  %v162 = vunpack.c.h.b16 %v25
  %v163 = vunpack.c.l.b16 %v26
  %v164 = vunpack.c.l.b16 %v27
  %v165 = vunpack.c.h.b16 %v27
  %v166 = vunpack.c.l.b16 %v28
  %v167 = vunpack.c.l.b16 %v29
  %v168 = vunpack.c.h.b16 %v29
  %v169 = vunpack.c.l.b16 %v30
  %v170 = vunpack.c.l.b16 %v31
  %v171 = vunpack.c.h.b16 %v31
  %v172 = vunpack.c.l.b16 %v32
  %v173 = vunpack.c.l.b16 %v33
  %v174 = vunpack.c.h.b16 %v33
  %v175 = vunpack.c.l.b16 %v34
  %v176 = vunpack.c.l.b16 %v35
  %v177 = vunpack.c.h.b16 %v35
  %v178 = vunpack.c.l.b16 %v36
  %v179 = vunpack.c.l.b16 %v37
  %v180 = vunpack.c.h.b16 %v37
  %v181 = vunpack.c.l.b16 %v38
  %v182 = vunpack.c.l.b16 %v39
  %v183 = vunpack.c.h.b16 %v39
  %v184 = vunpack.c.l.b16 %v40
  %v185 = vunpack.c.l.b16 %v41
  %v186 = vunpack.c.h.b16 %v41
  %v187 = vunpack.c.l.b16 %v42
  %v188 = vunpack.c.l.b16 %v43
  %v189 = vunpack.c.h.b16 %v43
  %v190 = vunpack.c.l.b16 %v44
  %v191 = vunpack.c.l.b16 %v45
  %v192 = vunpack.c.h.b16 %v45
  %v193 = vunpack.c.l.b16 %v46
  %v194 = vunpack.c.l.b16 %v47
  %v195 = vunpack.c.h.b16 %v47
  %v196 = vunpack.c.l.b16 %v48
  %v197 = vunpack.c.l.b16 %v49
  %v198 = vunpack.c.h.b16 %v49
  %v199 = vunpack.c.l.b16 %v50
  %v200 = vunpack.c.l.b16 %v51
  %v201 = vunpack.c.h.b16 %v51
  %v202 = vunpack.c.l.b16 %v52
  %v203 = vunpack.c.l.b16 %v53
  %v204 = vunpack.c.h.b16 %v53
  %v205 = vunpack.c.l.b16 %v54
  %v206 = vunpack.c.l.b16 %v55
  %v207 = vunpack.c.h.b16 %v55
  %v208 = vunpack.c.l.b16 %v56
  %v209 = vunpack.c.l.b16 %v57
  %v210 = vunpack.c.h.b16 %v57
  %v211 = vunpack.c.l.b16 %v58
  %v212 = vpack.c.b16 %v149, %v146
  %v213 = vpack.c.b16 %v150, %v147
  %v214 = vpack.c.b16 %v151, %v148
  %v215 = vpack.c.b16 %v155, %v152
  %v216 = vpack.c.b16 %v156, %v153
  %v217 = vpack.c.b16 %v157, %v154
  %v218 = vpack.c.b16 %v161, %v158
  %v219 = vpack.c.b16 %v162, %v159
  %v220 = vpack.c.b16 %v163, %v160
  %v221 = vpack.c.b16 %v167, %v164
  %v222 = vpack.c.b16 %v168, %v165
  %v223 = vpack.c.b16 %v169, %v166
  %v224 = vpack.c.b16 %v173, %v170
  %v225 = vpack.c.b16 %v174, %v171
  %v226 = vpack.c.b16 %v175, %v172
  %v227 = vpack.c.b16 %v179, %v176
  %v228 = vpack.c.b16 %v180, %v177
  %v229 = vpack.c.b16 %v181, %v178
  %v230 = vpack.c.b16 %v185, %v182
  %v231 = vpack.c.b16 %v186, %v183
  %v232 = vpack.c.b16 %v187, %v184
  %v233 = vpack.c.b16 %v191, %v188
  %v234 = vpack.c.b16 %v192, %v189
  %v235 = vpack.c.b16 %v193, %v190
  %v236 = vpack.c.b16 %v197, %v194
  %v237 = vpack.c.b16 %v198, %v195
  %v238 = vpack.c.b16 %v199, %v196
  %v239 = vpack.c.b16 %v203, %v200
  %v240 = vpack.c.b16 %v204, %v201
  %v241 = vpack.c.b16 %v205, %v202
  %v242 = vpack.c.b16 %v209, %v206
  %v243 = vpack.c.b16 %v210, %v207
  %v244 = vpack.c.b16 %v211, %v208
  %v303 = vunpack.c.l.b16 %v59
  %v304 = vunpack.c.l.b16 %v60
  %v305 = vunpack.c.l.b16 %v61
  %v306 = vunpack.c.l.b16 %v62
  %v307 = vunpack.c.l.b16 %v63
  %v308 = vunpack.c.l.b16 %v64
  %v309 = vunpack.c.l.b16 %v65
  %v310 = vunpack.c.l.b16 %v66
  %v311 = vunpack.c.l.b16 %v67
  %v312 = vunpack.c.l.b16 %v68
  %v313 = vunpack.c.l.b16 %v69
  %v314 = vunpack.c.l.b16 %v70
  %v315 = vunpack.c.l.b16 %v71
  %v316 = vunpack.c.l.b16 %v72
  %v317 = vunpack.c.l.b16 %v73
  %v318 = vunpack.c.l.b16 %v74
  %v319 = vunpack.c.l.b16 %v75
  %v320 = vunpack.c.l.b16 %v76
  %v321 = vunpack.c.l.b16 %v77
  %v322 = vunpack.c.l.b16 %v78
  %v323 = vunpack.c.l.b16 %v79
  %v324 = vunpack.c.l.b16 %v80
  %v325 = vunpack.c.l.b16 %v81
  %v326 = vunpack.c.l.b16 %v82
  %v327 = vunpack.c.l.b16 %v83
  %v328 = vunpack.c.l.b16 %v84
  %v329 = vunpack.c.l.b16 %v85
  %v330 = vunpack.c.l.b16 %v86
  %v331 = vunpack.c.l.b16 %v87
  %v332 = vunpack.c.l.b16 %v88
  %v333 = vunpack.c.l.b16 %v89
  %v334 = vunpack.c.l.b16 %v90
  %v335 = vunpack.c.l.b16 %v91
  %v336 = vunpack.c.l.b16 %v92
  %v337 = vunpack.c.l.b16 %v93
  %v338 = vunpack.c.l.b16 %v94
  %v339 = vpack.c.b16 %v304, %v303
  %v340 = vpack.c.b16 %v306, %v305
  %v341 = vpack.c.b16 %v308, %v307
  %v342 = vpack.c.b16 %v310, %v309
  %v343 = vpack.c.b16 %v312, %v311
  %v344 = vpack.c.b16 %v314, %v313
  %v345 = vpack.c.b16 %v316, %v315
  %v346 = vpack.c.b16 %v318, %v317
  %v347 = vpack.c.b16 %v320, %v319
  %v348 = vpack.c.b16 %v322, %v321
  %v349 = vpack.c.b16 %v324, %v323
  %v350 = vpack.c.b16 %v326, %v325
  %v351 = vpack.c.b16 %v328, %v327
  %v352 = vpack.c.b16 %v330, %v329
  %v353 = vpack.c.b16 %v332, %v331
  %v354 = vpack.c.b16 %v334, %v333
  %v355 = vpack.c.b16 %v336, %v335
  %v356 = vpack.c.b16 %v338, %v337
  %vm375 = vcmask 261120
  %v377 = vsel %vm375, %v214, 0
  %v380 = vsel %vm375, %v217, 0
  %v383 = vsel %vm375, %v220, 0
  %v386 = vsel %vm375, %v223, 0
  %v389 = vsel %vm375, %v226, 0
  %v392 = vsel %vm375, %v229, 0
  %v395 = vsel %vm375, %v232, 0
  %v398 = vsel %vm375, %v235, 0
  %v401 = vsel %vm375, %v238, 0
  %v404 = vsel %vm375, %v241, 0
  %v407 = vsel %vm375, %v244, 0
  %409 = vmatprep.subr.bf16.mxu0 0
  %410 = vmatpush1.bf16.msra.mxu0 %v339
  %411 = vmatprep.subr.bf16.mxu0 0
  %412 = vmatpush1.bf16.msra.mxu0 %v340
  %413 = vmatprep.subr.bf16.mxu0 0
  %414 = vmatpush1.bf16.msra.mxu0 %v341
  %415 = vmatprep.subr.bf16.mxu0 0
  %416 = vmatpush1.bf16.msra.mxu0 %v342
  %417 = vmatprep.subr.bf16.mxu0 0
  %418 = vmatpush1.bf16.msra.mxu0 %v343
  %419 = vmatprep.subr.bf16.mxu0 0
  %420 = vmatpush1.bf16.msra.mxu0 %v344
  %421 = vmatprep.subr.bf16.mxu0 0
  %422 = vmatpush1.bf16.msra.mxu0 %v345
  %423 = vmatprep.subr.bf16.mxu0 0
  %424 = vmatpush1.bf16.msra.mxu0 %v346
  %425 = vmatprep.subr.bf16.mxu0 0
  %426 = vmatpush1.bf16.msra.mxu0 %v347
  %427 = vmatprep.subr.bf16.mxu0 0
  %428 = vmatpush1.bf16.msra.mxu0 %v348
  %429 = vmatprep.subr.bf16.mxu0 0
  %430 = vmatpush1.bf16.msra.mxu0 %v349
  %431 = vmatprep.subr.bf16.mxu0 0
  %432 = vmatpush1.bf16.msra.mxu0 %v350
  %433 = vmatprep.subr.bf16.mxu0 0
  %434 = vmatpush1.bf16.msra.mxu0 %v351
  %435 = vmatprep.subr.bf16.mxu0 0
  %436 = vmatpush1.bf16.msra.mxu0 %v352
  %437 = vmatprep.subr.bf16.mxu0 0
  %438 = vmatpush1.bf16.msra.mxu0 %v353
  %439 = vmatprep.subr.bf16.mxu0 0
  %440 = vmatpush1.bf16.msra.mxu0 %v354
  %441 = vmatprep.mubr.bf16.mxu0 %v213
  %442 = vmatmul.mubr.bf16.gmra.mrb[0].mxu0 %v212
  %v443 = vpop.f32.mrb[0].mxu0
  %v444 = vadd.f32 %v100, %v443
  %v445 = vpop.f32.mrb[0].mxu0
  %v446 = vpop.f32.mrb[0].mxu0
  %v447 = vadd.f32 %v100, %v446
  %v448 = vpop.f32.mrb[0].mxu0
  %449 = vmatprep.mubr.bf16.mxu0 %v216
  %450 = vmatmul.mubr.bf16.gmra.mrb[0].mxu0 %v215
  %v451 = vpop.f32.mrb[0].mxu0
  %v452 = vadd.f32 %v100, %v451
  %v453 = vpop.f32.mrb[0].mxu0
  %v454 = vpop.f32.mrb[0].mxu0
  %v455 = vadd.f32 %v100, %v454
  %v456 = vpop.f32.mrb[0].mxu0
  %457 = vmatprep.mubr.bf16.mxu0 %v219
  %458 = vmatmul.mubr.bf16.gmra.mrb[0].mxu0 %v218
  %v459 = vpop.f32.mrb[0].mxu0
  %v460 = vadd.f32 %v100, %v459
  %v461 = vpop.f32.mrb[0].mxu0
  %v462 = vpop.f32.mrb[0].mxu0
  %v463 = vadd.f32 %v100, %v462
  %v464 = vpop.f32.mrb[0].mxu0
  %465 = vmatprep.mubr.bf16.mxu0 %v222
  %466 = vmatmul.mubr.bf16.gmra.mrb[0].mxu0 %v221
  %v467 = vpop.f32.mrb[0].mxu0
  %v468 = vadd.f32 %v100, %v467
  %v469 = vpop.f32.mrb[0].mxu0
  %v470 = vpop.f32.mrb[0].mxu0
  %v471 = vadd.f32 %v100, %v470
  %v472 = vpop.f32.mrb[0].mxu0
  %473 = vmatprep.mubr.bf16.mxu0 %v225
  %474 = vmatmul.mubr.bf16.gmra.mrb[0].mxu0 %v224
  %v475 = vpop.f32.mrb[0].mxu0
  %v476 = vadd.f32 %v100, %v475
  %v477 = vpop.f32.mrb[0].mxu0
  %v478 = vpop.f32.mrb[0].mxu0
  %v479 = vadd.f32 %v100, %v478
  %v480 = vpop.f32.mrb[0].mxu0
  %481 = vmatprep.mubr.bf16.mxu0 %v228
  %482 = vmatmul.mubr.bf16.gmra.mrb[0].mxu0 %v227
  %v483 = vpop.f32.mrb[0].mxu0
  %v484 = vadd.f32 %v100, %v483
  %v485 = vpop.f32.mrb[0].mxu0
  %v486 = vpop.f32.mrb[0].mxu0
  %v487 = vadd.f32 %v100, %v486
  %v488 = vpop.f32.mrb[0].mxu0
  %489 = vmatprep.mubr.bf16.mxu0 %v231
  %490 = vmatmul.mubr.bf16.gmra.mrb[0].mxu0 %v230
  %v491 = vpop.f32.mrb[0].mxu0
  %v492 = vadd.f32 %v100, %v491
  %v493 = vpop.f32.mrb[0].mxu0
  %v494 = vpop.f32.mrb[0].mxu0
  %v495 = vadd.f32 %v100, %v494
  %v496 = vpop.f32.mrb[0].mxu0
  %497 = vmatprep.mubr.bf16.mxu0 %v234
  %498 = vmatmul.mubr.bf16.gmra.mrb[0].mxu0 %v233
  %v499 = vpop.f32.mrb[0].mxu0
  %v500 = vadd.f32 %v100, %v499
  %v501 = vpop.f32.mrb[0].mxu0
  %v502 = vpop.f32.mrb[0].mxu0
  %v503 = vadd.f32 %v100, %v502
  %v504 = vpop.f32.mrb[0].mxu0
  %505 = vmatprep.mubr.bf16.mxu0 %v237
  %506 = vmatmul.mubr.bf16.gmra.mrb[0].mxu0 %v236
  %v507 = vpop.f32.mrb[0].mxu0
  %v508 = vadd.f32 %v100, %v507
  %v509 = vpop.f32.mrb[0].mxu0
  %v510 = vpop.f32.mrb[0].mxu0
  %v511 = vadd.f32 %v100, %v510
  %v512 = vpop.f32.mrb[0].mxu0
  %513 = vmatprep.mubr.bf16.mxu0 %v240
  %514 = vmatmul.mubr.bf16.gmra.mrb[0].mxu0 %v239
  %v515 = vpop.f32.mrb[0].mxu0
  %v516 = vadd.f32 %v100, %v515
  %v517 = vpop.f32.mrb[0].mxu0
  %v518 = vpop.f32.mrb[0].mxu0
  %v519 = vadd.f32 %v100, %v518
  %v520 = vpop.f32.mrb[0].mxu0
  %521 = vmatprep.mubr.bf16.mxu0 %v243
  %522 = vmatmul.mubr.bf16.gmra.mrb[0].mxu0 %v242
  %v523 = vpop.f32.mrb[0].mxu0
  %v524 = vadd.f32 %v100, %v523
  %v525 = vpop.f32.mrb[0].mxu0
  %v526 = vpop.f32.mrb[0].mxu0
  %v527 = vadd.f32 %v100, %v526
  %v528 = vpop.f32.mrb[0].mxu0
  %529 = vdwg.mxu0
  %530 = vmatprep.subr.bf16.mxu0 0
  %531 = vmatpush1.bf16.msra.mxu0 %v355
  %532 = vmatprep.subr.bf16.mxu0 0
  %533 = vmatpush1.bf16.msra.mxu0 %v356
  %534 = vmatprep.subr.bf16.mxu0 0
  %535 = vmatpush1.bf16.msra.mxu0 0
  %536 = vmatprep.subr.bf16.mxu0 0
  %537 = vmatpush1.bf16.msra.mxu0 0
  %538 = vmatprep.subr.bf16.mxu0 0
  %539 = vmatpush1.bf16.msra.mxu0 0
  %540 = vmatprep.subr.bf16.mxu0 0
  %541 = vmatpush1.bf16.msra.mxu0 0
  %542 = vmatprep.subr.bf16.mxu0 0
  %543 = vmatpush1.bf16.msra.mxu0 0
  %544 = vmatprep.subr.bf16.mxu0 0
  %545 = vmatpush1.bf16.msra.mxu0 0
  %546 = vmatprep.subr.bf16.mxu0 0
  %547 = vmatpush1.bf16.msra.mxu0 0
  %548 = vmatprep.subr.bf16.mxu0 0
  %549 = vmatpush1.bf16.msra.mxu0 0
  %550 = vmatprep.subr.bf16.mxu0 0
  %551 = vmatpush1.bf16.msra.mxu0 0
  %552 = vmatprep.subr.bf16.mxu0 0
  %553 = vmatpush1.bf16.msra.mxu0 0
  %554 = vmatprep.subr.bf16.mxu0 0
  %555 = vmatpush1.bf16.msra.mxu0 0
  %556 = vmatprep.subr.bf16.mxu0 0
  %557 = vmatpush1.bf16.msra.mxu0 0
  %558 = vmatprep.subr.bf16.mxu0 0
  %559 = vmatpush1.bf16.msra.mxu0 0
  %560 = vmatprep.subr.bf16.mxu0 0
  %561 = vmatpush1.bf16.msra.mxu0 0
  %562 = vmatprep.mubr.bf16.mxu0 0
  %563 = vmatmul.mubr.bf16.gmra.mrb[0].mxu0 %v377
  %v564 = vpop.f32.mrb[0].mxu0
  %v565 = vadd.f32 %v444, %v564
  %v566 = vpop.f32.mrb[0].mxu0
  %v567 = vpop.f32.mrb[0].mxu0
  %v568 = vadd.f32 %v447, %v567
  %v569 = vpop.f32.mrb[0].mxu0
  %570 = vmatprep.mubr.bf16.mxu0 0
  %571 = vmatmul.mubr.bf16.gmra.mrb[0].mxu0 %v380
  %v572 = vpop.f32.mrb[0].mxu0
  %v573 = vadd.f32 %v452, %v572
  %v574 = vpop.f32.mrb[0].mxu0
  %v575 = vpop.f32.mrb[0].mxu0
  %v576 = vadd.f32 %v455, %v575
  %v577 = vpop.f32.mrb[0].mxu0
  %578 = vmatprep.mubr.bf16.mxu0 0
  %579 = vmatmul.mubr.bf16.gmra.mrb[0].mxu0 %v383
  %v580 = vpop.f32.mrb[0].mxu0
  %v581 = vadd.f32 %v460, %v580
  %v582 = vpop.f32.mrb[0].mxu0
  %v583 = vpop.f32.mrb[0].mxu0
  %v584 = vadd.f32 %v463, %v583
  %v585 = vpop.f32.mrb[0].mxu0
  %586 = vmatprep.mubr.bf16.mxu0 0
  %587 = vmatmul.mubr.bf16.gmra.mrb[0].mxu0 %v386
  %v588 = vpop.f32.mrb[0].mxu0
  %v589 = vadd.f32 %v468, %v588
  %v590 = vpop.f32.mrb[0].mxu0
  %v591 = vpop.f32.mrb[0].mxu0
  %v592 = vadd.f32 %v471, %v591
  %v593 = vpop.f32.mrb[0].mxu0
  %594 = vmatprep.mubr.bf16.mxu0 0
  %595 = vmatmul.mubr.bf16.gmra.mrb[0].mxu0 %v389
  %v596 = vpop.f32.mrb[0].mxu0
  %v597 = vadd.f32 %v476, %v596
  %v598 = vpop.f32.mrb[0].mxu0
  %v599 = vpop.f32.mrb[0].mxu0
  %v600 = vadd.f32 %v479, %v599
  %v601 = vpop.f32.mrb[0].mxu0
  %602 = vmatprep.mubr.bf16.mxu0 0
  %603 = vmatmul.mubr.bf16.gmra.mrb[0].mxu0 %v392
  %v604 = vpop.f32.mrb[0].mxu0
  %v605 = vadd.f32 %v484, %v604
  %v606 = vpop.f32.mrb[0].mxu0
  %v607 = vpop.f32.mrb[0].mxu0
  %v608 = vadd.f32 %v487, %v607
  %v609 = vpop.f32.mrb[0].mxu0
  %610 = vmatprep.mubr.bf16.mxu0 0
  %611 = vmatmul.mubr.bf16.gmra.mrb[0].mxu0 %v395
  %v612 = vpop.f32.mrb[0].mxu0
  %v613 = vadd.f32 %v492, %v612
  %v614 = vpop.f32.mrb[0].mxu0
  %v615 = vpop.f32.mrb[0].mxu0
  %v616 = vadd.f32 %v495, %v615
  %v617 = vpop.f32.mrb[0].mxu0
  %618 = vmatprep.mubr.bf16.mxu0 0
  %619 = vmatmul.mubr.bf16.gmra.mrb[0].mxu0 %v398
  %v620 = vpop.f32.mrb[0].mxu0
  %v621 = vadd.f32 %v500, %v620
  %v622 = vpop.f32.mrb[0].mxu0
  %v623 = vpop.f32.mrb[0].mxu0
  %v624 = vadd.f32 %v503, %v623
  %v625 = vpop.f32.mrb[0].mxu0
  %626 = vmatprep.mubr.bf16.mxu0 0
  %627 = vmatmul.mubr.bf16.gmra.mrb[0].mxu0 %v401
  %v628 = vpop.f32.mrb[0].mxu0
  %v629 = vadd.f32 %v508, %v628
  %v630 = vpop.f32.mrb[0].mxu0
  %v631 = vpop.f32.mrb[0].mxu0
  %v632 = vadd.f32 %v511, %v631
  %v633 = vpop.f32.mrb[0].mxu0
  %634 = vmatprep.mubr.bf16.mxu0 0
  %635 = vmatmul.mubr.bf16.gmra.mrb[0].mxu0 %v404
  %v636 = vpop.f32.mrb[0].mxu0
  %v637 = vadd.f32 %v516, %v636
  %v638 = vpop.f32.mrb[0].mxu0
  %v639 = vpop.f32.mrb[0].mxu0
  %v640 = vadd.f32 %v519, %v639
  %v641 = vpop.f32.mrb[0].mxu0
  %642 = vmatprep.mubr.bf16.mxu0 0
  %643 = vmatmul.mubr.bf16.gmra.mrb[0].mxu0 %v407
  %v644 = vpop.f32.mrb[0].mxu0
  %v645 = vadd.f32 %v524, %v644
  %v646 = vpop.f32.mrb[0].mxu0
  %v647 = vpop.f32.mrb[0].mxu0
  %v648 = vadd.f32 %v527, %v647
  %v649 = vpop.f32.mrb[0].mxu0
  %650 = vdwg.mxu0
  %v651 = vmax.f32 %v565, 0.0
  %v652 = vmax.f32 %v568, 0.0
  %v653 = vmax.f32 %v573, 0.0
  %v654 = vmax.f32 %v576, 0.0
  %v655 = vmax.f32 %v581, 0.0
  %v656 = vmax.f32 %v584, 0.0
  %v657 = vmax.f32 %v589, 0.0
  %v658 = vmax.f32 %v592, 0.0
  %v659 = vmax.f32 %v597, 0.0
  %v660 = vmax.f32 %v600, 0.0
  %v661 = vmax.f32 %v605, 0.0
  %v662 = vmax.f32 %v608, 0.0
  %v663 = vmax.f32 %v613, 0.0
  %v664 = vmax.f32 %v616, 0.0
  %v665 = vmax.f32 %v621, 0.0
  %v666 = vmax.f32 %v624, 0.0
  %v667 = vmax.f32 %v629, 0.0
  %v668 = vmax.f32 %v632, 0.0
  %v669 = vmax.f32 %v637, 0.0
  %v670 = vmax.f32 %v640, 0.0
  %v671 = vmax.f32 %v645, 0.0
  %v672 = vmax.f32 %v648, 0.0
  %v673 = vpack.c.bf16 %v652, %v651
  %v674 = vpack.c.bf16 %v654, %v653
  %v675 = vpack.c.bf16 %v656, %v655
  %v676 = vpack.c.bf16 %v658, %v657
  %v677 = vpack.c.bf16 %v660, %v659
  %v678 = vpack.c.bf16 %v662, %v661
  %v679 = vpack.c.bf16 %v664, %v663
  %v680 = vpack.c.bf16 %v666, %v665
  %v681 = vpack.c.bf16 %v668, %v667
  %v682 = vpack.c.bf16 %v670, %v669
  %v683 = vpack.c.bf16 %v672, %v671
  %v695 = vunpack.c.l.b16 %v673
  %v696 = vunpack.c.h.b16 %v673
  %v697 = vunpack.c.l.b16 %v674
  %v698 = vunpack.c.h.b16 %v674
  %v699 = vunpack.c.l.b16 %v675
  %v700 = vunpack.c.h.b16 %v675
  %v701 = vunpack.c.l.b16 %v676
  %v702 = vunpack.c.h.b16 %v676
  %v703 = vunpack.c.l.b16 %v677
  %v704 = vunpack.c.h.b16 %v677
  %v705 = vunpack.c.l.b16 %v678
  %v706 = vunpack.c.h.b16 %v678
  %v707 = vunpack.c.l.b16 %v679
  %v708 = vunpack.c.h.b16 %v679
  %v709 = vunpack.c.l.b16 %v680
  %v710 = vunpack.c.h.b16 %v680
  %v711 = vunpack.c.l.b16 %v681
  %v712 = vunpack.c.h.b16 %v681
  %v713 = vunpack.c.l.b16 %v682
  %v714 = vunpack.c.h.b16 %v682
  %v715 = vunpack.c.l.b16 %v683
  %v716 = vunpack.c.h.b16 %v683
  %v717 = vpack.c.b16 %v695, %v695
  %v718 = vpack.c.b16 %v696, %v696
  %v719 = vpack.c.b16 %v697, %v697
  %v720 = vpack.c.b16 %v698, %v698
  %v721 = vpack.c.b16 %v699, %v699
  %v722 = vpack.c.b16 %v700, %v700
  %v723 = vpack.c.b16 %v701, %v701
  %v724 = vpack.c.b16 %v702, %v702
  %v725 = vpack.c.b16 %v703, %v703
  %v726 = vpack.c.b16 %v704, %v704
  %v727 = vpack.c.b16 %v705, %v705
  %v728 = vpack.c.b16 %v706, %v706
  %v729 = vpack.c.b16 %v707, %v707
  %v730 = vpack.c.b16 %v708, %v708
  %v731 = vpack.c.b16 %v709, %v709
  %v732 = vpack.c.b16 %v710, %v710
  %v733 = vpack.c.b16 %v711, %v711
  %v734 = vpack.c.b16 %v712, %v712
  %v735 = vpack.c.b16 %v713, %v713
  %v736 = vpack.c.b16 %v714, %v714
  %v737 = vpack.c.b16 %v715, %v715
  %v738 = vpack.c.b16 %v716, %v716
  %761 = vst [vmem:[%s3] sm:$0xf] %v717
  %762 = vst [vmem:[%s3 + $0x4] sm:$0xf] %v718
  %763 = vst [vmem:[%s3 + $0x8] sm:$0xf] %v719
  %764 = vst [vmem:[%s3 + $0xc] sm:$0xf] %v720
  %765 = vst [vmem:[%s3 + $0x10] sm:$0xf] %v721
  %766 = vst [vmem:[%s3 + $0x14] sm:$0xf] %v722
  %767 = vst [vmem:[%s3 + $0x18] sm:$0xf] %v723
  %768 = vst [vmem:[%s3 + $0x1c] sm:$0xf] %v724
  %769 = vst [vmem:[%s3 + $0x20] sm:$0xf] %v725
  %770 = vst [vmem:[%s3 + $0x24] sm:$0xf] %v726
  %771 = vst [vmem:[%s3 + $0x28] sm:$0xf] %v727
  %772 = vst [vmem:[%s3 + $0x2c] sm:$0xf] %v728
  %773 = vst [vmem:[%s3 + $0x30] sm:$0xf] %v729
  %774 = vst [vmem:[%s3 + $0x34] sm:$0xf] %v730
  %775 = vst [vmem:[%s3 + $0x38] sm:$0xf] %v731
  %776 = vst [vmem:[%s3 + $0x3c] sm:$0xf] %v732
  %777 = vst [vmem:[%s3 + $0x40] sm:$0xf] %v733
  %778 = vst [vmem:[%s3 + $0x44] sm:$0xf] %v734
  %779 = vst [vmem:[%s3 + $0x48] sm:$0xf] %v735
  %780 = vst [vmem:[%s3 + $0x4c] sm:$0xf] %v736
  %781 = vst [vmem:[%s3 + $0x50] sm:$0xf] %v737
  %782 = vst [vmem:[%s3 + $0x54] sm:$0xf] %v738
  // Predicated region
  $region14: #{affinity_vae_forward.15} parent=0 // pred_check
    _
  $region15: #{affinity_vae_forward.15} parent=0 // pred_check_branch
    %784 = sbr.rel (0) target = $region17
  $region16: #{affinity_vae_forward.15} parent=0 // pred_region
    _
  $region17: #{affinity_vae_forward.15} parent=0 // pred_fallthru
    _
  // Predicated region
  $region18: #{affinity_vae_forward.15} parent=0 // pred_check
    _
  $region19: #{affinity_vae_forward.15} parent=0 // pred_check_branch
    %786 = sbr.rel (0) target = $region21
  $region20: #{affinity_vae_forward.15} parent=0 // pred_region
    _
  $region21: #{affinity_vae_forward.15} parent=0 // pred_fallthru
    _

// kernel: affinity_vae_forward.16
$region0: #{affinity_vae_forward.16}
  #allocation0 [shape = 'u32[]', space=smem, size = 0x4, offset = 0x4, fixed_abs, tag = 'smem constant byte address 0x4 - core index']
  #allocation1 [shape = 'u32[144,128]{1,0:T(1,128)}', space=vmem, size = 0x12000, scoped, tag = 'internal scratch']
  %s0 = inlined_call_operand.vmem [shape: bf16[592,144], index: 0, kind: input, shape index: {}]
  %s1 = inlined_call_operand.vmem [shape: bf16[144,128], index: 1, kind: input, shape index: {}]
  %s2 = inlined_call_operand.vmem [shape: f32[1,128], index: 2, kind: input, shape index: {}]
  %s3 = inlined_call_operand.vmem [shape: bf16[592,128], index: 3, kind: output, shape index: {}]
  %s4 = sld [smem:[#allocation0]]
  $region22: #{affinity_vae_forward.16} parent=0
    _
  %s6 = ssub.s32 1, %s4
  %s7 = scalar_select 0, %s6, %s4
  // Predicated region
  $region2: #{affinity_vae_forward.16} parent=0 // pred_check
    _
  $region3: #{affinity_vae_forward.16} parent=0 // pred_check_branch
    %9 = sbr.rel (0) target = $region5
  $region4: #{affinity_vae_forward.16} parent=0 // pred_region
    _
  $region5: #{affinity_vae_forward.16} parent=0 // pred_fallthru
    _
  // Predicated region
  $region6: #{affinity_vae_forward.16} parent=0 // pred_check
    _
  $region7: #{affinity_vae_forward.16} parent=0 // pred_check_branch
    %11 = sbr.rel (0) target = $region9
  $region8: #{affinity_vae_forward.16} parent=0 // pred_region
    _
  $region9: #{affinity_vae_forward.16} parent=0 // pred_fallthru
    _
  // Predicated region
  $region10: #{affinity_vae_forward.16} parent=0 // pred_check
    _
  $region11: #{affinity_vae_forward.16} parent=0 // pred_check_branch
    %13 = sbr.rel (0) target = $region13
  $region12: #{affinity_vae_forward.16} parent=0 // pred_region
    _
  $region13: #{affinity_vae_forward.16} parent=0 // pred_fallthru
    _
  %v15 = vld [vmem:[%s0] sm:$0xff]
  %v16 = vld [vmem:[%s0 + $0x8] sm:$0xff]
  %v17 = vld [vmem:[%s0 + $0x10] sm:$0xff]
  %v18 = vld [vmem:[%s0 + $0x18] sm:$0xff]
  %v19 = vld [vmem:[%s0 + $0x20] sm:$0xff]
  %v20 = vld [vmem:[%s0 + $0x28] sm:$0xff]
  %v21 = vld [vmem:[%s0 + $0x30] sm:$0xff]
  %v22 = vld [vmem:[%s0 + $0x38] sm:$0xff]
  %v23 = vld [vmem:[%s0 + $0x40] sm:$0xff]
  %v24 = vld [vmem:[%s0 + $0x48] sm:$0xff]
  %v25 = vld [vmem:[%s0 + $0x50] sm:$0xff]
  %v26 = vld [vmem:[%s0 + $0x58] sm:$0xff]
  %v27 = vld [vmem:[%s0 + $0x60] sm:$0xff]
  %v28 = vld [vmem:[%s0 + $0x68] sm:$0xff]
  %v29 = vld [vmem:[%s0 + $0x70] sm:$0xff]
  %v30 = vld [vmem:[%s0 + $0x78] sm:$0xff]
  %v31 = vld [vmem:[%s0 + $0x80] sm:$0xff]
  %v32 = vld [vmem:[%s0 + $0x88] sm:$0xff]
  %v33 = vld [vmem:[%s0 + $0x90] sm:$0xff]
  %v34 = vld [vmem:[%s0 + $0x98] sm:$0xff]
  %v35 = vld [vmem:[%s0 + $0xa0] sm:$0xff]
  %v36 = vld [vmem:[%s0 + $0xa8] sm:$0xff]
  %v37 = vld [vmem:[%s0 + $0xb0] sm:$0xff]
  %v38 = vld [vmem:[%s0 + $0xb8] sm:$0xff]
  %v39 = vld [vmem:[%s0 + $0xc0] sm:$0xff]
  %v40 = vld [vmem:[%s0 + $0xc8] sm:$0xff]
  %v41 = vld [vmem:[%s0 + $0xd0] sm:$0xff]
  %v42 = vld [vmem:[%s0 + $0xd8] sm:$0xff]
  %v43 = vld [vmem:[%s0 + $0xe0] sm:$0xff]
  %v44 = vld [vmem:[%s0 + $0xe8] sm:$0xff]
  %v45 = vld [vmem:[%s0 + $0xf0] sm:$0xff]
  %v46 = vld [vmem:[%s0 + $0xf8] sm:$0xff]
  %v47 = vld [vmem:[%s0 + $0x100] sm:$0xff]
  %v48 = vld [vmem:[%s0 + $0x108] sm:$0xff]
  %v49 = vld [vmem:[%s0 + $0x110] sm:$0xff]
  %v50 = vld [vmem:[%s0 + $0x118] sm:$0xff]
  %v51 = vld [vmem:[%s0 + $0x120] sm:$0xff]
  %v52 = vld [vmem:[%s0 + $0x128] sm:$0xff]
  %v53 = vld [vmem:[%s0 + $0x130] sm:$0xff]
  %v54 = vld [vmem:[%s0 + $0x138] sm:$0xff]
  %v55 = vld [vmem:[%s0 + $0x140] sm:$0xff]
  %v56 = vld [vmem:[%s0 + $0x148] sm:$0xff]
  %v57 = vld [vmem:[%s0 + $0x150] sm:$0xff]
  %v58 = vld [vmem:[%s0 + $0x158] sm:$0xff]
  %v59 = vld [vmem:[%s0 + $0x160] sm:$0xff]
  %v60 = vld [vmem:[%s0 + $0x168] sm:$0xff]
  %v61 = vld [vmem:[%s0 + $0x170] sm:$0xff]
  %v62 = vld [vmem:[%s0 + $0x178] sm:$0xff]
  %v63 = vld [vmem:[%s0 + $0x180] sm:$0xff]
  %v64 = vld [vmem:[%s0 + $0x188] sm:$0xff]
  %v65 = vld [vmem:[%s0 + $0x190] sm:$0xff]
  %v66 = vld [vmem:[%s0 + $0x198] sm:$0xff]
  %v67 = vld [vmem:[%s0 + $0x1a0] sm:$0xff]
  %v68 = vld [vmem:[%s0 + $0x1a8] sm:$0xff]
  %v69 = vld [vmem:[%s0 + $0x1b0] sm:$0xff]
  %v70 = vld [vmem:[%s0 + $0x1b8] sm:$0xff]
  %v71 = vld [vmem:[%s0 + $0x1c0] sm:$0xff]
  %v72 = vld [vmem:[%s0 + $0x1c8] sm:$0xff]
  %v73 = vld [vmem:[%s0 + $0x1d0] sm:$0xff]
  %v74 = vld [vmem:[%s0 + $0x1d8] sm:$0xff]
  %v75 = vld [vmem:[%s0 + $0x1e0] sm:$0xff]
  %v76 = vld [vmem:[%s0 + $0x1e8] sm:$0xff]
  %v77 = vld [vmem:[%s0 + $0x1f0] sm:$0xff]
  %v78 = vld [vmem:[%s0 + $0x1f8] sm:$0xff]
  %v79 = vld [vmem:[%s0 + $0x200] sm:$0xff]
  %v80 = vld [vmem:[%s0 + $0x208] sm:$0xff]
  %v81 = vld [vmem:[%s0 + $0x210] sm:$0xff]
  %v82 = vld [vmem:[%s0 + $0x218] sm:$0xff]
  %v83 = vld [vmem:[%s0 + $0x220] sm:$0xff]
  %v84 = vld [vmem:[%s0 + $0x228] sm:$0xff]
  %v85 = vld [vmem:[%s0 + $0x230] sm:$0xff]
  %v86 = vld [vmem:[%s0 + $0x238] sm:$0xff]
  %v87 = vld [vmem:[%s0 + $0x240] sm:$0xff]
  %v88 = vld [vmem:[%s0 + $0x248] sm:$0xff]
  %v89 = vld [vmem:[%s1] sm:$0xf]
  %v90 = vld [vmem:[%s1 + $0x4] sm:$0xf]
  %v91 = vld [vmem:[%s1 + $0x8] sm:$0xf]
  %v92 = vld [vmem:[%s1 + $0xc] sm:$0xf]
  %v93 = vld [vmem:[%s1 + $0x10] sm:$0xf]
  %v94 = vld [vmem:[%s1 + $0x14] sm:$0xf]
  %v95 = vld [vmem:[%s1 + $0x18] sm:$0xf]
  %v96 = vld [vmem:[%s1 + $0x1c] sm:$0xf]
  %v97 = vld [vmem:[%s1 + $0x20] sm:$0xf]
  %v98 = vld [vmem:[%s1 + $0x24] sm:$0xf]
  %v99 = vld [vmem:[%s1 + $0x28] sm:$0xf]
  %v100 = vld [vmem:[%s1 + $0x2c] sm:$0xf]
  %v101 = vld [vmem:[%s1 + $0x30] sm:$0xf]
  %v102 = vld [vmem:[%s1 + $0x34] sm:$0xf]
  %v103 = vld [vmem:[%s1 + $0x38] sm:$0xf]
  %v104 = vld [vmem:[%s1 + $0x3c] sm:$0xf]
  %v105 = vld [vmem:[%s1 + $0x40] sm:$0xf]
  %v106 = vld [vmem:[%s1 + $0x44] sm:$0xf]
  %v107 = vld [vmem:[%s2] sm:$0x1]
  %v109 = vlaneseq
  %v110 = vshrl.u32 %v109, 7
  %v111 = vsub.s32 0, %v110
  %v112 = vrot.slane %v107, %v111
  %v188 = vunpack.c.l.b16 %v15
  %v189 = vunpack.c.h.b16 %v15
  %v190 = vunpack.c.l.b16 %v16
  %v191 = vunpack.c.h.b16 %v16
  %v192 = vunpack.c.l.b16 %v17
  %v193 = vunpack.c.h.b16 %v17
  %v194 = vunpack.c.l.b16 %v18
  %v195 = vunpack.c.h.b16 %v18
  %v196 = vunpack.c.l.b16 %v19
  %v197 = vunpack.c.h.b16 %v19
  %v198 = vunpack.c.l.b16 %v20
  %v199 = vunpack.c.h.b16 %v20
  %v200 = vunpack.c.l.b16 %v21
  %v201 = vunpack.c.h.b16 %v21
  %v202 = vunpack.c.l.b16 %v22
  %v203 = vunpack.c.h.b16 %v22
  %v204 = vunpack.c.l.b16 %v23
  %v205 = vunpack.c.h.b16 %v23
  %v206 = vunpack.c.l.b16 %v24
  %v207 = vunpack.c.h.b16 %v24
  %v208 = vunpack.c.l.b16 %v25
  %v209 = vunpack.c.h.b16 %v25
  %v210 = vunpack.c.l.b16 %v26
  %v211 = vunpack.c.h.b16 %v26
  %v212 = vunpack.c.l.b16 %v27
  %v213 = vunpack.c.h.b16 %v27
  %v214 = vunpack.c.l.b16 %v28
  %v215 = vunpack.c.h.b16 %v28
  %v216 = vunpack.c.l.b16 %v29
  %v217 = vunpack.c.h.b16 %v29
  %v218 = vunpack.c.l.b16 %v30
  %v219 = vunpack.c.h.b16 %v30
  %v220 = vunpack.c.l.b16 %v31
  %v221 = vunpack.c.h.b16 %v31
  %v222 = vunpack.c.l.b16 %v32
  %v223 = vunpack.c.h.b16 %v32
  %v224 = vunpack.c.l.b16 %v33
  %v225 = vunpack.c.h.b16 %v33
  %v226 = vunpack.c.l.b16 %v34
  %v227 = vunpack.c.h.b16 %v34
  %v228 = vunpack.c.l.b16 %v35
  %v229 = vunpack.c.h.b16 %v35
  %v230 = vunpack.c.l.b16 %v36
  %v231 = vunpack.c.h.b16 %v36
  %v232 = vunpack.c.l.b16 %v37
  %v233 = vunpack.c.h.b16 %v37
  %v234 = vunpack.c.l.b16 %v38
  %v235 = vunpack.c.h.b16 %v38
  %v236 = vunpack.c.l.b16 %v39
  %v237 = vunpack.c.h.b16 %v39
  %v238 = vunpack.c.l.b16 %v40
  %v239 = vunpack.c.h.b16 %v40
  %v240 = vunpack.c.l.b16 %v41
  %v241 = vunpack.c.h.b16 %v41
  %v242 = vunpack.c.l.b16 %v42
  %v243 = vunpack.c.h.b16 %v42
  %v244 = vunpack.c.l.b16 %v43
  %v245 = vunpack.c.h.b16 %v43
  %v246 = vunpack.c.l.b16 %v44
  %v247 = vunpack.c.h.b16 %v44
  %v248 = vunpack.c.l.b16 %v45
  %v249 = vunpack.c.h.b16 %v45
  %v250 = vunpack.c.l.b16 %v46
  %v251 = vunpack.c.h.b16 %v46
  %v252 = vunpack.c.l.b16 %v47
  %v253 = vunpack.c.h.b16 %v47
  %v254 = vunpack.c.l.b16 %v48
  %v255 = vunpack.c.h.b16 %v48
  %v256 = vunpack.c.l.b16 %v49
  %v257 = vunpack.c.h.b16 %v49
  %v258 = vunpack.c.l.b16 %v50
  %v259 = vunpack.c.h.b16 %v50
  %v260 = vunpack.c.l.b16 %v51
  %v261 = vunpack.c.h.b16 %v51
  %v262 = vunpack.c.l.b16 %v52
  %v263 = vunpack.c.h.b16 %v52
  %v264 = vunpack.c.l.b16 %v53
  %v265 = vunpack.c.h.b16 %v53
  %v266 = vunpack.c.l.b16 %v54
  %v267 = vunpack.c.h.b16 %v54
  %v268 = vunpack.c.l.b16 %v55
  %v269 = vunpack.c.h.b16 %v55
  %v270 = vunpack.c.l.b16 %v56
  %v271 = vunpack.c.h.b16 %v56
  %v272 = vunpack.c.l.b16 %v57
  %v273 = vunpack.c.h.b16 %v57
  %v274 = vunpack.c.l.b16 %v58
  %v275 = vunpack.c.h.b16 %v58
  %v276 = vunpack.c.l.b16 %v59
  %v277 = vunpack.c.h.b16 %v59
  %v278 = vunpack.c.l.b16 %v60
  %v279 = vunpack.c.h.b16 %v60
  %v280 = vunpack.c.l.b16 %v61
  %v281 = vunpack.c.h.b16 %v61
  %v282 = vunpack.c.l.b16 %v62
  %v283 = vunpack.c.h.b16 %v62
  %v284 = vunpack.c.l.b16 %v63
  %v285 = vunpack.c.h.b16 %v63
  %v286 = vunpack.c.l.b16 %v64
  %v287 = vunpack.c.h.b16 %v64
  %v288 = vunpack.c.l.b16 %v65
  %v289 = vunpack.c.h.b16 %v65
  %v290 = vunpack.c.l.b16 %v66
  %v291 = vunpack.c.h.b16 %v66
  %v292 = vunpack.c.l.b16 %v67
  %v293 = vunpack.c.h.b16 %v67
  %v294 = vunpack.c.l.b16 %v68
  %v295 = vunpack.c.h.b16 %v68
  %v296 = vunpack.c.l.b16 %v69
  %v297 = vunpack.c.h.b16 %v69
  %v298 = vunpack.c.l.b16 %v70
  %v299 = vunpack.c.h.b16 %v70
  %v300 = vunpack.c.l.b16 %v71
  %v301 = vunpack.c.h.b16 %v71
  %v302 = vunpack.c.l.b16 %v72
  %v303 = vunpack.c.h.b16 %v72
  %v304 = vunpack.c.l.b16 %v73
  %v305 = vunpack.c.h.b16 %v73
  %v306 = vunpack.c.l.b16 %v74
  %v307 = vunpack.c.h.b16 %v74
  %v308 = vunpack.c.l.b16 %v75
  %v309 = vunpack.c.h.b16 %v75
  %v310 = vunpack.c.l.b16 %v76
  %v311 = vunpack.c.h.b16 %v76
  %v312 = vunpack.c.l.b16 %v77
  %v313 = vunpack.c.h.b16 %v77
  %v314 = vunpack.c.l.b16 %v78
  %v315 = vunpack.c.h.b16 %v78
  %v316 = vunpack.c.l.b16 %v79
  %v317 = vunpack.c.h.b16 %v79
  %v318 = vunpack.c.l.b16 %v80
  %v319 = vunpack.c.h.b16 %v80
  %v320 = vunpack.c.l.b16 %v81
  %v321 = vunpack.c.h.b16 %v81
  %v322 = vunpack.c.l.b16 %v82
  %v323 = vunpack.c.h.b16 %v82
  %v324 = vunpack.c.l.b16 %v83
  %v325 = vunpack.c.h.b16 %v83
  %v326 = vunpack.c.l.b16 %v84
  %v327 = vunpack.c.h.b16 %v84
  %v328 = vunpack.c.l.b16 %v85
  %v329 = vunpack.c.h.b16 %v85
  %v330 = vunpack.c.l.b16 %v86
  %v331 = vunpack.c.h.b16 %v86
  %v332 = vunpack.c.l.b16 %v87
  %v333 = vunpack.c.h.b16 %v87
  %v334 = vunpack.c.l.b16 %v88
  %v335 = vunpack.c.h.b16 %v88
  %v336 = vpack.c.b16 %v190, %v188
  %v337 = vpack.c.b16 %v191, %v189
  %v338 = vpack.c.b16 %v194, %v192
  %v339 = vpack.c.b16 %v195, %v193
  %v340 = vpack.c.b16 %v198, %v196
  %v341 = vpack.c.b16 %v199, %v197
  %v342 = vpack.c.b16 %v202, %v200
  %v343 = vpack.c.b16 %v203, %v201
  %v344 = vpack.c.b16 %v206, %v204
  %v345 = vpack.c.b16 %v207, %v205
  %v346 = vpack.c.b16 %v210, %v208
  %v347 = vpack.c.b16 %v211, %v209
  %v348 = vpack.c.b16 %v214, %v212
  %v349 = vpack.c.b16 %v215, %v213
  %v350 = vpack.c.b16 %v218, %v216
  %v351 = vpack.c.b16 %v219, %v217
  %v352 = vpack.c.b16 %v222, %v220
  %v353 = vpack.c.b16 %v223, %v221
  %v354 = vpack.c.b16 %v226, %v224
  %v355 = vpack.c.b16 %v227, %v225
  %v356 = vpack.c.b16 %v230, %v228
  %v357 = vpack.c.b16 %v231, %v229
  %v358 = vpack.c.b16 %v234, %v232
  %v359 = vpack.c.b16 %v235, %v233
  %v360 = vpack.c.b16 %v238, %v236
  %v361 = vpack.c.b16 %v239, %v237
  %v362 = vpack.c.b16 %v242, %v240
  %v363 = vpack.c.b16 %v243, %v241
  %v364 = vpack.c.b16 %v246, %v244
  %v365 = vpack.c.b16 %v247, %v245
  %v366 = vpack.c.b16 %v250, %v248
  %v367 = vpack.c.b16 %v251, %v249
  %v368 = vpack.c.b16 %v254, %v252
  %v369 = vpack.c.b16 %v255, %v253
  %v370 = vpack.c.b16 %v258, %v256
  %v371 = vpack.c.b16 %v259, %v257
  %v372 = vpack.c.b16 %v262, %v260
  %v373 = vpack.c.b16 %v263, %v261
  %v374 = vpack.c.b16 %v266, %v264
  %v375 = vpack.c.b16 %v267, %v265
  %v376 = vpack.c.b16 %v270, %v268
  %v377 = vpack.c.b16 %v271, %v269
  %v378 = vpack.c.b16 %v274, %v272
  %v379 = vpack.c.b16 %v275, %v273
  %v380 = vpack.c.b16 %v278, %v276
  %v381 = vpack.c.b16 %v279, %v277
  %v382 = vpack.c.b16 %v282, %v280
  %v383 = vpack.c.b16 %v283, %v281
  %v384 = vpack.c.b16 %v286, %v284
  %v385 = vpack.c.b16 %v287, %v285
  %v386 = vpack.c.b16 %v290, %v288
  %v387 = vpack.c.b16 %v291, %v289
  %v388 = vpack.c.b16 %v294, %v292
  %v389 = vpack.c.b16 %v295, %v293
  %v390 = vpack.c.b16 %v298, %v296
  %v391 = vpack.c.b16 %v299, %v297
  %v392 = vpack.c.b16 %v302, %v300
  %v393 = vpack.c.b16 %v303, %v301
  %v394 = vpack.c.b16 %v306, %v304
  %v395 = vpack.c.b16 %v307, %v305
  %v396 = vpack.c.b16 %v310, %v308
  %v397 = vpack.c.b16 %v311, %v309
  %v398 = vpack.c.b16 %v314, %v312
  %v399 = vpack.c.b16 %v315, %v313
  %v400 = vpack.c.b16 %v318, %v316
  %v401 = vpack.c.b16 %v319, %v317
  %v402 = vpack.c.b16 %v322, %v320
  %v403 = vpack.c.b16 %v323, %v321
  %v404 = vpack.c.b16 %v326, %v324
  %v405 = vpack.c.b16 %v327, %v325
  %v406 = vpack.c.b16 %v330, %v328
  %v407 = vpack.c.b16 %v331, %v329
  %v408 = vpack.c.b16 %v334, %v332
  %v409 = vpack.c.b16 %v335, %v333
  %v465 = vunpack.c.l.b16 %v89
  %v466 = vunpack.c.l.b16 %v90
  %v467 = vunpack.c.l.b16 %v91
  %v468 = vunpack.c.l.b16 %v92
  %v469 = vunpack.c.l.b16 %v93
  %v470 = vunpack.c.l.b16 %v94
  %v471 = vunpack.c.l.b16 %v95
  %v472 = vunpack.c.l.b16 %v96
  %v473 = vunpack.c.l.b16 %v97
  %v474 = vunpack.c.l.b16 %v98
  %v475 = vunpack.c.l.b16 %v99
  %v476 = vunpack.c.l.b16 %v100
  %v477 = vunpack.c.l.b16 %v101
  %v478 = vunpack.c.l.b16 %v102
  %v479 = vunpack.c.l.b16 %v103
  %v480 = vunpack.c.l.b16 %v104
  %v481 = vunpack.c.l.b16 %v105
  %v482 = vunpack.c.l.b16 %v106
  %v483 = vpack.c.b16 %v466, %v465
  %v484 = vpack.c.b16 %v468, %v467
  %v485 = vpack.c.b16 %v470, %v469
  %v486 = vpack.c.b16 %v472, %v471
  %v487 = vpack.c.b16 %v474, %v473
  %v488 = vpack.c.b16 %v476, %v475
  %v489 = vpack.c.b16 %v478, %v477
  %v490 = vpack.c.b16 %v480, %v479
  %v491 = vpack.c.b16 %v482, %v481
  %vm501 = vcmask 130048
  %v503 = vsel %vm501, %v337, 0
  %v506 = vsel %vm501, %v339, 0
  %v509 = vsel %vm501, %v341, 0
  %v512 = vsel %vm501, %v343, 0
  %v515 = vsel %vm501, %v345, 0
  %v518 = vsel %vm501, %v347, 0
  %v521 = vsel %vm501, %v349, 0
  %v524 = vsel %vm501, %v351, 0
  %v527 = vsel %vm501, %v353, 0
  %v530 = vsel %vm501, %v355, 0
  %v533 = vsel %vm501, %v357, 0
  %v536 = vsel %vm501, %v359, 0
  %v539 = vsel %vm501, %v361, 0
  %v542 = vsel %vm501, %v363, 0
  %v545 = vsel %vm501, %v365, 0
  %v548 = vsel %vm501, %v367, 0
  %v551 = vsel %vm501, %v369, 0
  %v554 = vsel %vm501, %v371, 0
  %v557 = vsel %vm501, %v373, 0
  %v560 = vsel %vm501, %v375, 0
  %v563 = vsel %vm501, %v377, 0
  %v566 = vsel %vm501, %v379, 0
  %v569 = vsel %vm501, %v381, 0
  %v572 = vsel %vm501, %v383, 0
  %v575 = vsel %vm501, %v385, 0
  %v578 = vsel %vm501, %v387, 0
  %v581 = vsel %vm501, %v389, 0
  %v584 = vsel %vm501, %v391, 0
  %v587 = vsel %vm501, %v393, 0
  %v590 = vsel %vm501, %v395, 0
  %v593 = vsel %vm501, %v397, 0
  %v596 = vsel %vm501, %v399, 0
  %v599 = vsel %vm501, %v401, 0
  %v602 = vsel %vm501, %v403, 0
  %v605 = vsel %vm501, %v405, 0
  %v608 = vsel %vm501, %v407, 0
  %v611 = vsel %vm501, %v409, 0
  %613 = vmatprep.subr.bf16.mxu0 0
  %614 = vmatpush1.bf16.msra.mxu0 %v483
  %615 = vmatprep.subr.bf16.mxu0 0
  %616 = vmatpush1.bf16.msra.mxu0 %v484
  %617 = vmatprep.subr.bf16.mxu0 0
  %618 = vmatpush1.bf16.msra.mxu0 %v485
  %619 = vmatprep.subr.bf16.mxu0 0
  %620 = vmatpush1.bf16.msra.mxu0 %v486
  %621 = vmatprep.subr.bf16.mxu0 0
  %622 = vmatpush1.bf16.msra.mxu0 %v487
  %623 = vmatprep.subr.bf16.mxu0 0
  %624 = vmatpush1.bf16.msra.mxu0 %v488
  %625 = vmatprep.subr.bf16.mxu0 0
  %626 = vmatpush1.bf16.msra.mxu0 %v489
  %627 = vmatprep.subr.bf16.mxu0 0
  %628 = vmatpush1.bf16.msra.mxu0 %v490
  %629 = vmatprep.subr.bf16.mxu0 0
  %630 = vmatpush1.bf16.msra.mxu0 %v491
  %631 = vmatprep.subr.bf16.mxu0 0
  %632 = vmatpush1.bf16.msra.mxu0 0
  %633 = vmatprep.subr.bf16.mxu0 0
  %634 = vmatpush1.bf16.msra.mxu0 0
  %635 = vmatprep.subr.bf16.mxu0 0
  %636 = vmatpush1.bf16.msra.mxu0 0
  %637 = vmatprep.subr.bf16.mxu0 0
  %638 = vmatpush1.bf16.msra.mxu0 0
  %639 = vmatprep.subr.bf16.mxu0 0
  %640 = vmatpush1.bf16.msra.mxu0 0
  %641 = vmatprep.subr.bf16.mxu0 0
  %642 = vmatpush1.bf16.msra.mxu0 0
  %643 = vmatprep.subr.bf16.mxu0 0
  %644 = vmatpush1.bf16.msra.mxu0 0
  %645 = vmatprep.mubr.bf16.mxu0 %v503
  %646 = vmatmul.mubr.bf16.gmra.mrb[0].mxu0 %v336
  %v647 = vpop.f32.mrb[0].mxu0
  %v648 = vadd.f32 %v112, %v647
  %v649 = vpop.f32.mrb[0].mxu0
  %v650 = vpop.f32.mrb[0].mxu0
  %v651 = vadd.f32 %v112, %v650
  %v652 = vpop.f32.mrb[0].mxu0
  %653 = vmatprep.mubr.bf16.mxu0 %v506
  %654 = vmatmul.mubr.bf16.gmra.mrb[0].mxu0 %v338
  %v655 = vpop.f32.mrb[0].mxu0
  %v656 = vadd.f32 %v112, %v655
  %v657 = vpop.f32.mrb[0].mxu0
  %v658 = vpop.f32.mrb[0].mxu0
  %v659 = vadd.f32 %v112, %v658
  %v660 = vpop.f32.mrb[0].mxu0
  %661 = vmatprep.mubr.bf16.mxu0 %v509
  %662 = vmatmul.mubr.bf16.gmra.mrb[0].mxu0 %v340
  %v663 = vpop.f32.mrb[0].mxu0
  %v664 = vadd.f32 %v112, %v663
  %v665 = vpop.f32.mrb[0].mxu0
  %v666 = vpop.f32.mrb[0].mxu0
  %v667 = vadd.f32 %v112, %v666
  %v668 = vpop.f32.mrb[0].mxu0
  %669 = vmatprep.mubr.bf16.mxu0 %v512
  %670 = vmatmul.mubr.bf16.gmra.mrb[0].mxu0 %v342
  %v671 = vpop.f32.mrb[0].mxu0
  %v672 = vadd.f32 %v112, %v671
  %v673 = vpop.f32.mrb[0].mxu0
  %v674 = vpop.f32.mrb[0].mxu0
  %v675 = vadd.f32 %v112, %v674
  %v676 = vpop.f32.mrb[0].mxu0
  %677 = vmatprep.mubr.bf16.mxu0 %v515
  %678 = vmatmul.mubr.bf16.gmra.mrb[0].mxu0 %v344
  %v679 = vpop.f32.mrb[0].mxu0
  %v680 = vadd.f32 %v112, %v679
  %v681 = vpop.f32.mrb[0].mxu0
  %v682 = vpop.f32.mrb[0].mxu0
  %v683 = vadd.f32 %v112, %v682
  %v684 = vpop.f32.mrb[0].mxu0
  %685 = vmatprep.mubr.bf16.mxu0 %v518
  %686 = vmatmul.mubr.bf16.gmra.mrb[0].mxu0 %v346
  %v687 = vpop.f32.mrb[0].mxu0
  %v688 = vadd.f32 %v112, %v687
  %v689 = vpop.f32.mrb[0].mxu0
  %v690 = vpop.f32.mrb[0].mxu0
  %v691 = vadd.f32 %v112, %v690
  %v692 = vpop.f32.mrb[0].mxu0
  %693 = vmatprep.mubr.bf16.mxu0 %v521
  %694 = vmatmul.mubr.bf16.gmra.mrb[0].mxu0 %v348
  %v695 = vpop.f32.mrb[0].mxu0
  %v696 = vadd.f32 %v112, %v695
  %v697 = vpop.f32.mrb[0].mxu0
  %v698 = vpop.f32.mrb[0].mxu0
  %v699 = vadd.f32 %v112, %v698
  %v700 = vpop.f32.mrb[0].mxu0
  %701 = vmatprep.mubr.bf16.mxu0 %v524
  %702 = vmatmul.mubr.bf16.gmra.mrb[0].mxu0 %v350
  %v703 = vpop.f32.mrb[0].mxu0
  %v704 = vadd.f32 %v112, %v703
  %v705 = vpop.f32.mrb[0].mxu0
  %v706 = vpop.f32.mrb[0].mxu0
  %v707 = vadd.f32 %v112, %v706
  %v708 = vpop.f32.mrb[0].mxu0
  %709 = vmatprep.mubr.bf16.mxu0 %v527
  %710 = vmatmul.mubr.bf16.gmra.mrb[0].mxu0 %v352
  %v711 = vpop.f32.mrb[0].mxu0
  %v712 = vadd.f32 %v112, %v711
  %v713 = vpop.f32.mrb[0].mxu0
  %v714 = vpop.f32.mrb[0].mxu0
  %v715 = vadd.f32 %v112, %v714
  %v716 = vpop.f32.mrb[0].mxu0
  %717 = vmatprep.mubr.bf16.mxu0 %v530
  %718 = vmatmul.mubr.bf16.gmra.mrb[0].mxu0 %v354
  %v719 = vpop.f32.mrb[0].mxu0
  %v720 = vadd.f32 %v112, %v719
  %v721 = vpop.f32.mrb[0].mxu0
  %v722 = vpop.f32.mrb[0].mxu0
  %v723 = vadd.f32 %v112, %v722
  %v724 = vpop.f32.mrb[0].mxu0
  %725 = vmatprep.mubr.bf16.mxu0 %v533
  %726 = vmatmul.mubr.bf16.gmra.mrb[0].mxu0 %v356
  %v727 = vpop.f32.mrb[0].mxu0
  %v728 = vadd.f32 %v112, %v727
  %v729 = vpop.f32.mrb[0].mxu0
  %v730 = vpop.f32.mrb[0].mxu0
  %v731 = vadd.f32 %v112, %v730
  %v732 = vpop.f32.mrb[0].mxu0
  %733 = vmatprep.mubr.bf16.mxu0 %v536
  %734 = vmatmul.mubr.bf16.gmra.mrb[0].mxu0 %v358
  %v735 = vpop.f32.mrb[0].mxu0
  %v736 = vadd.f32 %v112, %v735
  %v737 = vpop.f32.mrb[0].mxu0
  %v738 = vpop.f32.mrb[0].mxu0
  %v739 = vadd.f32 %v112, %v738
  %v740 = vpop.f32.mrb[0].mxu0
  %741 = vmatprep.mubr.bf16.mxu0 %v539
  %742 = vmatmul.mubr.bf16.gmra.mrb[0].mxu0 %v360
  %v743 = vpop.f32.mrb[0].mxu0
  %v744 = vadd.f32 %v112, %v743
  %v745 = vpop.f32.mrb[0].mxu0
  %v746 = vpop.f32.mrb[0].mxu0
  %v747 = vadd.f32 %v112, %v746
  %v748 = vpop.f32.mrb[0].mxu0
  %749 = vmatprep.mubr.bf16.mxu0 %v542
  %750 = vmatmul.mubr.bf16.gmra.mrb[0].mxu0 %v362
  %v751 = vpop.f32.mrb[0].mxu0
  %v752 = vadd.f32 %v112, %v751
  %v753 = vpop.f32.mrb[0].mxu0
  %v754 = vpop.f32.mrb[0].mxu0
  %v755 = vadd.f32 %v112, %v754
  %v756 = vpop.f32.mrb[0].mxu0
  %757 = vmatprep.mubr.bf16.mxu0 %v545
  %758 = vmatmul.mubr.bf16.gmra.mrb[0].mxu0 %v364
  %v759 = vpop.f32.mrb[0].mxu0
  %v760 = vadd.f32 %v112, %v759
  %v761 = vpop.f32.mrb[0].mxu0
  %v762 = vpop.f32.mrb[0].mxu0
  %v763 = vadd.f32 %v112, %v762
  %v764 = vpop.f32.mrb[0].mxu0
  %765 = vmatprep.mubr.bf16.mxu0 %v548
  %766 = vmatmul.mubr.bf16.gmra.mrb[0].mxu0 %v366
  %v767 = vpop.f32.mrb[0].mxu0
  %v768 = vadd.f32 %v112, %v767
  %v769 = vpop.f32.mrb[0].mxu0
  %v770 = vpop.f32.mrb[0].mxu0
  %v771 = vadd.f32 %v112, %v770
  %v772 = vpop.f32.mrb[0].mxu0
  %773 = vmatprep.mubr.bf16.mxu0 %v551
  %774 = vmatmul.mubr.bf16.gmra.mrb[0].mxu0 %v368
  %v775 = vpop.f32.mrb[0].mxu0
  %v776 = vadd.f32 %v112, %v775
  %v777 = vpop.f32.mrb[0].mxu0
  %v778 = vpop.f32.mrb[0].mxu0
  %v779 = vadd.f32 %v112, %v778
  %v780 = vpop.f32.mrb[0].mxu0
  %781 = vmatprep.mubr.bf16.mxu0 %v554
  %782 = vmatmul.mubr.bf16.gmra.mrb[0].mxu0 %v370
  %v783 = vpop.f32.mrb[0].mxu0
  %v784 = vadd.f32 %v112, %v783
  %v785 = vpop.f32.mrb[0].mxu0
  %v786 = vpop.f32.mrb[0].mxu0
  %v787 = vadd.f32 %v112, %v786
  %v788 = vpop.f32.mrb[0].mxu0
  %789 = vmatprep.mubr.bf16.mxu0 %v557
  %790 = vmatmul.mubr.bf16.gmra.mrb[0].mxu0 %v372
  %v791 = vpop.f32.mrb[0].mxu0
  %v792 = vadd.f32 %v112, %v791
  %v793 = vpop.f32.mrb[0].mxu0
  %v794 = vpop.f32.mrb[0].mxu0
  %v795 = vadd.f32 %v112, %v794
  %v796 = vpop.f32.mrb[0].mxu0
  %797 = vmatprep.mubr.bf16.mxu0 %v560
  %798 = vmatmul.mubr.bf16.gmra.mrb[0].mxu0 %v374
  %v799 = vpop.f32.mrb[0].mxu0
  %v800 = vadd.f32 %v112, %v799
  %v801 = vpop.f32.mrb[0].mxu0
  %v802 = vpop.f32.mrb[0].mxu0
  %v803 = vadd.f32 %v112, %v802
  %v804 = vpop.f32.mrb[0].mxu0
  %805 = vmatprep.mubr.bf16.mxu0 %v563
  %806 = vmatmul.mubr.bf16.gmra.mrb[0].mxu0 %v376
  %v807 = vpop.f32.mrb[0].mxu0
  %v808 = vadd.f32 %v112, %v807
  %v809 = vpop.f32.mrb[0].mxu0
  %v810 = vpop.f32.mrb[0].mxu0
  %v811 = vadd.f32 %v112, %v810
  %v812 = vpop.f32.mrb[0].mxu0
  %813 = vmatprep.mubr.bf16.mxu0 %v566
  %814 = vmatmul.mubr.bf16.gmra.mrb[0].mxu0 %v378
  %v815 = vpop.f32.mrb[0].mxu0
  %v816 = vadd.f32 %v112, %v815
  %v817 = vpop.f32.mrb[0].mxu0
  %v818 = vpop.f32.mrb[0].mxu0
  %v819 = vadd.f32 %v112, %v818
  %v820 = vpop.f32.mrb[0].mxu0
  %821 = vmatprep.mubr.bf16.mxu0 %v569
  %822 = vmatmul.mubr.bf16.gmra.mrb[0].mxu0 %v380
  %v823 = vpop.f32.mrb[0].mxu0
  %v824 = vadd.f32 %v112, %v823
  %v825 = vpop.f32.mrb[0].mxu0
  %v826 = vpop.f32.mrb[0].mxu0
  %v827 = vadd.f32 %v112, %v826
  %v828 = vpop.f32.mrb[0].mxu0
  %829 = vmatprep.mubr.bf16.mxu0 %v572
  %830 = vmatmul.mubr.bf16.gmra.mrb[0].mxu0 %v382
  %v831 = vpop.f32.mrb[0].mxu0
  %v832 = vadd.f32 %v112, %v831
  %v833 = vpop.f32.mrb[0].mxu0
  %v834 = vpop.f32.mrb[0].mxu0
  %v835 = vadd.f32 %v112, %v834
  %v836 = vpop.f32.mrb[0].mxu0
  %837 = vmatprep.mubr.bf16.mxu0 %v575
  %838 = vmatmul.mubr.bf16.gmra.mrb[0].mxu0 %v384
  %v839 = vpop.f32.mrb[0].mxu0
  %v840 = vadd.f32 %v112, %v839
  %v841 = vpop.f32.mrb[0].mxu0
  %v842 = vpop.f32.mrb[0].mxu0
  %v843 = vadd.f32 %v112, %v842
  %v844 = vpop.f32.mrb[0].mxu0
  %845 = vmatprep.mubr.bf16.mxu0 %v578
  %846 = vmatmul.mubr.bf16.gmra.mrb[0].mxu0 %v386
  %v847 = vpop.f32.mrb[0].mxu0
  %v848 = vadd.f32 %v112, %v847
  %v849 = vpop.f32.mrb[0].mxu0
  %v850 = vpop.f32.mrb[0].mxu0
  %v851 = vadd.f32 %v112, %v850
  %v852 = vpop.f32.mrb[0].mxu0
  %853 = vmatprep.mubr.bf16.mxu0 %v581
  %854 = vmatmul.mubr.bf16.gmra.mrb[0].mxu0 %v388
  %v855 = vpop.f32.mrb[0].mxu0
  %v856 = vadd.f32 %v112, %v855
  %v857 = vpop.f32.mrb[0].mxu0
  %v858 = vpop.f32.mrb[0].mxu0
  %v859 = vadd.f32 %v112, %v858
  %v860 = vpop.f32.mrb[0].mxu0
  %861 = vmatprep.mubr.bf16.mxu0 %v584
  %862 = vmatmul.mubr.bf16.gmra.mrb[0].mxu0 %v390
  %v863 = vpop.f32.mrb[0].mxu0
  %v864 = vadd.f32 %v112, %v863
  %v865 = vpop.f32.mrb[0].mxu0
  %v866 = vpop.f32.mrb[0].mxu0
  %v867 = vadd.f32 %v112, %v866
  %v868 = vpop.f32.mrb[0].mxu0
  %869 = vmatprep.mubr.bf16.mxu0 %v587
  %870 = vmatmul.mubr.bf16.gmra.mrb[0].mxu0 %v392
  %v871 = vpop.f32.mrb[0].mxu0
  %v872 = vadd.f32 %v112, %v871
  %v873 = vpop.f32.mrb[0].mxu0
  %v874 = vpop.f32.mrb[0].mxu0
  %v875 = vadd.f32 %v112, %v874
  %v876 = vpop.f32.mrb[0].mxu0
  %877 = vmatprep.mubr.bf16.mxu0 %v590
  %878 = vmatmul.mubr.bf16.gmra.mrb[0].mxu0 %v394
  %v879 = vpop.f32.mrb[0].mxu0
  %v880 = vadd.f32 %v112, %v879
  %v881 = vpop.f32.mrb[0].mxu0
  %v882 = vpop.f32.mrb[0].mxu0
  %v883 = vadd.f32 %v112, %v882
  %v884 = vpop.f32.mrb[0].mxu0
  %885 = vmatprep.mubr.bf16.mxu0 %v593
  %886 = vmatmul.mubr.bf16.gmra.mrb[0].mxu0 %v396
  %v887 = vpop.f32.mrb[0].mxu0
  %v888 = vadd.f32 %v112, %v887
  %v889 = vpop.f32.mrb[0].mxu0
  %v890 = vpop.f32.mrb[0].mxu0
  %v891 = vadd.f32 %v112, %v890
  %v892 = vpop.f32.mrb[0].mxu0
  %893 = vmatprep.mubr.bf16.mxu0 %v596
  %894 = vmatmul.mubr.bf16.gmra.mrb[0].mxu0 %v398
  %v895 = vpop.f32.mrb[0].mxu0
  %v896 = vadd.f32 %v112, %v895
  %v897 = vpop.f32.mrb[0].mxu0
  %v898 = vpop.f32.mrb[0].mxu0
  %v899 = vadd.f32 %v112, %v898
  %v900 = vpop.f32.mrb[0].mxu0
  %901 = vmatprep.mubr.bf16.mxu0 %v599
  %902 = vmatmul.mubr.bf16.gmra.mrb[0].mxu0 %v400
  %v903 = vpop.f32.mrb[0].mxu0
  %v904 = vadd.f32 %v112, %v903
  %v905 = vpop.f32.mrb[0].mxu0
  %v906 = vpop.f32.mrb[0].mxu0
  %v907 = vadd.f32 %v112, %v906
  %v908 = vpop.f32.mrb[0].mxu0
  %909 = vmatprep.mubr.bf16.mxu0 %v602
  %910 = vmatmul.mubr.bf16.gmra.mrb[0].mxu0 %v402
  %v911 = vpop.f32.mrb[0].mxu0
  %v912 = vadd.f32 %v112, %v911
  %v913 = vpop.f32.mrb[0].mxu0
  %v914 = vpop.f32.mrb[0].mxu0
  %v915 = vadd.f32 %v112, %v914
  %v916 = vpop.f32.mrb[0].mxu0
  %917 = vmatprep.mubr.bf16.mxu0 %v605
  %918 = vmatmul.mubr.bf16.gmra.mrb[0].mxu0 %v404
  %v919 = vpop.f32.mrb[0].mxu0
  %v920 = vadd.f32 %v112, %v919
  %v921 = vpop.f32.mrb[0].mxu0
  %v922 = vpop.f32.mrb[0].mxu0
  %v923 = vadd.f32 %v112, %v922
  %v924 = vpop.f32.mrb[0].mxu0
  %925 = vmatprep.mubr.bf16.mxu0 %v608
  %926 = vmatmul.mubr.bf16.gmra.mrb[0].mxu0 %v406
  %v927 = vpop.f32.mrb[0].mxu0
  %v928 = vadd.f32 %v112, %v927
  %v929 = vpop.f32.mrb[0].mxu0
  %v930 = vpop.f32.mrb[0].mxu0
  %v931 = vadd.f32 %v112, %v930
  %v932 = vpop.f32.mrb[0].mxu0
  %933 = vmatprep.mubr.bf16.mxu0 %v611
  %934 = vmatmul.mubr.bf16.gmra.mrb[0].mxu0 %v408
  %v935 = vpop.f32.mrb[0].mxu0
  %v936 = vadd.f32 %v112, %v935
  %v937 = vpop.f32.mrb[0].mxu0
  %v938 = vpop.f32.mrb[0].mxu0
  %v939 = vadd.f32 %v112, %v938
  %v940 = vpop.f32.mrb[0].mxu0
  %941 = vdwg.mxu0
  %v942 = vmax.f32 %v648, 0.0
  %v943 = vmax.f32 %v651, 0.0
  %v944 = vmax.f32 %v656, 0.0
  %v945 = vmax.f32 %v659, 0.0
  %v946 = vmax.f32 %v664, 0.0
  %v947 = vmax.f32 %v667, 0.0
  %v948 = vmax.f32 %v672, 0.0
  %v949 = vmax.f32 %v675, 0.0
  %v950 = vmax.f32 %v680, 0.0
  %v951 = vmax.f32 %v683, 0.0
  %v952 = vmax.f32 %v688, 0.0
  %v953 = vmax.f32 %v691, 0.0
  %v954 = vmax.f32 %v696, 0.0
  %v955 = vmax.f32 %v699, 0.0
  %v956 = vmax.f32 %v704, 0.0
  %v957 = vmax.f32 %v707, 0.0
  %v958 = vmax.f32 %v712, 0.0
  %v959 = vmax.f32 %v715, 0.0
  %v960 = vmax.f32 %v720, 0.0
  %v961 = vmax.f32 %v723, 0.0
  %v962 = vmax.f32 %v728, 0.0
  %v963 = vmax.f32 %v731, 0.0
  %v964 = vmax.f32 %v736, 0.0
  %v965 = vmax.f32 %v739, 0.0
  %v966 = vmax.f32 %v744, 0.0
  %v967 = vmax.f32 %v747, 0.0
  %v968 = vmax.f32 %v752, 0.0
  %v969 = vmax.f32 %v755, 0.0
  %v970 = vmax.f32 %v760, 0.0
  %v971 = vmax.f32 %v763, 0.0
  %v972 = vmax.f32 %v768, 0.0
  %v973 = vmax.f32 %v771, 0.0
  %v974 = vmax.f32 %v776, 0.0
  %v975 = vmax.f32 %v779, 0.0
  %v976 = vmax.f32 %v784, 0.0
  %v977 = vmax.f32 %v787, 0.0
  %v978 = vmax.f32 %v792, 0.0
  %v979 = vmax.f32 %v795, 0.0
  %v980 = vmax.f32 %v800, 0.0
  %v981 = vmax.f32 %v803, 0.0
  %v982 = vmax.f32 %v808, 0.0
  %v983 = vmax.f32 %v811, 0.0
  %v984 = vmax.f32 %v816, 0.0
  %v985 = vmax.f32 %v819, 0.0
  %v986 = vmax.f32 %v824, 0.0
  %v987 = vmax.f32 %v827, 0.0
  %v988 = vmax.f32 %v832, 0.0
  %v989 = vmax.f32 %v835, 0.0
  %v990 = vmax.f32 %v840, 0.0
  %v991 = vmax.f32 %v843, 0.0
  %v992 = vmax.f32 %v848, 0.0
  %v993 = vmax.f32 %v851, 0.0
  %v994 = vmax.f32 %v856, 0.0
  %v995 = vmax.f32 %v859, 0.0
  %v996 = vmax.f32 %v864, 0.0
  %v997 = vmax.f32 %v867, 0.0
  %v998 = vmax.f32 %v872, 0.0
  %v999 = vmax.f32 %v875, 0.0
  %v1000 = vmax.f32 %v880, 0.0
  %v1001 = vmax.f32 %v883, 0.0
  %v1002 = vmax.f32 %v888, 0.0
  %v1003 = vmax.f32 %v891, 0.0
  %v1004 = vmax.f32 %v896, 0.0
  %v1005 = vmax.f32 %v899, 0.0
  %v1006 = vmax.f32 %v904, 0.0
  %v1007 = vmax.f32 %v907, 0.0
  %v1008 = vmax.f32 %v912, 0.0
  %v1009 = vmax.f32 %v915, 0.0
  %v1010 = vmax.f32 %v920, 0.0
  %v1011 = vmax.f32 %v923, 0.0
  %v1012 = vmax.f32 %v928, 0.0
  %v1013 = vmax.f32 %v931, 0.0
  %v1014 = vmax.f32 %v936, 0.0
  %v1015 = vmax.f32 %v939, 0.0
  %v1016 = vpack.c.bf16 %v943, %v942
  %v1017 = vpack.c.bf16 %v945, %v944
  %v1018 = vpack.c.bf16 %v947, %v946
  %v1019 = vpack.c.bf16 %v949, %v948
  %v1020 = vpack.c.bf16 %v951, %v950
  %v1021 = vpack.c.bf16 %v953, %v952
  %v1022 = vpack.c.bf16 %v955, %v954
  %v1023 = vpack.c.bf16 %v957, %v956
  %v1024 = vpack.c.bf16 %v959, %v958
  %v1025 = vpack.c.bf16 %v961, %v960
  %v1026 = vpack.c.bf16 %v963, %v962
  %v1027 = vpack.c.bf16 %v965, %v964
  %v1028 = vpack.c.bf16 %v967, %v966
  %v1029 = vpack.c.bf16 %v969, %v968
  %v1030 = vpack.c.bf16 %v971, %v970
  %v1031 = vpack.c.bf16 %v973, %v972
  %v1032 = vpack.c.bf16 %v975, %v974
  %v1033 = vpack.c.bf16 %v977, %v976
  %v1034 = vpack.c.bf16 %v979, %v978
  %v1035 = vpack.c.bf16 %v981, %v980
  %v1036 = vpack.c.bf16 %v983, %v982
  %v1037 = vpack.c.bf16 %v985, %v984
  %v1038 = vpack.c.bf16 %v987, %v986
  %v1039 = vpack.c.bf16 %v989, %v988
  %v1040 = vpack.c.bf16 %v991, %v990
  %v1041 = vpack.c.bf16 %v993, %v992
  %v1042 = vpack.c.bf16 %v995, %v994
  %v1043 = vpack.c.bf16 %v997, %v996
  %v1044 = vpack.c.bf16 %v999, %v998
  %v1045 = vpack.c.bf16 %v1001, %v1000
  %v1046 = vpack.c.bf16 %v1003, %v1002
  %v1047 = vpack.c.bf16 %v1005, %v1004
  %v1048 = vpack.c.bf16 %v1007, %v1006
  %v1049 = vpack.c.bf16 %v1009, %v1008
  %v1050 = vpack.c.bf16 %v1011, %v1010
  %v1051 = vpack.c.bf16 %v1013, %v1012
  %v1052 = vpack.c.bf16 %v1015, %v1014
  %v1090 = vunpack.c.l.b16 %v1016
  %v1091 = vunpack.c.h.b16 %v1016
  %v1092 = vunpack.c.l.b16 %v1017
  %v1093 = vunpack.c.h.b16 %v1017
  %v1094 = vunpack.c.l.b16 %v1018
  %v1095 = vunpack.c.h.b16 %v1018
  %v1096 = vunpack.c.l.b16 %v1019
  %v1097 = vunpack.c.h.b16 %v1019
  %v1098 = vunpack.c.l.b16 %v1020
  %v1099 = vunpack.c.h.b16 %v1020
  %v1100 = vunpack.c.l.b16 %v1021
  %v1101 = vunpack.c.h.b16 %v1021
  %v1102 = vunpack.c.l.b16 %v1022
  %v1103 = vunpack.c.h.b16 %v1022
  %v1104 = vunpack.c.l.b16 %v1023
  %v1105 = vunpack.c.h.b16 %v1023
  %v1106 = vunpack.c.l.b16 %v1024
  %v1107 = vunpack.c.h.b16 %v1024
  %v1108 = vunpack.c.l.b16 %v1025
  %v1109 = vunpack.c.h.b16 %v1025
  %v1110 = vunpack.c.l.b16 %v1026
  %v1111 = vunpack.c.h.b16 %v1026
  %v1112 = vunpack.c.l.b16 %v1027
  %v1113 = vunpack.c.h.b16 %v1027
  %v1114 = vunpack.c.l.b16 %v1028
  %v1115 = vunpack.c.h.b16 %v1028
  %v1116 = vunpack.c.l.b16 %v1029
  %v1117 = vunpack.c.h.b16 %v1029
  %v1118 = vunpack.c.l.b16 %v1030
  %v1119 = vunpack.c.h.b16 %v1030
  %v1120 = vunpack.c.l.b16 %v1031
  %v1121 = vunpack.c.h.b16 %v1031
  %v1122 = vunpack.c.l.b16 %v1032
  %v1123 = vunpack.c.h.b16 %v1032
  %v1124 = vunpack.c.l.b16 %v1033
  %v1125 = vunpack.c.h.b16 %v1033
  %v1126 = vunpack.c.l.b16 %v1034
  %v1127 = vunpack.c.h.b16 %v1034
  %v1128 = vunpack.c.l.b16 %v1035
  %v1129 = vunpack.c.h.b16 %v1035
  %v1130 = vunpack.c.l.b16 %v1036
  %v1131 = vunpack.c.h.b16 %v1036
  %v1132 = vunpack.c.l.b16 %v1037
  %v1133 = vunpack.c.h.b16 %v1037
  %v1134 = vunpack.c.l.b16 %v1038
  %v1135 = vunpack.c.h.b16 %v1038
  %v1136 = vunpack.c.l.b16 %v1039
  %v1137 = vunpack.c.h.b16 %v1039
  %v1138 = vunpack.c.l.b16 %v1040
  %v1139 = vunpack.c.h.b16 %v1040
  %v1140 = vunpack.c.l.b16 %v1041
  %v1141 = vunpack.c.h.b16 %v1041
  %v1142 = vunpack.c.l.b16 %v1042
  %v1143 = vunpack.c.h.b16 %v1042
  %v1144 = vunpack.c.l.b16 %v1043
  %v1145 = vunpack.c.h.b16 %v1043
  %v1146 = vunpack.c.l.b16 %v1044
  %v1147 = vunpack.c.h.b16 %v1044
  %v1148 = vunpack.c.l.b16 %v1045
  %v1149 = vunpack.c.h.b16 %v1045
  %v1150 = vunpack.c.l.b16 %v1046
  %v1151 = vunpack.c.h.b16 %v1046
  %v1152 = vunpack.c.l.b16 %v1047
  %v1153 = vunpack.c.h.b16 %v1047
  %v1154 = vunpack.c.l.b16 %v1048
  %v1155 = vunpack.c.h.b16 %v1048
  %v1156 = vunpack.c.l.b16 %v1049
  %v1157 = vunpack.c.h.b16 %v1049
  %v1158 = vunpack.c.l.b16 %v1050
  %v1159 = vunpack.c.h.b16 %v1050
  %v1160 = vunpack.c.l.b16 %v1051
  %v1161 = vunpack.c.h.b16 %v1051
  %v1162 = vunpack.c.l.b16 %v1052
  %v1163 = vunpack.c.h.b16 %v1052
  %v1164 = vpack.c.b16 %v1090, %v1090
  %v1165 = vpack.c.b16 %v1091, %v1091
  %v1166 = vpack.c.b16 %v1092, %v1092
  %v1167 = vpack.c.b16 %v1093, %v1093
  %v1168 = vpack.c.b16 %v1094, %v1094
  %v1169 = vpack.c.b16 %v1095, %v1095
  %v1170 = vpack.c.b16 %v1096, %v1096
  %v1171 = vpack.c.b16 %v1097, %v1097
  %v1172 = vpack.c.b16 %v1098, %v1098
  %v1173 = vpack.c.b16 %v1099, %v1099
  %v1174 = vpack.c.b16 %v1100, %v1100
  %v1175 = vpack.c.b16 %v1101, %v1101
  %v1176 = vpack.c.b16 %v1102, %v1102
  %v1177 = vpack.c.b16 %v1103, %v1103
  %v1178 = vpack.c.b16 %v1104, %v1104
  %v1179 = vpack.c.b16 %v1105, %v1105
  %v1180 = vpack.c.b16 %v1106, %v1106
  %v1181 = vpack.c.b16 %v1107, %v1107
  %v1182 = vpack.c.b16 %v1108, %v1108
  %v1183 = vpack.c.b16 %v1109, %v1109
  %v1184 = vpack.c.b16 %v1110, %v1110
  %v1185 = vpack.c.b16 %v1111, %v1111
  %v1186 = vpack.c.b16 %v1112, %v1112
  %v1187 = vpack.c.b16 %v1113, %v1113
  %v1188 = vpack.c.b16 %v1114, %v1114
  %v1189 = vpack.c.b16 %v1115, %v1115
  %v1190 = vpack.c.b16 %v1116, %v1116
  %v1191 = vpack.c.b16 %v1117, %v1117
  %v1192 = vpack.c.b16 %v1118, %v1118
  %v1193 = vpack.c.b16 %v1119, %v1119
  %v1194 = vpack.c.b16 %v1120, %v1120
  %v1195 = vpack.c.b16 %v1121, %v1121
  %v1196 = vpack.c.b16 %v1122, %v1122
  %v1197 = vpack.c.b16 %v1123, %v1123
  %v1198 = vpack.c.b16 %v1124, %v1124
  %v1199 = vpack.c.b16 %v1125, %v1125
  %v1200 = vpack.c.b16 %v1126, %v1126
  %v1201 = vpack.c.b16 %v1127, %v1127
  %v1202 = vpack.c.b16 %v1128, %v1128
  %v1203 = vpack.c.b16 %v1129, %v1129
  %v1204 = vpack.c.b16 %v1130, %v1130
  %v1205 = vpack.c.b16 %v1131, %v1131
  %v1206 = vpack.c.b16 %v1132, %v1132
  %v1207 = vpack.c.b16 %v1133, %v1133
  %v1208 = vpack.c.b16 %v1134, %v1134
  %v1209 = vpack.c.b16 %v1135, %v1135
  %v1210 = vpack.c.b16 %v1136, %v1136
  %v1211 = vpack.c.b16 %v1137, %v1137
  %v1212 = vpack.c.b16 %v1138, %v1138
  %v1213 = vpack.c.b16 %v1139, %v1139
  %v1214 = vpack.c.b16 %v1140, %v1140
  %v1215 = vpack.c.b16 %v1141, %v1141
  %v1216 = vpack.c.b16 %v1142, %v1142
  %v1217 = vpack.c.b16 %v1143, %v1143
  %v1218 = vpack.c.b16 %v1144, %v1144
  %v1219 = vpack.c.b16 %v1145, %v1145
  %v1220 = vpack.c.b16 %v1146, %v1146
  %v1221 = vpack.c.b16 %v1147, %v1147
  %v1222 = vpack.c.b16 %v1148, %v1148
  %v1223 = vpack.c.b16 %v1149, %v1149
  %v1224 = vpack.c.b16 %v1150, %v1150
  %v1225 = vpack.c.b16 %v1151, %v1151
  %v1226 = vpack.c.b16 %v1152, %v1152
  %v1227 = vpack.c.b16 %v1153, %v1153
  %v1228 = vpack.c.b16 %v1154, %v1154
  %v1229 = vpack.c.b16 %v1155, %v1155
  %v1230 = vpack.c.b16 %v1156, %v1156
  %v1231 = vpack.c.b16 %v1157, %v1157
  %v1232 = vpack.c.b16 %v1158, %v1158
  %v1233 = vpack.c.b16 %v1159, %v1159
  %v1234 = vpack.c.b16 %v1160, %v1160
  %v1235 = vpack.c.b16 %v1161, %v1161
  %v1236 = vpack.c.b16 %v1162, %v1162
  %v1237 = vpack.c.b16 %v1163, %v1163
  %1312 = vst [vmem:[%s3] sm:$0xf] %v1164
  %1313 = vst [vmem:[%s3 + $0x4] sm:$0xf] %v1165
  %1314 = vst [vmem:[%s3 + $0x8] sm:$0xf] %v1166
  %1315 = vst [vmem:[%s3 + $0xc] sm:$0xf] %v1167
  %1316 = vst [vmem:[%s3 + $0x10] sm:$0xf] %v1168
  %1317 = vst [vmem:[%s3 + $0x14] sm:$0xf] %v1169
  %1318 = vst [vmem:[%s3 + $0x18] sm:$0xf] %v1170
  %1319 = vst [vmem:[%s3 + $0x1c] sm:$0xf] %v1171
  %1320 = vst [vmem:[%s3 + $0x20] sm:$0xf] %v1172
  %1321 = vst [vmem:[%s3 + $0x24] sm:$0xf] %v1173
  %1322 = vst [vmem:[%s3 + $0x28] sm:$0xf] %v1174
  %1323 = vst [vmem:[%s3 + $0x2c] sm:$0xf] %v1175
  %1324 = vst [vmem:[%s3 + $0x30] sm:$0xf] %v1176
  %1325 = vst [vmem:[%s3 + $0x34] sm:$0xf] %v1177
  %1326 = vst [vmem:[%s3 + $0x38] sm:$0xf] %v1178
  %1327 = vst [vmem:[%s3 + $0x3c] sm:$0xf] %v1179
  %1328 = vst [vmem:[%s3 + $0x40] sm:$0xf] %v1180
  %1329 = vst [vmem:[%s3 + $0x44] sm:$0xf] %v1181
  %1330 = vst [vmem:[%s3 + $0x48] sm:$0xf] %v1182
  %1331 = vst [vmem:[%s3 + $0x4c] sm:$0xf] %v1183
  %1332 = vst [vmem:[%s3 + $0x50] sm:$0xf] %v1184
  %1333 = vst [vmem:[%s3 + $0x54] sm:$0xf] %v1185
  %1334 = vst [vmem:[%s3 + $0x58] sm:$0xf] %v1186
  %1335 = vst [vmem:[%s3 + $0x5c] sm:$0xf] %v1187
  %1336 = vst [vmem:[%s3 + $0x60] sm:$0xf] %v1188
  %1337 = vst [vmem:[%s3 + $0x64] sm:$0xf] %v1189
  %1338 = vst [vmem:[%s3 + $0x68] sm:$0xf] %v1190
  %1339 = vst [vmem:[%s3 + $0x6c] sm:$0xf] %v1191
  %1340 = vst [vmem:[%s3 + $0x70] sm:$0xf] %v1192
  %1341 = vst [vmem:[%s3 + $0x74] sm:$0xf] %v1193
  %1342 = vst [vmem:[%s3 + $0x78] sm:$0xf] %v1194
  %1343 = vst [vmem:[%s3 + $0x7c] sm:$0xf] %v1195
  %1344 = vst [vmem:[%s3 + $0x80] sm:$0xf] %v1196
  %1345 = vst [vmem:[%s3 + $0x84] sm:$0xf] %v1197
  %1346 = vst [vmem:[%s3 + $0x88] sm:$0xf] %v1198
  %1347 = vst [vmem:[%s3 + $0x8c] sm:$0xf] %v1199
  %1348 = vst [vmem:[%s3 + $0x90] sm:$0xf] %v1200
  %1349 = vst [vmem:[%s3 + $0x94] sm:$0xf] %v1201
  %1350 = vst [vmem:[%s3 + $0x98] sm:$0xf] %v1202
  %1351 = vst [vmem:[%s3 + $0x9c] sm:$0xf] %v1203
  %1352 = vst [vmem:[%s3 + $0xa0] sm:$0xf] %v1204
  %1353 = vst [vmem:[%s3 + $0xa4] sm:$0xf] %v1205
  %1354 = vst [vmem:[%s3 + $0xa8] sm:$0xf] %v1206
  %1355 = vst [vmem:[%s3 + $0xac] sm:$0xf] %v1207
  %1356 = vst [vmem:[%s3 + $0xb0] sm:$0xf] %v1208
  %1357 = vst [vmem:[%s3 + $0xb4] sm:$0xf] %v1209
  %1358 = vst [vmem:[%s3 + $0xb8] sm:$0xf] %v1210
  %1359 = vst [vmem:[%s3 + $0xbc] sm:$0xf] %v1211
  %1360 = vst [vmem:[%s3 + $0xc0] sm:$0xf] %v1212
  %1361 = vst [vmem:[%s3 + $0xc4] sm:$0xf] %v1213
  %1362 = vst [vmem:[%s3 + $0xc8] sm:$0xf] %v1214
  %1363 = vst [vmem:[%s3 + $0xcc] sm:$0xf] %v1215
  %1364 = vst [vmem:[%s3 + $0xd0] sm:$0xf] %v1216
  %1365 = vst [vmem:[%s3 + $0xd4] sm:$0xf] %v1217
  %1366 = vst [vmem:[%s3 + $0xd8] sm:$0xf] %v1218
  %1367 = vst [vmem:[%s3 + $0xdc] sm:$0xf] %v1219
  %1368 = vst [vmem:[%s3 + $0xe0] sm:$0xf] %v1220
  %1369 = vst [vmem:[%s3 + $0xe4] sm:$0xf] %v1221
  %1370 = vst [vmem:[%s3 + $0xe8] sm:$0xf] %v1222
  %1371 = vst [vmem:[%s3 + $0xec] sm:$0xf] %v1223
  %1372 = vst [vmem:[%s3 + $0xf0] sm:$0xf] %v1224
  %1373 = vst [vmem:[%s3 + $0xf4] sm:$0xf] %v1225
  %1374 = vst [vmem:[%s3 + $0xf8] sm:$0xf] %v1226
  %1375 = vst [vmem:[%s3 + $0xfc] sm:$0xf] %v1227
  %1376 = vst [vmem:[%s3 + $0x100] sm:$0xf] %v1228
  %1377 = vst [vmem:[%s3 + $0x104] sm:$0xf] %v1229
  %1378 = vst [vmem:[%s3 + $0x108] sm:$0xf] %v1230
  %1379 = vst [vmem:[%s3 + $0x10c] sm:$0xf] %v1231
  %1380 = vst [vmem:[%s3 + $0x110] sm:$0xf] %v1232
  %1381 = vst [vmem:[%s3 + $0x114] sm:$0xf] %v1233
  %1382 = vst [vmem:[%s3 + $0x118] sm:$0xf] %v1234
  %1383 = vst [vmem:[%s3 + $0x11c] sm:$0xf] %v1235
  %1384 = vst [vmem:[%s3 + $0x120] sm:$0xf] %v1236
  %1385 = vst [vmem:[%s3 + $0x124] sm:$0xf] %v1237
  // Predicated region
  $region14: #{affinity_vae_forward.16} parent=0 // pred_check
    _
  $region15: #{affinity_vae_forward.16} parent=0 // pred_check_branch
    %1387 = sbr.rel (0) target = $region17
  $region16: #{affinity_vae_forward.16} parent=0 // pred_region
    _
  $region17: #{affinity_vae_forward.16} parent=0 // pred_fallthru
    _
  // Predicated region
  $region18: #{affinity_vae_forward.16} parent=0 // pred_check
    _
  $region19: #{affinity_vae_forward.16} parent=0 // pred_check_branch
    %1389 = sbr.rel (0) target = $region21
  $region20: #{affinity_vae_forward.16} parent=0 // pred_region
    _
  $region21: #{affinity_vae_forward.16} parent=0 // pred_fallthru
    _

// kernel: affinity_vae_forward.17
$region0: #{affinity_vae_forward.17}
  #allocation0 [shape = 'u32[]', space=smem, size = 0x4, offset = 0x4, fixed_abs, tag = 'smem constant byte address 0x4 - core index']
  #allocation1 [shape = 'u32[144,128]{1,0:T(1,128)}', space=vmem, size = 0x12000, scoped, tag = 'internal scratch']
  %s0 = inlined_call_operand.vmem [shape: bf16[2048,32], index: 0, kind: input, shape index: {}]
  %s1 = inlined_call_operand.vmem [shape: bf16[32,128], index: 1, kind: input, shape index: {}]
  %s2 = inlined_call_operand.vmem [shape: f32[1,128], index: 2, kind: input, shape index: {}]
  %s3 = inlined_call_operand.vmem [shape: f32[2048,128], index: 3, kind: output, shape index: {}]
  %s4 = sld [smem:[#allocation0]]
  $region45: #{affinity_vae_forward.17} parent=0
    _
  %s6 = ssub.s32 1, %s4
  %s7 = scalar_select 0, %s6, %s4
  loop: start=0, step=1, limit=6
  $region2: #{affinity_vae_forward.17} parent=0 // loop_pre_header
    _
  $region3: #{affinity_vae_forward.17} parent=0 // loop_header
    %s9 = sphi 0, %s13
    %p10 = scmp.ge.s32.totalorder %s9, 6
    %s19 = sphi 0, %s21
    %s22 = sphi 0, %s19
    %s23 = sphi 0, %s22
    %s39 = sphi 0, %s23
    %s43 = sphi 0, %s43
    %s45 = sphi 0, %s43
    %s46 = sphi 0, %s45
    %s60 = sphi 0, %s46
    %s64 = sphi 0, %s64
    %s66 = sphi 0, %s64
    %s67 = sphi 0, %s66
    %s81 = sphi 0, %s67
    %s87 = sphi 0, %s89
    %s90 = sphi 0, %s87
    %s91 = sphi 0, %s90
    %s107 = sphi 0, %s91
  $region4: #{affinity_vae_forward.17} parent=0 // loop_header_branch
    %12 = sbr.rel (%p10) target = $region8
  $region5: #{affinity_vae_forward.17} parent=0 // loop_body
    %s14 = ssub.s32 %s9, 1
    %s15 = ssub.s32 %s9, 2
    %s16 = sadd.s32 %s9, 1
    %s17 = ssub.s32 %s9, %s16
    %p18 = scmp.eq.s32.totalorder %s17, 0
    %s20 = sadd.s32 %s19, 1
    %s21 = scalar_select %p18, %s19, %s20
    %p24 = pneg %p18
    %p25 = scmp.eq.s32.totalorder %s9, 3
    %p26 = por %p24, %p25
    %p27 = scmp.ne.s32.totalorder %s19, %s22
    %p28 = scmp.eq.s32.totalorder %s9, 0
    %p29 = por %p27, %p28
    %p30 = scmp.ne.s32.totalorder %s19, %s22
    %p31 = scmp.eq.s32.totalorder %s14, 3
    %p32 = por %p30, %p31
    %p33 = scmp.ne.s32.totalorder %s22, %s23
    %p34 = scmp.eq.s32.totalorder %s14, 0
    %p35 = por %p33, %p34
    %p36 = scmp.ne.s32.totalorder %s22, %s23
    %p37 = scmp.eq.s32.totalorder %s15, 3
    %p38 = por %p36, %p37
    %p40 = scmp.ne.s32.totalorder %s23, %s39
    %p41 = scmp.eq.s32.totalorder %s15, 0
    %p42 = por %p40, %p41
    %s44 = sadd.s32 %s43, 1
    %p47 = scmp.eq.s32.totalorder %s9, 3
    %p48 = scmp.ne.s32.totalorder %s43, %s45
    %p49 = scmp.eq.s32.totalorder %s9, 0
    %p50 = por %p48, %p49
    %p51 = scmp.ne.s32.totalorder %s43, %s45
    %p52 = scmp.eq.s32.totalorder %s14, 3
    %p53 = por %p51, %p52
    %p54 = scmp.ne.s32.totalorder %s45, %s46
    %p55 = scmp.eq.s32.totalorder %s14, 0
    %p56 = por %p54, %p55
    %p57 = scmp.ne.s32.totalorder %s45, %s46
    %p58 = scmp.eq.s32.totalorder %s15, 3
    %p59 = por %p57, %p58
    %p61 = scmp.ne.s32.totalorder %s46, %s60
    %p62 = scmp.eq.s32.totalorder %s15, 0
    %p63 = por %p61, %p62
    %s65 = sadd.s32 %s64, 1
    %p68 = scmp.eq.s32.totalorder %s9, 3
    %p69 = scmp.ne.s32.totalorder %s64, %s66
    %p70 = scmp.eq.s32.totalorder %s9, 0
    %p71 = por %p69, %p70
    %p72 = scmp.ne.s32.totalorder %s64, %s66
    %p73 = scmp.eq.s32.totalorder %s14, 3
    %p74 = por %p72, %p73
    %p75 = scmp.ne.s32.totalorder %s66, %s67
    %p76 = scmp.eq.s32.totalorder %s14, 0
    %p77 = por %p75, %p76
    %p78 = scmp.ne.s32.totalorder %s66, %s67
    %p79 = scmp.eq.s32.totalorder %s15, 3
    %p80 = por %p78, %p79
    %p82 = scmp.ne.s32.totalorder %s67, %s81
    %p83 = scmp.eq.s32.totalorder %s15, 0
    %p84 = por %p82, %p83
    %s85 = ssub.s32 %s9, %s16
    %p86 = scmp.eq.s32.totalorder %s85, 0
    %s88 = sadd.s32 %s87, 1
    %s89 = scalar_select %p86, %s87, %s88
    %p92 = pneg %p86
    %p93 = scmp.eq.s32.totalorder %s9, 3
    %p94 = por %p92, %p93
    %p95 = scmp.ne.s32.totalorder %s87, %s90
    %p96 = scmp.eq.s32.totalorder %s9, 0
    %p97 = por %p95, %p96
    %p98 = scmp.ne.s32.totalorder %s87, %s90
    %p99 = scmp.eq.s32.totalorder %s14, 3
    %p100 = por %p98, %p99
    %p101 = scmp.ne.s32.totalorder %s90, %s91
    %p102 = scmp.eq.s32.totalorder %s14, 0
    %p103 = por %p101, %p102
    %p104 = scmp.ne.s32.totalorder %s90, %s91
    %p105 = scmp.eq.s32.totalorder %s15, 3
    %p106 = por %p104, %p105
    %p108 = scmp.ne.s32.totalorder %s91, %s107
    %p109 = scmp.eq.s32.totalorder %s15, 0
    %p110 = por %p108, %p109
    %p111 = scmp.le.s32.totalorder 1, %s9
    %p112 = scmp.lt.s32.totalorder %s9, 5
    %p113 = pnand %p111, %p112
    %p114 = pneg %p113
    // Predicated region
    $region9: #{affinity_vae_forward.17} parent=5 // pred_check
      _
    $region10: #{affinity_vae_forward.17} parent=5 // pred_check_branch
      %116 = sbr.rel (%p113) target = $region12
    $region11: #{affinity_vae_forward.17} parent=5 // pred_region
      %s117 = ssub.s32 %s9, 1
      // Predicated region
      $region13: #{affinity_vae_forward.17} parent=11 // pred_check
        %p118 = pneg %p56
      $region14: #{affinity_vae_forward.17} parent=11 // pred_check_branch
        %120 = sbr.rel (%p118) target = $region16
      $region15: #{affinity_vae_forward.17} parent=11 // pred_region
        _
      $region16: #{affinity_vae_forward.17} parent=11 // pred_fallthru
        _
      // Predicated region
      $region17: #{affinity_vae_forward.17} parent=11 // pred_check
        %p121 = pneg %p77
      $region18: #{affinity_vae_forward.17} parent=11 // pred_check_branch
        %123 = sbr.rel (%p121) target = $region20
      $region19: #{affinity_vae_forward.17} parent=11 // pred_region
        _
      $region20: #{affinity_vae_forward.17} parent=11 // pred_fallthru
        _
    $region12: #{affinity_vae_forward.17} parent=5 // pred_fallthru
      _
    %p124 = scmp.lt.s32.totalorder %s9, 4
    // Predicated region
    $region21: #{affinity_vae_forward.17} parent=5 // pred_check
      %p125 = pneg %p124
    $region22: #{affinity_vae_forward.17} parent=5 // pred_check_branch
      %127 = sbr.rel (%p125) target = $region24
    $region23: #{affinity_vae_forward.17} parent=5 // pred_region
      // Predicated region
      $region25: #{affinity_vae_forward.17} parent=23 // pred_check
        %p128 = pneg %p29
      $region26: #{affinity_vae_forward.17} parent=23 // pred_check_branch
        %130 = sbr.rel (%p128) target = $region28
      $region27: #{affinity_vae_forward.17} parent=23 // pred_region
        %s131 = smul.u32 64, %s9
        %p132 = scmp.lt.s32.totalorder %s131, 255
        %s133 = scalar_select %p132, %s131, 255
        %s134 = smul.addr %s133, 4
        %s135 = scalar_lea.vmem %s0, %s134
        %s136 = smul.u32 64, %s9
      $region28: #{affinity_vae_forward.17} parent=23 // pred_fallthru
        _
    $region24: #{affinity_vae_forward.17} parent=5 // pred_fallthru
      _
    %p137 = scmp.le.s32.totalorder 1, %s9
    %p138 = scmp.lt.s32.totalorder %s9, 5
    %p139 = pnand %p137, %p138
    %p140 = pneg %p139
    // Predicated region
    $region29: #{affinity_vae_forward.17} parent=5 // pred_check
      _
    $region30: #{affinity_vae_forward.17} parent=5 // pred_check_branch
      %142 = sbr.rel (%p139) target = $region32
    $region31: #{affinity_vae_forward.17} parent=5 // pred_region
      %s143 = ssub.s32 %s9, 1
      %s144 = smul.u32 64, %s14
      %p145 = scmp.lt.s32.totalorder %s144, 255
      %s146 = scalar_select %p145, %s144, 255
      %s147 = smul.addr %s146, 4
      %s148 = scalar_lea.vmem %s0, %s147
      %p149 = pneg %p35
      %p150 = pneg %p32
      %p151 = pneg %p56
      %p152 = pneg %p53
      %p153 = pneg %p77
      %p154 = pneg %p74
      %p155 = pneg %p103
      %p156 = pneg %p100
      %s157 = smul.u32 64, %s14
      %p158 = scmp.lt.s32.totalorder %s157, 255
      %s159 = scalar_select %p158, %s157, 255
      %s160 = smul.addr %s159, 8
      %s161 = scalar_lea.vmem %s3, %s160
      %s162 = smul.u32 64, %s14
      %p163 = scmp.lt.s32.totalorder %s162, 255
      %s164 = scalar_select %p163, %s162, 255
      %s165 = smul.addr %s164, 4
      %s166 = scalar_lea.vmem %s0, %s165
      %s167 = smul.u32 64, %s14
      %s168 = smul.u32 64, %s14
      %p169 = scmp.lt.s32.totalorder %s168, 255
      %s170 = scalar_select %p169, %s168, 255
      %s171 = smul.addr %s170, 8
      %s172 = scalar_lea.vmem %s3, %s171
      %s173 = smul.u32 64, %s14
      %v175 = vld [vmem:[%s166] sm:$0xf]
      %v176 = vld [vmem:[%s166 + $0x4] sm:$0xf]
      %v177 = vld [vmem:[%s166 + $0x8] sm:$0xf]
      %v178 = vld [vmem:[%s166 + $0xc] sm:$0xf]
      %v179 = vld [vmem:[%s166 + $0x10] sm:$0xf]
      %v180 = vld [vmem:[%s166 + $0x14] sm:$0xf]
      %v181 = vld [vmem:[%s166 + $0x18] sm:$0xf]
      %v182 = vld [vmem:[%s166 + $0x1c] sm:$0xf]
      %v183 = vld [vmem:[%s166 + $0x20] sm:$0xf]
      %v184 = vld [vmem:[%s166 + $0x24] sm:$0xf]
      %v185 = vld [vmem:[%s166 + $0x28] sm:$0xf]
      %v186 = vld [vmem:[%s166 + $0x2c] sm:$0xf]
      %v187 = vld [vmem:[%s166 + $0x30] sm:$0xf]
      %v188 = vld [vmem:[%s166 + $0x34] sm:$0xf]
      %v189 = vld [vmem:[%s166 + $0x38] sm:$0xf]
      %v190 = vld [vmem:[%s166 + $0x3c] sm:$0xf]
      %v191 = vld [vmem:[%s166 + $0x40] sm:$0xf]
      %v192 = vld [vmem:[%s166 + $0x44] sm:$0xf]
      %v193 = vld [vmem:[%s166 + $0x48] sm:$0xf]
      %v194 = vld [vmem:[%s166 + $0x4c] sm:$0xf]
      %v195 = vld [vmem:[%s166 + $0x50] sm:$0xf]
      %v196 = vld [vmem:[%s166 + $0x54] sm:$0xf]
      %v197 = vld [vmem:[%s166 + $0x58] sm:$0xf]
      %v198 = vld [vmem:[%s166 + $0x5c] sm:$0xf]
      %v199 = vld [vmem:[%s166 + $0x60] sm:$0xf]
      %v200 = vld [vmem:[%s166 + $0x64] sm:$0xf]
      %v201 = vld [vmem:[%s166 + $0x68] sm:$0xf]
      %v202 = vld [vmem:[%s166 + $0x6c] sm:$0xf]
      %v203 = vld [vmem:[%s166 + $0x70] sm:$0xf]
      %v204 = vld [vmem:[%s166 + $0x74] sm:$0xf]
      %v205 = vld [vmem:[%s166 + $0x78] sm:$0xf]
      %v206 = vld [vmem:[%s166 + $0x7c] sm:$0xf]
      %v207 = vld [vmem:[%s166 + $0x80] sm:$0xf]
      %v208 = vld [vmem:[%s166 + $0x84] sm:$0xf]
      %v209 = vld [vmem:[%s166 + $0x88] sm:$0xf]
      %v210 = vld [vmem:[%s166 + $0x8c] sm:$0xf]
      %v211 = vld [vmem:[%s166 + $0x90] sm:$0xf]
      %v212 = vld [vmem:[%s166 + $0x94] sm:$0xf]
      %v213 = vld [vmem:[%s166 + $0x98] sm:$0xf]
      %v214 = vld [vmem:[%s166 + $0x9c] sm:$0xf]
      %v215 = vld [vmem:[%s166 + $0xa0] sm:$0xf]
      %v216 = vld [vmem:[%s166 + $0xa4] sm:$0xf]
      %v217 = vld [vmem:[%s166 + $0xa8] sm:$0xf]
      %v218 = vld [vmem:[%s166 + $0xac] sm:$0xf]
      %v219 = vld [vmem:[%s166 + $0xb0] sm:$0xf]
      %v220 = vld [vmem:[%s166 + $0xb4] sm:$0xf]
      %v221 = vld [vmem:[%s166 + $0xb8] sm:$0xf]
      %v222 = vld [vmem:[%s166 + $0xbc] sm:$0xf]
      %v223 = vld [vmem:[%s166 + $0xc0] sm:$0xf]
      %v224 = vld [vmem:[%s166 + $0xc4] sm:$0xf]
      %v225 = vld [vmem:[%s166 + $0xc8] sm:$0xf]
      %v226 = vld [vmem:[%s166 + $0xcc] sm:$0xf]
      %v227 = vld [vmem:[%s166 + $0xd0] sm:$0xf]
      %v228 = vld [vmem:[%s166 + $0xd4] sm:$0xf]
      %v229 = vld [vmem:[%s166 + $0xd8] sm:$0xf]
      %v230 = vld [vmem:[%s166 + $0xdc] sm:$0xf]
      %v231 = vld [vmem:[%s166 + $0xe0] sm:$0xf]
      %v232 = vld [vmem:[%s166 + $0xe4] sm:$0xf]
      %v233 = vld [vmem:[%s166 + $0xe8] sm:$0xf]
      %v234 = vld [vmem:[%s166 + $0xec] sm:$0xf]
      %v235 = vld [vmem:[%s166 + $0xf0] sm:$0xf]
      %v236 = vld [vmem:[%s166 + $0xf4] sm:$0xf]
      %v237 = vld [vmem:[%s166 + $0xf8] sm:$0xf]
      %v238 = vld [vmem:[%s166 + $0xfc] sm:$0xf]
      %v239 = vld [vmem:[%s1] sm:$0xf]
      %v240 = vld [vmem:[%s1 + $0x4] sm:$0xf]
      %v241 = vld [vmem:[%s1 + $0x8] sm:$0xf]
      %v242 = vld [vmem:[%s1 + $0xc] sm:$0xf]
      %v243 = vld [vmem:[%s2] sm:$0x1]
      %v245 = vlaneseq
      %v246 = vshrl.u32 %v245, 7
      %v247 = vsub.s32 0, %v246
      %v248 = vrot.slane %v243, %v247
      %v314 = vunpack.c.l.b16 %v175
      %v315 = vunpack.c.l.b16 %v176
      %v316 = vunpack.c.l.b16 %v177
      %v317 = vunpack.c.l.b16 %v178
      %v318 = vunpack.c.l.b16 %v179
      %v319 = vunpack.c.l.b16 %v180
      %v320 = vunpack.c.l.b16 %v181
      %v321 = vunpack.c.l.b16 %v182
      %v322 = vunpack.c.l.b16 %v183
      %v323 = vunpack.c.l.b16 %v184
      %v324 = vunpack.c.l.b16 %v185
      %v325 = vunpack.c.l.b16 %v186
      %v326 = vunpack.c.l.b16 %v187
      %v327 = vunpack.c.l.b16 %v188
      %v328 = vunpack.c.l.b16 %v189
      %v329 = vunpack.c.l.b16 %v190
      %v330 = vunpack.c.l.b16 %v191
      %v331 = vunpack.c.l.b16 %v192
      %v332 = vunpack.c.l.b16 %v193
      %v333 = vunpack.c.l.b16 %v194
      %v334 = vunpack.c.l.b16 %v195
      %v335 = vunpack.c.l.b16 %v196
      %v336 = vunpack.c.l.b16 %v197
      %v337 = vunpack.c.l.b16 %v198
      %v338 = vunpack.c.l.b16 %v199
      %v339 = vunpack.c.l.b16 %v200
      %v340 = vunpack.c.l.b16 %v201
      %v341 = vunpack.c.l.b16 %v202
      %v342 = vunpack.c.l.b16 %v203
      %v343 = vunpack.c.l.b16 %v204
      %v344 = vunpack.c.l.b16 %v205
      %v345 = vunpack.c.l.b16 %v206
      %v346 = vunpack.c.l.b16 %v207
      %v347 = vunpack.c.l.b16 %v208
      %v348 = vunpack.c.l.b16 %v209
      %v349 = vunpack.c.l.b16 %v210
      %v350 = vunpack.c.l.b16 %v211
      %v351 = vunpack.c.l.b16 %v212
      %v352 = vunpack.c.l.b16 %v213
      %v353 = vunpack.c.l.b16 %v214
      %v354 = vunpack.c.l.b16 %v215
      %v355 = vunpack.c.l.b16 %v216
      %v356 = vunpack.c.l.b16 %v217
      %v357 = vunpack.c.l.b16 %v218
      %v358 = vunpack.c.l.b16 %v219
      %v359 = vunpack.c.l.b16 %v220
      %v360 = vunpack.c.l.b16 %v221
      %v361 = vunpack.c.l.b16 %v222
      %v362 = vunpack.c.l.b16 %v223
      %v363 = vunpack.c.l.b16 %v224
      %v364 = vunpack.c.l.b16 %v225
      %v365 = vunpack.c.l.b16 %v226
      %v366 = vunpack.c.l.b16 %v227
      %v367 = vunpack.c.l.b16 %v228
      %v368 = vunpack.c.l.b16 %v229
      %v369 = vunpack.c.l.b16 %v230
      %v370 = vunpack.c.l.b16 %v231
      %v371 = vunpack.c.l.b16 %v232
      %v372 = vunpack.c.l.b16 %v233
      %v373 = vunpack.c.l.b16 %v234
      %v374 = vunpack.c.l.b16 %v235
      %v375 = vunpack.c.l.b16 %v236
      %v376 = vunpack.c.l.b16 %v237
      %v377 = vunpack.c.l.b16 %v238
      %v378 = vpack.c.b16 %v315, %v314
      %v379 = vpack.c.b16 %v317, %v316
      %v380 = vpack.c.b16 %v319, %v318
      %v381 = vpack.c.b16 %v321, %v320
      %v382 = vpack.c.b16 %v323, %v322
      %v383 = vpack.c.b16 %v325, %v324
      %v384 = vpack.c.b16 %v327, %v326
      %v385 = vpack.c.b16 %v329, %v328
      %v386 = vpack.c.b16 %v331, %v330
      %v387 = vpack.c.b16 %v333, %v332
      %v388 = vpack.c.b16 %v335, %v334
      %v389 = vpack.c.b16 %v337, %v336
      %v390 = vpack.c.b16 %v339, %v338
      %v391 = vpack.c.b16 %v341, %v340
      %v392 = vpack.c.b16 %v343, %v342
      %v393 = vpack.c.b16 %v345, %v344
      %v394 = vpack.c.b16 %v347, %v346
      %v395 = vpack.c.b16 %v349, %v348
      %v396 = vpack.c.b16 %v351, %v350
      %v397 = vpack.c.b16 %v353, %v352
      %v398 = vpack.c.b16 %v355, %v354
      %v399 = vpack.c.b16 %v357, %v356
      %v400 = vpack.c.b16 %v359, %v358
      %v401 = vpack.c.b16 %v361, %v360
      %v402 = vpack.c.b16 %v363, %v362
      %v403 = vpack.c.b16 %v365, %v364
      %v404 = vpack.c.b16 %v367, %v366
      %v405 = vpack.c.b16 %v369, %v368
      %v406 = vpack.c.b16 %v371, %v370
      %v407 = vpack.c.b16 %v373, %v372
      %v408 = vpack.c.b16 %v375, %v374
      %v409 = vpack.c.b16 %v377, %v376
      %v414 = vunpack.c.l.b16 %v239
      %v415 = vunpack.c.l.b16 %v240
      %v416 = vunpack.c.l.b16 %v241
      %v417 = vunpack.c.l.b16 %v242
      %v418 = vpack.c.b16 %v415, %v414
      %v419 = vpack.c.b16 %v417, %v416
      %vm422 = vcmask 261120
      %v424 = vsel %vm422, %v378, 0
      %v427 = vsel %vm422, %v379, 0
      %v430 = vsel %vm422, %v380, 0
      %v433 = vsel %vm422, %v381, 0
      %v436 = vsel %vm422, %v382, 0
      %v439 = vsel %vm422, %v383, 0
      %v442 = vsel %vm422, %v384, 0
      %v445 = vsel %vm422, %v385, 0
      %v448 = vsel %vm422, %v386, 0
      %v451 = vsel %vm422, %v387, 0
      %v454 = vsel %vm422, %v388, 0
      %v457 = vsel %vm422, %v389, 0
      %v460 = vsel %vm422, %v390, 0
      %v463 = vsel %vm422, %v391, 0
      %v466 = vsel %vm422, %v392, 0
      %v469 = vsel %vm422, %v393, 0
      %v472 = vsel %vm422, %v394, 0
      %v475 = vsel %vm422, %v395, 0
      %v478 = vsel %vm422, %v396, 0
      %v481 = vsel %vm422, %v397, 0
      %v484 = vsel %vm422, %v398, 0
      %v487 = vsel %vm422, %v399, 0
      %v490 = vsel %vm422, %v400, 0
      %v493 = vsel %vm422, %v401, 0
      %v496 = vsel %vm422, %v402, 0
      %v499 = vsel %vm422, %v403, 0
      %v502 = vsel %vm422, %v404, 0
      %v505 = vsel %vm422, %v405, 0
      %v508 = vsel %vm422, %v406, 0
      %v511 = vsel %vm422, %v407, 0
      %v514 = vsel %vm422, %v408, 0
      %v517 = vsel %vm422, %v409, 0
      %519 = vmatprep.subr.bf16.mxu0 0
      %520 = vmatpush1.bf16.msra.mxu0 %v418
      %521 = vmatprep.subr.bf16.mxu0 0
      %522 = vmatpush1.bf16.msra.mxu0 %v419
      %523 = vmatprep.subr.bf16.mxu0 0
      %524 = vmatpush1.bf16.msra.mxu0 0
      %525 = vmatprep.subr.bf16.mxu0 0
      %526 = vmatpush1.bf16.msra.mxu0 0
      %527 = vmatprep.subr.bf16.mxu0 0
      %528 = vmatpush1.bf16.msra.mxu0 0
      %529 = vmatprep.subr.bf16.mxu0 0
      %530 = vmatpush1.bf16.msra.mxu0 0
      %531 = vmatprep.subr.bf16.mxu0 0
      %532 = vmatpush1.bf16.msra.mxu0 0
      %533 = vmatprep.subr.bf16.mxu0 0
      %534 = vmatpush1.bf16.msra.mxu0 0
      %535 = vmatprep.subr.bf16.mxu0 0
      %536 = vmatpush1.bf16.msra.mxu0 0
      %537 = vmatprep.subr.bf16.mxu0 0
      %538 = vmatpush1.bf16.msra.mxu0 0
      %539 = vmatprep.subr.bf16.mxu0 0
      %540 = vmatpush1.bf16.msra.mxu0 0
      %541 = vmatprep.subr.bf16.mxu0 0
      %542 = vmatpush1.bf16.msra.mxu0 0
      %543 = vmatprep.subr.bf16.mxu0 0
      %544 = vmatpush1.bf16.msra.mxu0 0
      %545 = vmatprep.subr.bf16.mxu0 0
      %546 = vmatpush1.bf16.msra.mxu0 0
      %547 = vmatprep.subr.bf16.mxu0 0
      %548 = vmatpush1.bf16.msra.mxu0 0
      %549 = vmatprep.subr.bf16.mxu0 0
      %550 = vmatpush1.bf16.msra.mxu0 0
      %551 = vmatprep.mubr.bf16.mxu0 0
      %552 = vmatmul.mubr.bf16.gmra.mrb[0].mxu0 %v424
      %v553 = vpop.f32.mrb[0].mxu0
      %v554 = vadd.f32 %v248, %v553
      %v555 = vpop.f32.mrb[0].mxu0
      %v556 = vpop.f32.mrb[0].mxu0
      %v557 = vadd.f32 %v248, %v556
      %v558 = vpop.f32.mrb[0].mxu0
      %559 = vmatprep.mubr.bf16.mxu0 0
      %560 = vmatmul.mubr.bf16.gmra.mrb[0].mxu0 %v427
      %v561 = vpop.f32.mrb[0].mxu0
      %v562 = vadd.f32 %v248, %v561
      %v563 = vpop.f32.mrb[0].mxu0
      %v564 = vpop.f32.mrb[0].mxu0
      %v565 = vadd.f32 %v248, %v564
      %v566 = vpop.f32.mrb[0].mxu0
      %567 = vmatprep.mubr.bf16.mxu0 0
      %568 = vmatmul.mubr.bf16.gmra.mrb[0].mxu0 %v430
      %v569 = vpop.f32.mrb[0].mxu0
      %v570 = vadd.f32 %v248, %v569
      %v571 = vpop.f32.mrb[0].mxu0
      %v572 = vpop.f32.mrb[0].mxu0
      %v573 = vadd.f32 %v248, %v572
      %v574 = vpop.f32.mrb[0].mxu0
      %575 = vmatprep.mubr.bf16.mxu0 0
      %576 = vmatmul.mubr.bf16.gmra.mrb[0].mxu0 %v433
      %v577 = vpop.f32.mrb[0].mxu0
      %v578 = vadd.f32 %v248, %v577
      %v579 = vpop.f32.mrb[0].mxu0
      %v580 = vpop.f32.mrb[0].mxu0
      %v581 = vadd.f32 %v248, %v580
      %v582 = vpop.f32.mrb[0].mxu0
      %583 = vmatprep.mubr.bf16.mxu0 0
      %584 = vmatmul.mubr.bf16.gmra.mrb[0].mxu0 %v436
      %v585 = vpop.f32.mrb[0].mxu0
      %v586 = vadd.f32 %v248, %v585
      %v587 = vpop.f32.mrb[0].mxu0
      %v588 = vpop.f32.mrb[0].mxu0
      %v589 = vadd.f32 %v248, %v588
      %v590 = vpop.f32.mrb[0].mxu0
      %591 = vmatprep.mubr.bf16.mxu0 0
      %592 = vmatmul.mubr.bf16.gmra.mrb[0].mxu0 %v439
      %v593 = vpop.f32.mrb[0].mxu0
      %v594 = vadd.f32 %v248, %v593
      %v595 = vpop.f32.mrb[0].mxu0
      %v596 = vpop.f32.mrb[0].mxu0
      %v597 = vadd.f32 %v248, %v596
      %v598 = vpop.f32.mrb[0].mxu0
      %599 = vmatprep.mubr.bf16.mxu0 0
      %600 = vmatmul.mubr.bf16.gmra.mrb[0].mxu0 %v442
      %v601 = vpop.f32.mrb[0].mxu0
      %v602 = vadd.f32 %v248, %v601
      %v603 = vpop.f32.mrb[0].mxu0
      %v604 = vpop.f32.mrb[0].mxu0
      %v605 = vadd.f32 %v248, %v604
      %v606 = vpop.f32.mrb[0].mxu0
      %607 = vmatprep.mubr.bf16.mxu0 0
      %608 = vmatmul.mubr.bf16.gmra.mrb[0].mxu0 %v445
      %v609 = vpop.f32.mrb[0].mxu0
      %v610 = vadd.f32 %v248, %v609
      %v611 = vpop.f32.mrb[0].mxu0
      %v612 = vpop.f32.mrb[0].mxu0
      %v613 = vadd.f32 %v248, %v612
      %v614 = vpop.f32.mrb[0].mxu0
      %615 = vmatprep.mubr.bf16.mxu0 0
      %616 = vmatmul.mubr.bf16.gmra.mrb[0].mxu0 %v448
      %v617 = vpop.f32.mrb[0].mxu0
      %v618 = vadd.f32 %v248, %v617
      %v619 = vpop.f32.mrb[0].mxu0
      %v620 = vpop.f32.mrb[0].mxu0
      %v621 = vadd.f32 %v248, %v620
      %v622 = vpop.f32.mrb[0].mxu0
      %623 = vmatprep.mubr.bf16.mxu0 0
      %624 = vmatmul.mubr.bf16.gmra.mrb[0].mxu0 %v451
      %v625 = vpop.f32.mrb[0].mxu0
      %v626 = vadd.f32 %v248, %v625
      %v627 = vpop.f32.mrb[0].mxu0
      %v628 = vpop.f32.mrb[0].mxu0
      %v629 = vadd.f32 %v248, %v628
      %v630 = vpop.f32.mrb[0].mxu0
      %631 = vmatprep.mubr.bf16.mxu0 0
      %632 = vmatmul.mubr.bf16.gmra.mrb[0].mxu0 %v454
      %v633 = vpop.f32.mrb[0].mxu0
      %v634 = vadd.f32 %v248, %v633
      %v635 = vpop.f32.mrb[0].mxu0
      %v636 = vpop.f32.mrb[0].mxu0
      %v637 = vadd.f32 %v248, %v636
      %v638 = vpop.f32.mrb[0].mxu0
      %639 = vmatprep.mubr.bf16.mxu0 0
      %640 = vmatmul.mubr.bf16.gmra.mrb[0].mxu0 %v457
      %v641 = vpop.f32.mrb[0].mxu0
      %v642 = vadd.f32 %v248, %v641
      %v643 = vpop.f32.mrb[0].mxu0
      %v644 = vpop.f32.mrb[0].mxu0
      %v645 = vadd.f32 %v248, %v644
      %v646 = vpop.f32.mrb[0].mxu0
      %647 = vmatprep.mubr.bf16.mxu0 0
      %648 = vmatmul.mubr.bf16.gmra.mrb[0].mxu0 %v460
      %v649 = vpop.f32.mrb[0].mxu0
      %v650 = vadd.f32 %v248, %v649
      %v651 = vpop.f32.mrb[0].mxu0
      %v652 = vpop.f32.mrb[0].mxu0
      %v653 = vadd.f32 %v248, %v652
      %v654 = vpop.f32.mrb[0].mxu0
      %655 = vmatprep.mubr.bf16.mxu0 0
      %656 = vmatmul.mubr.bf16.gmra.mrb[0].mxu0 %v463
      %v657 = vpop.f32.mrb[0].mxu0
      %v658 = vadd.f32 %v248, %v657
      %v659 = vpop.f32.mrb[0].mxu0
      %v660 = vpop.f32.mrb[0].mxu0
      %v661 = vadd.f32 %v248, %v660
      %v662 = vpop.f32.mrb[0].mxu0
      %663 = vmatprep.mubr.bf16.mxu0 0
      %664 = vmatmul.mubr.bf16.gmra.mrb[0].mxu0 %v466
      %v665 = vpop.f32.mrb[0].mxu0
      %v666 = vadd.f32 %v248, %v665
      %v667 = vpop.f32.mrb[0].mxu0
      %v668 = vpop.f32.mrb[0].mxu0
      %v669 = vadd.f32 %v248, %v668
      %v670 = vpop.f32.mrb[0].mxu0
      %671 = vmatprep.mubr.bf16.mxu0 0
      %672 = vmatmul.mubr.bf16.gmra.mrb[0].mxu0 %v469
      %v673 = vpop.f32.mrb[0].mxu0
      %v674 = vadd.f32 %v248, %v673
      %v675 = vpop.f32.mrb[0].mxu0
      %v676 = vpop.f32.mrb[0].mxu0
      %v677 = vadd.f32 %v248, %v676
      %v678 = vpop.f32.mrb[0].mxu0
      %679 = vmatprep.mubr.bf16.mxu0 0
      %680 = vmatmul.mubr.bf16.gmra.mrb[0].mxu0 %v472
      %v681 = vpop.f32.mrb[0].mxu0
      %v682 = vadd.f32 %v248, %v681
      %v683 = vpop.f32.mrb[0].mxu0
      %v684 = vpop.f32.mrb[0].mxu0
      %v685 = vadd.f32 %v248, %v684
      %v686 = vpop.f32.mrb[0].mxu0
      %687 = vmatprep.mubr.bf16.mxu0 0
      %688 = vmatmul.mubr.bf16.gmra.mrb[0].mxu0 %v475
      %v689 = vpop.f32.mrb[0].mxu0
      %v690 = vadd.f32 %v248, %v689
      %v691 = vpop.f32.mrb[0].mxu0
      %v692 = vpop.f32.mrb[0].mxu0
      %v693 = vadd.f32 %v248, %v692
      %v694 = vpop.f32.mrb[0].mxu0
      %695 = vmatprep.mubr.bf16.mxu0 0
      %696 = vmatmul.mubr.bf16.gmra.mrb[0].mxu0 %v478
      %v697 = vpop.f32.mrb[0].mxu0
      %v698 = vadd.f32 %v248, %v697
      %v699 = vpop.f32.mrb[0].mxu0
      %v700 = vpop.f32.mrb[0].mxu0
      %v701 = vadd.f32 %v248, %v700
      %v702 = vpop.f32.mrb[0].mxu0
      %703 = vmatprep.mubr.bf16.mxu0 0
      %704 = vmatmul.mubr.bf16.gmra.mrb[0].mxu0 %v481
      %v705 = vpop.f32.mrb[0].mxu0
      %v706 = vadd.f32 %v248, %v705
      %v707 = vpop.f32.mrb[0].mxu0
      %v708 = vpop.f32.mrb[0].mxu0
      %v709 = vadd.f32 %v248, %v708
      %v710 = vpop.f32.mrb[0].mxu0
      %711 = vmatprep.mubr.bf16.mxu0 0
      %712 = vmatmul.mubr.bf16.gmra.mrb[0].mxu0 %v484
      %v713 = vpop.f32.mrb[0].mxu0
      %v714 = vadd.f32 %v248, %v713
      %v715 = vpop.f32.mrb[0].mxu0
      %v716 = vpop.f32.mrb[0].mxu0
      %v717 = vadd.f32 %v248, %v716
      %v718 = vpop.f32.mrb[0].mxu0
      %719 = vmatprep.mubr.bf16.mxu0 0
      %720 = vmatmul.mubr.bf16.gmra.mrb[0].mxu0 %v487
      %v721 = vpop.f32.mrb[0].mxu0
      %v722 = vadd.f32 %v248, %v721
      %v723 = vpop.f32.mrb[0].mxu0
      %v724 = vpop.f32.mrb[0].mxu0
      %v725 = vadd.f32 %v248, %v724
      %v726 = vpop.f32.mrb[0].mxu0
      %727 = vmatprep.mubr.bf16.mxu0 0
      %728 = vmatmul.mubr.bf16.gmra.mrb[0].mxu0 %v490
      %v729 = vpop.f32.mrb[0].mxu0
      %v730 = vadd.f32 %v248, %v729
      %v731 = vpop.f32.mrb[0].mxu0
      %v732 = vpop.f32.mrb[0].mxu0
      %v733 = vadd.f32 %v248, %v732
      %v734 = vpop.f32.mrb[0].mxu0
      %735 = vmatprep.mubr.bf16.mxu0 0
      %736 = vmatmul.mubr.bf16.gmra.mrb[0].mxu0 %v493
      %v737 = vpop.f32.mrb[0].mxu0
      %v738 = vadd.f32 %v248, %v737
      %v739 = vpop.f32.mrb[0].mxu0
      %v740 = vpop.f32.mrb[0].mxu0
      %v741 = vadd.f32 %v248, %v740
      %v742 = vpop.f32.mrb[0].mxu0
      %743 = vmatprep.mubr.bf16.mxu0 0
      %744 = vmatmul.mubr.bf16.gmra.mrb[0].mxu0 %v496
      %v745 = vpop.f32.mrb[0].mxu0
      %v746 = vadd.f32 %v248, %v745
      %v747 = vpop.f32.mrb[0].mxu0
      %v748 = vpop.f32.mrb[0].mxu0
      %v749 = vadd.f32 %v248, %v748
      %v750 = vpop.f32.mrb[0].mxu0
      %751 = vmatprep.mubr.bf16.mxu0 0
      %752 = vmatmul.mubr.bf16.gmra.mrb[0].mxu0 %v499
      %v753 = vpop.f32.mrb[0].mxu0
      %v754 = vadd.f32 %v248, %v753
      %v755 = vpop.f32.mrb[0].mxu0
      %v756 = vpop.f32.mrb[0].mxu0
      %v757 = vadd.f32 %v248, %v756
      %v758 = vpop.f32.mrb[0].mxu0
      %759 = vmatprep.mubr.bf16.mxu0 0
      %760 = vmatmul.mubr.bf16.gmra.mrb[0].mxu0 %v502
      %v761 = vpop.f32.mrb[0].mxu0
      %v762 = vadd.f32 %v248, %v761
      %v763 = vpop.f32.mrb[0].mxu0
      %v764 = vpop.f32.mrb[0].mxu0
      %v765 = vadd.f32 %v248, %v764
      %v766 = vpop.f32.mrb[0].mxu0
      %767 = vmatprep.mubr.bf16.mxu0 0
      %768 = vmatmul.mubr.bf16.gmra.mrb[0].mxu0 %v505
      %v769 = vpop.f32.mrb[0].mxu0
      %v770 = vadd.f32 %v248, %v769
      %v771 = vpop.f32.mrb[0].mxu0
      %v772 = vpop.f32.mrb[0].mxu0
      %v773 = vadd.f32 %v248, %v772
      %v774 = vpop.f32.mrb[0].mxu0
      %775 = vmatprep.mubr.bf16.mxu0 0
      %776 = vmatmul.mubr.bf16.gmra.mrb[0].mxu0 %v508
      %v777 = vpop.f32.mrb[0].mxu0
      %v778 = vadd.f32 %v248, %v777
      %v779 = vpop.f32.mrb[0].mxu0
      %v780 = vpop.f32.mrb[0].mxu0
      %v781 = vadd.f32 %v248, %v780
      %v782 = vpop.f32.mrb[0].mxu0
      %783 = vmatprep.mubr.bf16.mxu0 0
      %784 = vmatmul.mubr.bf16.gmra.mrb[0].mxu0 %v511
      %v785 = vpop.f32.mrb[0].mxu0
      %v786 = vadd.f32 %v248, %v785
      %v787 = vpop.f32.mrb[0].mxu0
      %v788 = vpop.f32.mrb[0].mxu0
      %v789 = vadd.f32 %v248, %v788
      %v790 = vpop.f32.mrb[0].mxu0
      %791 = vmatprep.mubr.bf16.mxu0 0
      %792 = vmatmul.mubr.bf16.gmra.mrb[0].mxu0 %v514
      %v793 = vpop.f32.mrb[0].mxu0
      %v794 = vadd.f32 %v248, %v793
      %v795 = vpop.f32.mrb[0].mxu0
      %v796 = vpop.f32.mrb[0].mxu0
      %v797 = vadd.f32 %v248, %v796
      %v798 = vpop.f32.mrb[0].mxu0
      %799 = vmatprep.mubr.bf16.mxu0 0
      %800 = vmatmul.mubr.bf16.gmra.mrb[0].mxu0 %v517
      %v801 = vpop.f32.mrb[0].mxu0
      %v802 = vadd.f32 %v248, %v801
      %v803 = vpop.f32.mrb[0].mxu0
      %v804 = vpop.f32.mrb[0].mxu0
      %v805 = vadd.f32 %v248, %v804
      %v806 = vpop.f32.mrb[0].mxu0
      %807 = vdwg.mxu0
      %808 = vst [vmem:[%s172] sm:$0xff] %v554
      %809 = vst [vmem:[%s172 + $0x8] sm:$0xff] %v557
      %810 = vst [vmem:[%s172 + $0x10] sm:$0xff] %v562
      %811 = vst [vmem:[%s172 + $0x18] sm:$0xff] %v565
      %812 = vst [vmem:[%s172 + $0x20] sm:$0xff] %v570
      %813 = vst [vmem:[%s172 + $0x28] sm:$0xff] %v573
      %814 = vst [vmem:[%s172 + $0x30] sm:$0xff] %v578
      %815 = vst [vmem:[%s172 + $0x38] sm:$0xff] %v581
      %816 = vst [vmem:[%s172 + $0x40] sm:$0xff] %v586
      %817 = vst [vmem:[%s172 + $0x48] sm:$0xff] %v589
      %818 = vst [vmem:[%s172 + $0x50] sm:$0xff] %v594
      %819 = vst [vmem:[%s172 + $0x58] sm:$0xff] %v597
      %820 = vst [vmem:[%s172 + $0x60] sm:$0xff] %v602
      %821 = vst [vmem:[%s172 + $0x68] sm:$0xff] %v605
      %822 = vst [vmem:[%s172 + $0x70] sm:$0xff] %v610
      %823 = vst [vmem:[%s172 + $0x78] sm:$0xff] %v613
      %824 = vst [vmem:[%s172 + $0x80] sm:$0xff] %v618
      %825 = vst [vmem:[%s172 + $0x88] sm:$0xff] %v621
      %826 = vst [vmem:[%s172 + $0x90] sm:$0xff] %v626
      %827 = vst [vmem:[%s172 + $0x98] sm:$0xff] %v629
      %828 = vst [vmem:[%s172 + $0xa0] sm:$0xff] %v634
      %829 = vst [vmem:[%s172 + $0xa8] sm:$0xff] %v637
      %830 = vst [vmem:[%s172 + $0xb0] sm:$0xff] %v642
      %831 = vst [vmem:[%s172 + $0xb8] sm:$0xff] %v645
      %832 = vst [vmem:[%s172 + $0xc0] sm:$0xff] %v650
      %833 = vst [vmem:[%s172 + $0xc8] sm:$0xff] %v653
      %834 = vst [vmem:[%s172 + $0xd0] sm:$0xff] %v658
      %835 = vst [vmem:[%s172 + $0xd8] sm:$0xff] %v661
      %836 = vst [vmem:[%s172 + $0xe0] sm:$0xff] %v666
      %837 = vst [vmem:[%s172 + $0xe8] sm:$0xff] %v669
      %838 = vst [vmem:[%s172 + $0xf0] sm:$0xff] %v674
      %839 = vst [vmem:[%s172 + $0xf8] sm:$0xff] %v677
      %840 = vst [vmem:[%s172 + $0x100] sm:$0xff] %v682
      %841 = vst [vmem:[%s172 + $0x108] sm:$0xff] %v685
      %842 = vst [vmem:[%s172 + $0x110] sm:$0xff] %v690
      %843 = vst [vmem:[%s172 + $0x118] sm:$0xff] %v693
      %844 = vst [vmem:[%s172 + $0x120] sm:$0xff] %v698
      %845 = vst [vmem:[%s172 + $0x128] sm:$0xff] %v701
      %846 = vst [vmem:[%s172 + $0x130] sm:$0xff] %v706
      %847 = vst [vmem:[%s172 + $0x138] sm:$0xff] %v709
      %848 = vst [vmem:[%s172 + $0x140] sm:$0xff] %v714
      %849 = vst [vmem:[%s172 + $0x148] sm:$0xff] %v717
      %850 = vst [vmem:[%s172 + $0x150] sm:$0xff] %v722
      %851 = vst [vmem:[%s172 + $0x158] sm:$0xff] %v725
      %852 = vst [vmem:[%s172 + $0x160] sm:$0xff] %v730
      %853 = vst [vmem:[%s172 + $0x168] sm:$0xff] %v733
      %854 = vst [vmem:[%s172 + $0x170] sm:$0xff] %v738
      %855 = vst [vmem:[%s172 + $0x178] sm:$0xff] %v741
      %856 = vst [vmem:[%s172 + $0x180] sm:$0xff] %v746
      %857 = vst [vmem:[%s172 + $0x188] sm:$0xff] %v749
      %858 = vst [vmem:[%s172 + $0x190] sm:$0xff] %v754
      %859 = vst [vmem:[%s172 + $0x198] sm:$0xff] %v757
      %860 = vst [vmem:[%s172 + $0x1a0] sm:$0xff] %v762
      %861 = vst [vmem:[%s172 + $0x1a8] sm:$0xff] %v765
      %862 = vst [vmem:[%s172 + $0x1b0] sm:$0xff] %v770
      %863 = vst [vmem:[%s172 + $0x1b8] sm:$0xff] %v773
      %864 = vst [vmem:[%s172 + $0x1c0] sm:$0xff] %v778
      %865 = vst [vmem:[%s172 + $0x1c8] sm:$0xff] %v781
      %866 = vst [vmem:[%s172 + $0x1d0] sm:$0xff] %v786
      %867 = vst [vmem:[%s172 + $0x1d8] sm:$0xff] %v789
      %868 = vst [vmem:[%s172 + $0x1e0] sm:$0xff] %v794
      %869 = vst [vmem:[%s172 + $0x1e8] sm:$0xff] %v797
      %870 = vst [vmem:[%s172 + $0x1f0] sm:$0xff] %v802
      %871 = vst [vmem:[%s172 + $0x1f8] sm:$0xff] %v805
      %s872 = smul.u32 64, %s14
      %p873 = scmp.lt.s32.totalorder %s872, 255
      %s874 = scalar_select %p873, %s872, 255
      %s875 = smul.addr %s874, 8
      %s876 = scalar_lea.vmem %s3, %s875
      // Predicated region
      $region33: #{affinity_vae_forward.17} parent=31 // pred_check
        %p877 = pneg %p100
      $region34: #{affinity_vae_forward.17} parent=31 // pred_check_branch
        %879 = sbr.rel (%p877) target = $region36
      $region35: #{affinity_vae_forward.17} parent=31 // pred_region
        %s880 = smul.u32 64, %s14
      $region36: #{affinity_vae_forward.17} parent=31 // pred_fallthru
        _
    $region32: #{affinity_vae_forward.17} parent=5 // pred_fallthru
      _
    %p881 = scmp.le.s32.totalorder 2, %s9
    // Predicated region
    $region37: #{affinity_vae_forward.17} parent=5 // pred_check
      %p882 = pneg %p881
    $region38: #{affinity_vae_forward.17} parent=5 // pred_check_branch
      %884 = sbr.rel (%p882) target = $region40
    $region39: #{affinity_vae_forward.17} parent=5 // pred_region
      %s885 = ssub.s32 %s9, 2
      // Predicated region
      $region41: #{affinity_vae_forward.17} parent=39 // pred_check
        %p886 = pneg %p106
      $region42: #{affinity_vae_forward.17} parent=39 // pred_check_branch
        %888 = sbr.rel (%p886) target = $region44
      $region43: #{affinity_vae_forward.17} parent=39 // pred_region
        %s889 = smul.u32 64, %s15
        %p890 = scmp.lt.s32.totalorder %s889, 255
        %s891 = scalar_select %p890, %s889, 255
        %s892 = smul.addr %s891, 8
        %s893 = scalar_lea.vmem %s3, %s892
      $region44: #{affinity_vae_forward.17} parent=39 // pred_fallthru
        _
    $region40: #{affinity_vae_forward.17} parent=5 // pred_fallthru
      _
  $region6: #{affinity_vae_forward.17} parent=0 // loop_footer
    %s13 = sadd.s32 1, %s9
  $region7: #{affinity_vae_forward.17} parent=0 // loop_footer_branch
    %8 = sbr.rel target = $region3
  $region8: #{affinity_vae_forward.17} parent=0 // loop_exit
    _

</llo_original>
